<compile_context>
chip_gen: v5e
topology: v5e:2x2
jax: 0.10.0
libtpu: 0.0.40
codegen_flags: <defaults>
</compile_context>

<pallas_src>
import functools
from typing import NamedTuple

import jax
import jax.numpy as jnp
import numpy as np
from jax.experimental import pallas as pl
from jax.experimental.pallas import tpu as pltpu


_K = 5                 # conv kernel size
_S = 2                 # conv stride
_OC = (16, 32, 32)     # conv output channels
_TB = 8                # batch tile (rows per grid step; full sublane fill)


class Geom(NamedTuple):
    H: int
    W: int
    C: int
    H1: int
    W1: int
    H2: int
    W2: int
    H3: int
    W3: int
    P0: int            # padded widths (multiples of 128) of each layer's row
    P1: int
    P2: int
    P3: int
    n_actions: int
    n_pad: int         # n_actions padded to a multiple of 128


def _round_up(x: int, m: int = 128) -> int:
    return ((x + m - 1) // m) * m


def _conv_out(s: int) -> int:
    return (s - _K) // _S + 1


def make_geom(input_shape, n_actions):
    H, W, C = input_shape
    H1, W1 = _conv_out(H), _conv_out(W)
    H2, W2 = _conv_out(H1), _conv_out(W1)
    H3, W3 = _conv_out(H2), _conv_out(W2)
    return Geom(H=H, W=W, C=C, H1=H1, W1=W1, H2=H2, W2=W2, H3=H3, W3=W3,
                P0=_round_up(W * C), P1=_round_up(W1 * _OC[0]),
                P2=_round_up(W2 * _OC[1]), P3=_round_up(W3 * _OC[2]),
                n_actions=n_actions, n_pad=_round_up(n_actions))


# ----------------------------------------------------------------------------
# Fused Pallas kernel: conv1/2/3 (+ReLU) + fc1 (+ReLU) + fc2 + softmax.
# One batch tile (TB samples) per grid step; one MXU matmul per layer.
# ----------------------------------------------------------------------------
def _fused_cnn_kernel(lhs1_ref, w1_ref, b1_ref, w2_ref, b2_ref, w3_ref, b3_ref,
                      wf1_ref, bf1_ref, wf2_ref, bf2_ref, out_ref,
                      lhs2_ref, lhs3_ref, lhsf_ref, *, geom, tb):
    bf16, f32 = jnp.bfloat16, jnp.float32

    # conv1 + ReLU: LHS (H1*TB, KH*P0) was im2row'ed (height axis only) in the
    # wrapper; single K = KH*P0 matmul.
    a1 = jnp.dot(lhs1_ref[...].astype(bf16), w1_ref[...], preferred_element_type=f32)
    a1 = jnp.maximum(a1 + b1_ref[...], 0.0)                       # (H1*TB, P1)

    # Restack conv1 rows into conv2's LHS (static, TB-row aligned scratch stores),
    # then one K = KH*P1 matmul.
    for oh in range(geom.H2):
        for kh in range(_K):
            h = _S * oh + kh
            lhs2_ref[oh * tb:(oh + 1) * tb, kh * geom.P1:(kh + 1) * geom.P1] = \
                a1[h * tb:(h + 1) * tb, :]
    a2 = jnp.dot(lhs2_ref[...].astype(bf16), w2_ref[...], preferred_element_type=f32)
    a2 = jnp.maximum(a2 + b2_ref[...], 0.0)                       # (H2*TB, P2)

    # conv3 (same pattern).
    for oh in range(geom.H3):
        for kh in range(_K):
            h = _S * oh + kh
            lhs3_ref[oh * tb:(oh + 1) * tb, kh * geom.P2:(kh + 1) * geom.P2] = \
                a2[h * tb:(h + 1) * tb, :]
    a3 = jnp.dot(lhs3_ref[...].astype(bf16), w3_ref[...], preferred_element_type=f32)
    a3 = jnp.maximum(a3 + b3_ref[...], 0.0)                       # (H3*TB, P3)

    # fc1 + ReLU: per-sample lane-concat of conv3 rows (PyTorch's NCHW flatten is
    # folded into wf1 at init), one K = H3*P3 matmul.
    for oh in range(geom.H3):
        lhsf_ref[:, oh * geom.P3:(oh + 1) * geom.P3] = a3[oh * tb:(oh + 1) * tb, :]
    h1 = jnp.dot(lhsf_ref[...].astype(bf16), wf1_ref[...], preferred_element_type=f32)
    h1 = jnp.maximum(h1 + bf1_ref[...], 0.0)                      # (TB, 128)

    # fc2 + softmax over the n_pad padded lanes (pad bias = -1e30 -> exp = 0).
    logits = jnp.dot(h1.astype(bf16), wf2_ref[...], preferred_element_type=f32)
    logits = logits + bf2_ref[...]
    m = jnp.max(logits, axis=-1, keepdims=True)
    e = jnp.exp(logits - m)
    denom = jnp.sum(e, axis=-1, keepdims=True)
    out_ref[...] = (e / denom).astype(out_ref.dtype)              # exact normalization


@functools.partial(jax.jit, static_argnames=("geom",))
def cnn_policy_forward(kparams, img_nchw, geom):
    """img_nchw: (B, C, H, W) float32 -> policy (B, n_actions)."""
    # TODO(synk): the PyTorch module's preprocess() (cv2 resize + /255) is a
    # host-side numpy/cv2 path and is intentionally not implemented as a kernel.
    if img_nchw.ndim == 3:
        img_nchw = img_nchw[None]
    B = img_nchw.shape[0]
    n_tiles = (B + _TB - 1) // _TB
    B_pad = n_tiles * _TB

    # NCHW -> (B, H, W*C), pad batch to B_pad and row width to P0 (lane-dense).
    x = jnp.transpose(img_nchw, (0, 2, 3, 1)).reshape(B, geom.H, geom.W * geom.C)
    x = jnp.pad(x, ((0, B_pad - B), (0, 0), (0, geom.P0 - geom.W * geom.C)))

    # Height-axis im2row for conv1 (wrapper-side layout plumbing, ~KBs of data):
    # lhs1 row (tile, oh, b) holds concat_kh of input rows (2*oh + kh).
    hidx = np.arange(geom.H1)[:, None] * _S + np.arange(_K)[None, :]   # (H1, K)
    lhs1 = x[:, hidx, :]                                               # (B_pad, H1, K, P0)
    lhs1 = lhs1.reshape(B_pad, geom.H1, _K * geom.P0)
    lhs1 = lhs1.reshape(n_tiles, _TB, geom.H1, _K * geom.P0)
    lhs1 = jnp.transpose(lhs1, (0, 2, 1, 3)).reshape(
        n_tiles * geom.H1 * _TB, _K * geom.P0)

    args = (lhs1,
            kparams["w1t"], kparams["b1e"],
            kparams["w2t"], kparams["b2e"],
            kparams["w3t"], kparams["b3e"],
            kparams["wf1"], kparams["bf1"],
            kparams["wf2"], kparams["bf2"])

    def full_spec(a):
        return pl.BlockSpec(a.shape, lambda i: (0, 0))   # weight/bias: resident block

    in_specs = [pl.BlockSpec((geom.H1 * _TB, _K * geom.P0), lambda i: (i, 0))]
    in_specs += [full_spec(a) for a in args[1:]]

    out = pl.pallas_call(
        functools.partial(_fused_cnn_kernel, geom=geom, tb=_TB),
        out_shape=jax.ShapeDtypeStruct((B_pad, geom.n_pad), jnp.float32),
        grid=(n_tiles,),
        in_specs=in_specs,
        out_specs=pl.BlockSpec((_TB, geom.n_pad), lambda i: (i, 0)),
        scratch_shapes=[
            pltpu.VMEM((geom.H2 * _TB, _K * geom.P1), jnp.float32),   # conv2 LHS
            pltpu.VMEM((geom.H3 * _TB, _K * geom.P2), jnp.float32),   # conv3 LHS
            pltpu.VMEM((_TB, geom.H3 * geom.P3), jnp.float32),        # fc1 LHS
        ],
        compiler_params=pltpu.CompilerParams(
            dimension_semantics=("parallel",)),            # shard batch tiles (v7x)
    )(*args)
    return out[:B, :geom.n_actions]


# ----------------------------------------------------------------------------
# Init-time parameter packing (pure numpy/JAX, done once).
# ----------------------------------------------------------------------------
def _toeplitz_weight(w_oihw, w_in, p_in, p_out):
    """(OC, IC, KH, KW) conv weight -> kh-folded Toeplitz GEMM weight (KH*p_in, p_out)."""
    w = np.asarray(w_oihw, np.float32)
    OC, IC, KH, KW = w.shape
    OW = (w_in - KW) // _S + 1
    t = np.zeros((KH, p_in, p_out), np.float32)
    for kh in range(KH):
        for ow in range(OW):
            for kw in range(KW):
                wi = _S * ow + kw
                t[kh, wi * IC:(wi + 1) * IC, ow * OC:(ow + 1) * OC] = w[:, :, kh, kw].T
    return jnp.asarray(t.reshape(KH * p_in, p_out), jnp.bfloat16)


def _bias_row(b, ow, p_out):
    b = np.asarray(b, np.float32)
    oc = b.shape[0]
    e = np.zeros((1, p_out), np.float32)
    e[0, :ow * oc] = np.tile(b, ow)
    return jnp.asarray(e)


def pack_params(torch_params, geom):
    """Convert PyTorch-layout params into the fused kernel's padded GEMM layout."""
    OC3 = _OC[2]

    # fc1: fold PyTorch's NCHW flatten (oc, oh, ow) into the weight; one P3-row
    # block per conv3 output row (rows ordered (ow, oc) = conv output-row layout).
    fc1_w = np.asarray(torch_params["fc1_w"], np.float32)       # (128, OC3*H3*W3)
    wf1 = np.zeros((geom.H3 * geom.P3, 128), np.float32)
    for oh in range(geom.H3):
        for ow in range(geom.W3):
            for oc in range(OC3):
                src = oc * (geom.H3 * geom.W3) + oh * geom.W3 + ow
                wf1[oh * geom.P3 + ow * OC3 + oc, :] = fc1_w[:, src]

    fc2_w = np.asarray(torch_params["fc2_w"], np.float32)       # (n_actions, 128)
    wf2 = np.zeros((128, geom.n_pad), np.float32)
    wf2[:, :geom.n_actions] = fc2_w.T
    bf2 = np.full((1, geom.n_pad), -1e30, np.float32)           # pad lanes -> prob 0
    bf2[0, :geom.n_actions] = np.asarray(torch_params["fc2_b"], np.float32)

    return {
        "w1t": _toeplitz_weight(torch_params["conv1_w"], geom.W, geom.P0, geom.P1),
        "b1e": _bias_row(torch_params["conv1_b"], geom.W1, geom.P1),
        "w2t": _toeplitz_weight(torch_params["conv2_w"], geom.W1, geom.P1, geom.P2),
        "b2e": _bias_row(torch_params["conv2_b"], geom.W2, geom.P2),
        "w3t": _toeplitz_weight(torch_params["conv3_w"], geom.W2, geom.P2, geom.P3),
        "b3e": _bias_row(torch_params["conv3_b"], geom.W3, geom.P3),
        "wf1": jnp.asarray(wf1, jnp.bfloat16),
        "bf1": jnp.asarray(np.asarray(torch_params["fc1_b"], np.float32)[None, :]),
        "wf2": jnp.asarray(wf2, jnp.bfloat16),
        "bf2": jnp.asarray(bf2),
    }


def init_params(key, input_shape, n_actions):
    geom = make_geom(input_shape, n_actions)
    conv_output_size = _OC[2] * geom.H3 * geom.W3
    keys = jax.random.split(key, 10)
    s = 0.1
    torch_params = {  # PyTorch layouts: conv (OC, IC, KH, KW), linear (out, in)
        "conv1_w": jax.random.normal(keys[0], (_OC[0], geom.C, _K, _K), jnp.float32) * s,
        "conv1_b": jax.random.normal(keys[1], (_OC[0],), jnp.float32) * s,
        "conv2_w": jax.random.normal(keys[2], (_OC[1], _OC[0], _K, _K), jnp.float32) * s,
        "conv2_b": jax.random.normal(keys[3], (_OC[1],), jnp.float32) * s,
        "conv3_w": jax.random.normal(keys[4], (_OC[2], _OC[1], _K, _K), jnp.float32) * s,
        "conv3_b": jax.random.normal(keys[5], (_OC[2],), jnp.float32) * s,
        "fc1_w": jax.random.normal(keys[6], (128, conv_output_size), jnp.float32) * s,
        "fc1_b": jax.random.normal(keys[7], (128,), jnp.float32) * s,
        "fc2_w": jax.random.normal(keys[8], (n_actions, 128), jnp.float32) * s,
        "fc2_b": jax.random.normal(keys[9], (n_actions,), jnp.float32) * s,
    }
    return torch_params, pack_params(torch_params, geom), geom


# ----------------------------------------------------------------------------
# Pure-JAX reference (mirrors the PyTorch module) for correctness checking.
# ----------------------------------------------------------------------------
def reference_forward(torch_params, img_nchw):
    if img_nchw.ndim == 3:
        img_nchw = img_nchw[None]
    hi = jax.lax.Precision.HIGHEST
    x = img_nchw
    for wn, bn in (("conv1_w", "conv1_b"), ("conv2_w", "conv2_b"), ("conv3_w", "conv3_b")):
        x = jax.lax.conv_general_dilated(
            x, torch_params[wn], window_strides=(_S, _S), padding="VALID",
            dimension_numbers=("NCHW", "OIHW", "NCHW"), precision=hi)
        x = jnp.maximum(x + torch_params[bn][None, :, None, None], 0.0)
    x = x.reshape(x.shape[0], -1)                               # NCHW flatten
    x = jnp.maximum(jnp.dot(x, torch_params["fc1_w"].T, precision=hi)
                    + torch_params["fc1_b"], 0.0)
    logits = jnp.dot(x, torch_params["fc2_w"].T, precision=hi) + torch_params["fc2_b"]
    return jax.nn.softmax(logits, axis=1)


if __name__ == "__main__":
    # (H, W, C) = (30, 30, 4): conv stack 30 -> 13 -> 5 -> 1, conv_output_size = 32.
    input_shape = (30, 30, 4)
    n_actions = 6
    batch = 2

    key = jax.random.PRNGKey(0)
    kp, kx = jax.random.split(key)
    torch_params, kernel_params, geom = init_params(kp, input_shape, n_actions)
    img = jax.random.uniform(
        kx, (batch, input_shape[2], input_shape[0], input_shape[1]), jnp.float32)

    policy = cnn_policy_forward(kernel_params, img, geom=geom)
    policy = jax.block_until_ready(policy)

    assert policy.shape == (batch, n_actions)
    assert bool(jnp.all(jnp.isfinite(policy)))
    # Exact softmax normalization -> row sums are 1 up to f32 rounding.
    assert bool(jnp.allclose(jnp.sum(policy, axis=1), 1.0, atol=1e-4))

    # bf16 weights/activations into the MXU -> allow a slightly wider tolerance
    # against the f32 HIGHEST-precision reference (observed error ~1e-3).
    ref = reference_forward(torch_params, img)
    assert bool(jnp.allclose(policy, ref, atol=2e-2))
    print("KERNEL_OK")
</pallas_src>

<mosaic_0001>
module attributes {stable_mosaic.version = 11 : i64} {
  func.func @_fused_cnn_kernel(%arg0: i32, %arg1: memref<104x640xf32, #tpu.memory_space<vmem>>, %arg2: memref<640x256xbf16, #tpu.memory_space<vmem>>, %arg3: memref<1x256xf32, #tpu.memory_space<vmem>>, %arg4: memref<1280x256xbf16, #tpu.memory_space<vmem>>, %arg5: memref<1x256xf32, #tpu.memory_space<vmem>>, %arg6: memref<1280x128xbf16, #tpu.memory_space<vmem>>, %arg7: memref<1x128xf32, #tpu.memory_space<vmem>>, %arg8: memref<128x128xbf16, #tpu.memory_space<vmem>>, %arg9: memref<1x128xf32, #tpu.memory_space<vmem>>, %arg10: memref<128x128xbf16, #tpu.memory_space<vmem>>, %arg11: memref<1x128xf32, #tpu.memory_space<vmem>>, %arg12: memref<8x128xf32, #tpu.memory_space<vmem>>, %arg13: memref<40x1280xf32, #tpu.memory_space<vmem>>, %arg14: memref<8x1280xf32, #tpu.memory_space<vmem>>, %arg15: memref<8x128xf32, #tpu.memory_space<vmem>>) attributes {dimension_semantics = [#tpu.dimension_semantics<parallel>], iteration_bounds = array<i64: 1>, scalar_prefetch = 0 : i64, scratch_operands = 3 : i64, tpu.core_type = #tpu.core_type<tc>, window_params = [{transform_indices = @transform_0, window_bounds = array<i64: 104, 640>}, {pipeline_mode = #tpu.pipeline_mode<synchronous>, transform_indices = @transform_1, window_bounds = array<i64: 640, 256>}, {pipeline_mode = #tpu.pipeline_mode<synchronous>, transform_indices = @transform_2, window_bounds = array<i64: 1, 256>}, {pipeline_mode = #tpu.pipeline_mode<synchronous>, transform_indices = @transform_3, window_bounds = array<i64: 1280, 256>}, {pipeline_mode = #tpu.pipeline_mode<synchronous>, transform_indices = @transform_4, window_bounds = array<i64: 1, 256>}, {pipeline_mode = #tpu.pipeline_mode<synchronous>, transform_indices = @transform_5, window_bounds = array<i64: 1280, 128>}, {pipeline_mode = #tpu.pipeline_mode<synchronous>, transform_indices = @transform_6, window_bounds = array<i64: 1, 128>}, {pipeline_mode = #tpu.pipeline_mode<synchronous>, transform_indices = @transform_7, window_bounds = array<i64: 128, 128>}, {pipeline_mode = #tpu.pipeline_mode<synchronous>, transform_indices = @transform_8, window_bounds = array<i64: 1, 128>}, {pipeline_mode = #tpu.pipeline_mode<synchronous>, transform_indices = @transform_9, window_bounds = array<i64: 128, 128>}, {pipeline_mode = #tpu.pipeline_mode<synchronous>, transform_indices = @transform_10, window_bounds = array<i64: 1, 128>}, {transform_indices = @transform_11, window_bounds = array<i64: 8, 128>}]} {
    %c0 = arith.constant 0 : index
    %c0_0 = arith.constant 0 : index
    %0 = vector.load %arg1[%c0, %c0_0] : memref<104x640xf32, #tpu.memory_space<vmem>>, vector<104x640xf32>
    %1 = arith.truncf %0 : vector<104x640xf32> to vector<104x640xbf16>
    %c0_1 = arith.constant 0 : index
    %c0_2 = arith.constant 0 : index
    %2 = vector.load %arg2[%c0_1, %c0_2] : memref<640x256xbf16, #tpu.memory_space<vmem>>, vector<640x256xbf16>
    %cst = arith.constant dense<0.000000e+00> : vector<104x256xf32>
    %3 = tpu.matmul %1, %2, %cst {dimension_numbers = #tpu.dot_dimension_numbers<[1], [0], [0], [1], [0, 0, 1, 1], [], []>} : vector<104x640xbf16>, vector<640x256xbf16>, vector<104x256xf32> -> vector<104x256xf32>
    %c0_3 = arith.constant 0 : index
    %c0_4 = arith.constant 0 : index
    %4 = vector.load %arg3[%c0_3, %c0_4] : memref<1x256xf32, #tpu.memory_space<vmem>>, vector<1x256xf32>
    %5 = vector.broadcast %4 : vector<1x256xf32> to vector<104x256xf32>
    %6 = arith.addf %3, %5 : vector<104x256xf32>
    %cst_5 = arith.constant 0.000000e+00 : f32
    %7 = vector.broadcast %cst_5 : f32 to vector<104x256xf32>
    %8 = arith.maximumf %6, %7 : vector<104x256xf32>
    %9 = vector.extract_strided_slice %8 {offsets = [0, 0], sizes = [8, 256], strides = [1, 1]} : vector<104x256xf32> to vector<8x256xf32>
    %c0_6 = arith.constant 0 : index
    %c0_7 = arith.constant 0 : index
    %10 = vector.load %arg13[%c0_6, %c0_7] : memref<40x1280xf32, #tpu.memory_space<vmem>>, vector<8x256xf32>
    tpu.vector_store %arg13[%c0_6, %c0_7], %9 {strides = array<i32>} : memref<40x1280xf32, #tpu.memory_space<vmem>>, vector<8x256xf32>,
    %11 = vector.extract_strided_slice %8 {offsets = [8, 0], sizes = [8, 256], strides = [1, 1]} : vector<104x256xf32> to vector<8x256xf32>
    %c0_8 = arith.constant 0 : index
    %c256 = arith.constant 256 : index
    %12 = vector.load %arg13[%c0_8, %c256] : memref<40x1280xf32, #tpu.memory_space<vmem>>, vector<8x256xf32>
    tpu.vector_store %arg13[%c0_8, %c256], %11 {strides = array<i32>} : memref<40x1280xf32, #tpu.memory_space<vmem>>, vector<8x256xf32>,
    %13 = vector.extract_strided_slice %8 {offsets = [16, 0], sizes = [8, 256], strides = [1, 1]} : vector<104x256xf32> to vector<8x256xf32>
    %c0_9 = arith.constant 0 : index
    %c512 = arith.constant 512 : index
    %14 = vector.load %arg13[%c0_9, %c512] : memref<40x1280xf32, #tpu.memory_space<vmem>>, vector<8x256xf32>
    tpu.vector_store %arg13[%c0_9, %c512], %13 {strides = array<i32>} : memref<40x1280xf32, #tpu.memory_space<vmem>>, vector<8x256xf32>,
    %15 = vector.extract_strided_slice %8 {offsets = [24, 0], sizes = [8, 256], strides = [1, 1]} : vector<104x256xf32> to vector<8x256xf32>
    %c0_10 = arith.constant 0 : index
    %c768 = arith.constant 768 : index
    %16 = vector.load %arg13[%c0_10, %c768] : memref<40x1280xf32, #tpu.memory_space<vmem>>, vector<8x256xf32>
    tpu.vector_store %arg13[%c0_10, %c768], %15 {strides = array<i32>} : memref<40x1280xf32, #tpu.memory_space<vmem>>, vector<8x256xf32>,
    %17 = vector.extract_strided_slice %8 {offsets = [32, 0], sizes = [8, 256], strides = [1, 1]} : vector<104x256xf32> to vector<8x256xf32>
    %c0_11 = arith.constant 0 : index
    %c1024 = arith.constant 1024 : index
    %18 = vector.load %arg13[%c0_11, %c1024] : memref<40x1280xf32, #tpu.memory_space<vmem>>, vector<8x256xf32>
    tpu.vector_store %arg13[%c0_11, %c1024], %17 {strides = array<i32>} : memref<40x1280xf32, #tpu.memory_space<vmem>>, vector<8x256xf32>,
    %19 = vector.extract_strided_slice %8 {offsets = [16, 0], sizes = [8, 256], strides = [1, 1]} : vector<104x256xf32> to vector<8x256xf32>
    %c8 = arith.constant 8 : index
    %c0_12 = arith.constant 0 : index
    %20 = vector.load %arg13[%c8, %c0_12] : memref<40x1280xf32, #tpu.memory_space<vmem>>, vector<8x256xf32>
    tpu.vector_store %arg13[%c8, %c0_12], %19 {strides = array<i32>} : memref<40x1280xf32, #tpu.memory_space<vmem>>, vector<8x256xf32>,
    %21 = vector.extract_strided_slice %8 {offsets = [24, 0], sizes = [8, 256], strides = [1, 1]} : vector<104x256xf32> to vector<8x256xf32>
    %c8_13 = arith.constant 8 : index
    %c256_14 = arith.constant 256 : index
    %22 = vector.load %arg13[%c8_13, %c256_14] : memref<40x1280xf32, #tpu.memory_space<vmem>>, vector<8x256xf32>
    tpu.vector_store %arg13[%c8_13, %c256_14], %21 {strides = array<i32>} : memref<40x1280xf32, #tpu.memory_space<vmem>>, vector<8x256xf32>,
    %23 = vector.extract_strided_slice %8 {offsets = [32, 0], sizes = [8, 256], strides = [1, 1]} : vector<104x256xf32> to vector<8x256xf32>
    %c8_15 = arith.constant 8 : index
    %c512_16 = arith.constant 512 : index
    %24 = vector.load %arg13[%c8_15, %c512_16] : memref<40x1280xf32, #tpu.memory_space<vmem>>, vector<8x256xf32>
    tpu.vector_store %arg13[%c8_15, %c512_16], %23 {strides = array<i32>} : memref<40x1280xf32, #tpu.memory_space<vmem>>, vector<8x256xf32>,
    %25 = vector.extract_strided_slice %8 {offsets = [40, 0], sizes = [8, 256], strides = [1, 1]} : vector<104x256xf32> to vector<8x256xf32>
    %c8_17 = arith.constant 8 : index
    %c768_18 = arith.constant 768 : index
    %26 = vector.load %arg13[%c8_17, %c768_18] : memref<40x1280xf32, #tpu.memory_space<vmem>>, vector<8x256xf32>
    tpu.vector_store %arg13[%c8_17, %c768_18], %25 {strides = array<i32>} : memref<40x1280xf32, #tpu.memory_space<vmem>>, vector<8x256xf32>,
    %27 = vector.extract_strided_slice %8 {offsets = [48, 0], sizes = [8, 256], strides = [1, 1]} : vector<104x256xf32> to vector<8x256xf32>
    %c8_19 = arith.constant 8 : index
    %c1024_20 = arith.constant 1024 : index
    %28 = vector.load %arg13[%c8_19, %c1024_20] : memref<40x1280xf32, #tpu.memory_space<vmem>>, vector<8x256xf32>
    tpu.vector_store %arg13[%c8_19, %c1024_20], %27 {strides = array<i32>} : memref<40x1280xf32, #tpu.memory_space<vmem>>, vector<8x256xf32>,
    %29 = vector.extract_strided_slice %8 {offsets = [32, 0], sizes = [8, 256], strides = [1, 1]} : vector<104x256xf32> to vector<8x256xf32>
    %c16 = arith.constant 16 : index
    %c0_21 = arith.constant 0 : index
    %30 = vector.load %arg13[%c16, %c0_21] : memref<40x1280xf32, #tpu.memory_space<vmem>>, vector<8x256xf32>
    tpu.vector_store %arg13[%c16, %c0_21], %29 {strides = array<i32>} : memref<40x1280xf32, #tpu.memory_space<vmem>>, vector<8x256xf32>,
    %31 = vector.extract_strided_slice %8 {offsets = [40, 0], sizes = [8, 256], strides = [1, 1]} : vector<104x256xf32> to vector<8x256xf32>
    %c16_22 = arith.constant 16 : index
    %c256_23 = arith.constant 256 : index
    %32 = vector.load %arg13[%c16_22, %c256_23] : memref<40x1280xf32, #tpu.memory_space<vmem>>, vector<8x256xf32>
    tpu.vector_store %arg13[%c16_22, %c256_23], %31 {strides = array<i32>} : memref<40x1280xf32, #tpu.memory_space<vmem>>, vector<8x256xf32>,
    %33 = vector.extract_strided_slice %8 {offsets = [48, 0], sizes = [8, 256], strides = [1, 1]} : vector<104x256xf32> to vector<8x256xf32>
    %c16_24 = arith.constant 16 : index
    %c512_25 = arith.constant 512 : index
    %34 = vector.load %arg13[%c16_24, %c512_25] : memref<40x1280xf32, #tpu.memory_space<vmem>>, vector<8x256xf32>
    tpu.vector_store %arg13[%c16_24, %c512_25], %33 {strides = array<i32>} : memref<40x1280xf32, #tpu.memory_space<vmem>>, vector<8x256xf32>,
    %35 = vector.extract_strided_slice %8 {offsets = [56, 0], sizes = [8, 256], strides = [1, 1]} : vector<104x256xf32> to vector<8x256xf32>
    %c16_26 = arith.constant 16 : index
    %c768_27 = arith.constant 768 : index
    %36 = vector.load %arg13[%c16_26, %c768_27] : memref<40x1280xf32, #tpu.memory_space<vmem>>, vector<8x256xf32>
    tpu.vector_store %arg13[%c16_26, %c768_27], %35 {strides = array<i32>} : memref<40x1280xf32, #tpu.memory_space<vmem>>, vector<8x256xf32>,
    %37 = vector.extract_strided_slice %8 {offsets = [64, 0], sizes = [8, 256], strides = [1, 1]} : vector<104x256xf32> to vector<8x256xf32>
    %c16_28 = arith.constant 16 : index
    %c1024_29 = arith.constant 1024 : index
    %38 = vector.load %arg13[%c16_28, %c1024_29] : memref<40x1280xf32, #tpu.memory_space<vmem>>, vector<8x256xf32>
    tpu.vector_store %arg13[%c16_28, %c1024_29], %37 {strides = array<i32>} : memref<40x1280xf32, #tpu.memory_space<vmem>>, vector<8x256xf32>,
    %39 = vector.extract_strided_slice %8 {offsets = [48, 0], sizes = [8, 256], strides = [1, 1]} : vector<104x256xf32> to vector<8x256xf32>
    %c24 = arith.constant 24 : index
    %c0_30 = arith.constant 0 : index
    %40 = vector.load %arg13[%c24, %c0_30] : memref<40x1280xf32, #tpu.memory_space<vmem>>, vector<8x256xf32>
    tpu.vector_store %arg13[%c24, %c0_30], %39 {strides = array<i32>} : memref<40x1280xf32, #tpu.memory_space<vmem>>, vector<8x256xf32>,
    %41 = vector.extract_strided_slice %8 {offsets = [56, 0], sizes = [8, 256], strides = [1, 1]} : vector<104x256xf32> to vector<8x256xf32>
    %c24_31 = arith.constant 24 : index
    %c256_32 = arith.constant 256 : index
    %42 = vector.load %arg13[%c24_31, %c256_32] : memref<40x1280xf32, #tpu.memory_space<vmem>>, vector<8x256xf32>
    tpu.vector_store %arg13[%c24_31, %c256_32], %41 {strides = array<i32>} : memref<40x1280xf32, #tpu.memory_space<vmem>>, vector<8x256xf32>,
    %43 = vector.extract_strided_slice %8 {offsets = [64, 0], sizes = [8, 256], strides = [1, 1]} : vector<104x256xf32> to vector<8x256xf32>
    %c24_33 = arith.constant 24 : index
    %c512_34 = arith.constant 512 : index
    %44 = vector.load %arg13[%c24_33, %c512_34] : memref<40x1280xf32, #tpu.memory_space<vmem>>, vector<8x256xf32>
    tpu.vector_store %arg13[%c24_33, %c512_34], %43 {strides = array<i32>} : memref<40x1280xf32, #tpu.memory_space<vmem>>, vector<8x256xf32>,
    %45 = vector.extract_strided_slice %8 {offsets = [72, 0], sizes = [8, 256], strides = [1, 1]} : vector<104x256xf32> to vector<8x256xf32>
    %c24_35 = arith.constant 24 : index
    %c768_36 = arith.constant 768 : index
    %46 = vector.load %arg13[%c24_35, %c768_36] : memref<40x1280xf32, #tpu.memory_space<vmem>>, vector<8x256xf32>
    tpu.vector_store %arg13[%c24_35, %c768_36], %45 {strides = array<i32>} : memref<40x1280xf32, #tpu.memory_space<vmem>>, vector<8x256xf32>,
    %47 = vector.extract_strided_slice %8 {offsets = [80, 0], sizes = [8, 256], strides = [1, 1]} : vector<104x256xf32> to vector<8x256xf32>
    %c24_37 = arith.constant 24 : index
    %c1024_38 = arith.constant 1024 : index
    %48 = vector.load %arg13[%c24_37, %c1024_38] : memref<40x1280xf32, #tpu.memory_space<vmem>>, vector<8x256xf32>
    tpu.vector_store %arg13[%c24_37, %c1024_38], %47 {strides = array<i32>} : memref<40x1280xf32, #tpu.memory_space<vmem>>, vector<8x256xf32>,
    %49 = vector.extract_strided_slice %8 {offsets = [64, 0], sizes = [8, 256], strides = [1, 1]} : vector<104x256xf32> to vector<8x256xf32>
    %c32 = arith.constant 32 : index
    %c0_39 = arith.constant 0 : index
    %50 = vector.load %arg13[%c32, %c0_39] : memref<40x1280xf32, #tpu.memory_space<vmem>>, vector<8x256xf32>
    tpu.vector_store %arg13[%c32, %c0_39], %49 {strides = array<i32>} : memref<40x1280xf32, #tpu.memory_space<vmem>>, vector<8x256xf32>,
    %51 = vector.extract_strided_slice %8 {offsets = [72, 0], sizes = [8, 256], strides = [1, 1]} : vector<104x256xf32> to vector<8x256xf32>
    %c32_40 = arith.constant 32 : index
    %c256_41 = arith.constant 256 : index
    %52 = vector.load %arg13[%c32_40, %c256_41] : memref<40x1280xf32, #tpu.memory_space<vmem>>, vector<8x256xf32>
    tpu.vector_store %arg13[%c32_40, %c256_41], %51 {strides = array<i32>} : memref<40x1280xf32, #tpu.memory_space<vmem>>, vector<8x256xf32>,
    %53 = vector.extract_strided_slice %8 {offsets = [80, 0], sizes = [8, 256], strides = [1, 1]} : vector<104x256xf32> to vector<8x256xf32>
    %c32_42 = arith.constant 32 : index
    %c512_43 = arith.constant 512 : index
    %54 = vector.load %arg13[%c32_42, %c512_43] : memref<40x1280xf32, #tpu.memory_space<vmem>>, vector<8x256xf32>
    tpu.vector_store %arg13[%c32_42, %c512_43], %53 {strides = array<i32>} : memref<40x1280xf32, #tpu.memory_space<vmem>>, vector<8x256xf32>,
    %55 = vector.extract_strided_slice %8 {offsets = [88, 0], sizes = [8, 256], strides = [1, 1]} : vector<104x256xf32> to vector<8x256xf32>
    %c32_44 = arith.constant 32 : index
    %c768_45 = arith.constant 768 : index
    %56 = vector.load %arg13[%c32_44, %c768_45] : memref<40x1280xf32, #tpu.memory_space<vmem>>, vector<8x256xf32>
    tpu.vector_store %arg13[%c32_44, %c768_45], %55 {strides = array<i32>} : memref<40x1280xf32, #tpu.memory_space<vmem>>, vector<8x256xf32>,
    %57 = vector.extract_strided_slice %8 {offsets = [96, 0], sizes = [8, 256], strides = [1, 1]} : vector<104x256xf32> to vector<8x256xf32>
    %c32_46 = arith.constant 32 : index
    %c1024_47 = arith.constant 1024 : index
    %58 = vector.load %arg13[%c32_46, %c1024_47] : memref<40x1280xf32, #tpu.memory_space<vmem>>, vector<8x256xf32>
    tpu.vector_store %arg13[%c32_46, %c1024_47], %57 {strides = array<i32>} : memref<40x1280xf32, #tpu.memory_space<vmem>>, vector<8x256xf32>,
    %c0_48 = arith.constant 0 : index
    %c0_49 = arith.constant 0 : index
    %59 = vector.load %arg13[%c0_48, %c0_49] : memref<40x1280xf32, #tpu.memory_space<vmem>>, vector<40x1280xf32>
    %60 = arith.truncf %59 : vector<40x1280xf32> to vector<40x1280xbf16>
    %c0_50 = arith.constant 0 : index
    %c0_51 = arith.constant 0 : index
    %61 = vector.load %arg4[%c0_50, %c0_51] : memref<1280x256xbf16, #tpu.memory_space<vmem>>, vector<1280x256xbf16>
    %cst_52 = arith.constant dense<0.000000e+00> : vector<40x256xf32>
    %62 = tpu.matmul %60, %61, %cst_52 {dimension_numbers = #tpu.dot_dimension_numbers<[1], [0], [0], [1], [0, 0, 1, 1], [], []>} : vector<40x1280xbf16>, vector<1280x256xbf16>, vector<40x256xf32> -> vector<40x256xf32>
    %c0_53 = arith.constant 0 : index
    %c0_54 = arith.constant 0 : index
    %63 = vector.load %arg5[%c0_53, %c0_54] : memref<1x256xf32, #tpu.memory_space<vmem>>, vector<1x256xf32>
    %64 = vector.broadcast %63 : vector<1x256xf32> to vector<40x256xf32>
    %65 = arith.addf %62, %64 : vector<40x256xf32>
    %cst_55 = arith.constant 0.000000e+00 : f32
    %66 = vector.broadcast %cst_55 : f32 to vector<40x256xf32>
    %67 = arith.maximumf %65, %66 : vector<40x256xf32>
    %68 = vector.extract_strided_slice %67 {offsets = [0, 0], sizes = [8, 256], strides = [1, 1]} : vector<40x256xf32> to vector<8x256xf32>
    %c0_56 = arith.constant 0 : index
    %c0_57 = arith.constant 0 : index
    %69 = vector.load %arg14[%c0_56, %c0_57] : memref<8x1280xf32, #tpu.memory_space<vmem>>, vector<8x256xf32>
    tpu.vector_store %arg14[%c0_56, %c0_57], %68 {strides = array<i32>} : memref<8x1280xf32, #tpu.memory_space<vmem>>, vector<8x256xf32>,
    %70 = vector.extract_strided_slice %67 {offsets = [8, 0], sizes = [8, 256], strides = [1, 1]} : vector<40x256xf32> to vector<8x256xf32>
    %c0_58 = arith.constant 0 : index
    %c256_59 = arith.constant 256 : index
    %71 = vector.load %arg14[%c0_58, %c256_59] : memref<8x1280xf32, #tpu.memory_space<vmem>>, vector<8x256xf32>
    tpu.vector_store %arg14[%c0_58, %c256_59], %70 {strides = array<i32>} : memref<8x1280xf32, #tpu.memory_space<vmem>>, vector<8x256xf32>,
    %72 = vector.extract_strided_slice %67 {offsets = [16, 0], sizes = [8, 256], strides = [1, 1]} : vector<40x256xf32> to vector<8x256xf32>
    %c0_60 = arith.constant 0 : index
    %c512_61 = arith.constant 512 : index
    %73 = vector.load %arg14[%c0_60, %c512_61] : memref<8x1280xf32, #tpu.memory_space<vmem>>, vector<8x256xf32>
    tpu.vector_store %arg14[%c0_60, %c512_61], %72 {strides = array<i32>} : memref<8x1280xf32, #tpu.memory_space<vmem>>, vector<8x256xf32>,
    %74 = vector.extract_strided_slice %67 {offsets = [24, 0], sizes = [8, 256], strides = [1, 1]} : vector<40x256xf32> to vector<8x256xf32>
    %c0_62 = arith.constant 0 : index
    %c768_63 = arith.constant 768 : index
    %75 = vector.load %arg14[%c0_62, %c768_63] : memref<8x1280xf32, #tpu.memory_space<vmem>>, vector<8x256xf32>
    tpu.vector_store %arg14[%c0_62, %c768_63], %74 {strides = array<i32>} : memref<8x1280xf32, #tpu.memory_space<vmem>>, vector<8x256xf32>,
    %76 = vector.extract_strided_slice %67 {offsets = [32, 0], sizes = [8, 256], strides = [1, 1]} : vector<40x256xf32> to vector<8x256xf32>
    %c0_64 = arith.constant 0 : index
    %c1024_65 = arith.constant 1024 : index
    %77 = vector.load %arg14[%c0_64, %c1024_65] : memref<8x1280xf32, #tpu.memory_space<vmem>>, vector<8x256xf32>
    tpu.vector_store %arg14[%c0_64, %c1024_65], %76 {strides = array<i32>} : memref<8x1280xf32, #tpu.memory_space<vmem>>, vector<8x256xf32>,
    %c0_66 = arith.constant 0 : index
    %c0_67 = arith.constant 0 : index
    %78 = vector.load %arg14[%c0_66, %c0_67] : memref<8x1280xf32, #tpu.memory_space<vmem>>, vector<8x1280xf32>
    %79 = arith.truncf %78 : vector<8x1280xf32> to vector<8x1280xbf16>
    %c0_68 = arith.constant 0 : index
    %c0_69 = arith.constant 0 : index
    %80 = vector.load %arg6[%c0_68, %c0_69] : memref<1280x128xbf16, #tpu.memory_space<vmem>>, vector<1280x128xbf16>
    %cst_70 = arith.constant dense<0.000000e+00> : vector<8x128xf32>
    %81 = tpu.matmul %79, %80, %cst_70 {dimension_numbers = #tpu.dot_dimension_numbers<[1], [0], [0], [1], [0, 0, 1, 1], [], []>} : vector<8x1280xbf16>, vector<1280x128xbf16>, vector<8x128xf32> -> vector<8x128xf32>
    %c0_71 = arith.constant 0 : index
    %c0_72 = arith.constant 0 : index
    %82 = vector.load %arg7[%c0_71, %c0_72] : memref<1x128xf32, #tpu.memory_space<vmem>>, vector<1x128xf32>
    %83 = vector.broadcast %82 : vector<1x128xf32> to vector<8x128xf32>
    %84 = arith.addf %81, %83 : vector<8x128xf32>
    %cst_73 = arith.constant 0.000000e+00 : f32
    %85 = vector.broadcast %cst_73 : f32 to vector<8x128xf32>
    %86 = arith.maximumf %84, %85 : vector<8x128xf32>
    %c0_74 = arith.constant 0 : index
    %c0_75 = arith.constant 0 : index
    %87 = vector.load %arg15[%c0_74, %c0_75] : memref<8x128xf32, #tpu.memory_space<vmem>>, vector<8x128xf32>
    tpu.vector_store %arg15[%c0_74, %c0_75], %86 {strides = array<i32>} : memref<8x128xf32, #tpu.memory_space<vmem>>, vector<8x128xf32>,
    %c0_76 = arith.constant 0 : index
    %c0_77 = arith.constant 0 : index
    %88 = vector.load %arg15[%c0_76, %c0_77] : memref<8x128xf32, #tpu.memory_space<vmem>>, vector<8x128xf32>
    %89 = arith.truncf %88 : vector<8x128xf32> to vector<8x128xbf16>
    %c0_78 = arith.constant 0 : index
    %c0_79 = arith.constant 0 : index
    %90 = vector.load %arg8[%c0_78, %c0_79] : memref<128x128xbf16, #tpu.memory_space<vmem>>, vector<128x128xbf16>
    %cst_80 = arith.constant dense<0.000000e+00> : vector<8x128xf32>
    %91 = tpu.matmul %89, %90, %cst_80 {dimension_numbers = #tpu.dot_dimension_numbers<[1], [0], [0], [1], [0, 0, 1, 1], [], []>} : vector<8x128xbf16>, vector<128x128xbf16>, vector<8x128xf32> -> vector<8x128xf32>
    %c0_81 = arith.constant 0 : index
    %c0_82 = arith.constant 0 : index
    %92 = vector.load %arg9[%c0_81, %c0_82] : memref<1x128xf32, #tpu.memory_space<vmem>>, vector<1x128xf32>
    %93 = vector.broadcast %92 : vector<1x128xf32> to vector<8x128xf32>
    %94 = arith.addf %91, %93 : vector<8x128xf32>
    %cst_83 = arith.constant 0.000000e+00 : f32
    %95 = vector.broadcast %cst_83 : f32 to vector<8x128xf32>
    %96 = arith.maximumf %94, %95 : vector<8x128xf32>
    %97 = arith.truncf %96 : vector<8x128xf32> to vector<8x128xbf16>
    %c0_84 = arith.constant 0 : index
    %c0_85 = arith.constant 0 : index
    %98 = vector.load %arg10[%c0_84, %c0_85] : memref<128x128xbf16, #tpu.memory_space<vmem>>, vector<128x128xbf16>
    %cst_86 = arith.constant dense<0.000000e+00> : vector<8x128xf32>
    %99 = tpu.matmul %97, %98, %cst_86 {dimension_numbers = #tpu.dot_dimension_numbers<[1], [0], [0], [1], [0, 0, 1, 1], [], []>} : vector<8x128xbf16>, vector<128x128xbf16>, vector<8x128xf32> -> vector<8x128xf32>
    %c0_87 = arith.constant 0 : index
    %c0_88 = arith.constant 0 : index
    %100 = vector.load %arg11[%c0_87, %c0_88] : memref<1x128xf32, #tpu.memory_space<vmem>>, vector<1x128xf32>
    %101 = vector.broadcast %100 : vector<1x128xf32> to vector<8x128xf32>
    %102 = arith.addf %99, %101 : vector<8x128xf32>
    %cst_89 = arith.constant dense<0xFF800000> : vector<8xf32>
    %103 = vector.multi_reduction <maximumf>, %102, %cst_89 [1] : vector<8x128xf32> to vector<8xf32>
    %104 = vector.shape_cast %103 : vector<8xf32> to vector<8x1xf32>
    %105 = vector.broadcast %104 : vector<8x1xf32> to vector<8x128xf32>
    %106 = arith.subf %102, %105 : vector<8x128xf32>
    %107 = math.exp %106 : vector<8x128xf32>
    %cst_90 = arith.constant dense<0.000000e+00> : vector<8xf32>
    %108 = vector.multi_reduction <add>, %107, %cst_90 [1] : vector<8x128xf32> to vector<8xf32>
    %109 = vector.shape_cast %108 : vector<8xf32> to vector<8x1xf32>
    %110 = vector.broadcast %109 : vector<8x1xf32> to vector<8x128xf32>
    %111 = arith.divf %107, %110 : vector<8x128xf32>
    %c0_91 = arith.constant 0 : index
    %c0_92 = arith.constant 0 : index
    %112 = vector.load %arg12[%c0_91, %c0_92] : memref<8x128xf32, #tpu.memory_space<vmem>>, vector<8x128xf32>
    tpu.vector_store %arg12[%c0_91, %c0_92], %111 {strides = array<i32>} : memref<8x128xf32, #tpu.memory_space<vmem>>, vector<8x128xf32>,
    return
  }
  func.func @transform_0(%arg0: i32) -> (i32, i32) {
    %c0_i32 = arith.constant 0 : i32
    %c0_i32_0 = arith.constant 0 : i32
    return %arg0, %c0_i32 : i32, i32
  }
  func.func @transform_1(%arg0: i32) -> (i32, i32) {
    %c0_i32 = arith.constant 0 : i32
    %c0_i32_0 = arith.constant 0 : i32
    %c0_i32_1 = arith.constant 0 : i32
    return %c0_i32, %c0_i32_0 : i32, i32
  }
  func.func @transform_2(%arg0: i32) -> (i32, i32) {
    %c0_i32 = arith.constant 0 : i32
    %c0_i32_0 = arith.constant 0 : i32
    %c0_i32_1 = arith.constant 0 : i32
    return %c0_i32, %c0_i32_0 : i32, i32
  }
  func.func @transform_3(%arg0: i32) -> (i32, i32) {
    %c0_i32 = arith.constant 0 : i32
    %c0_i32_0 = arith.constant 0 : i32
    %c0_i32_1 = arith.constant 0 : i32
    return %c0_i32, %c0_i32_0 : i32, i32
  }
  func.func @transform_4(%arg0: i32) -> (i32, i32) {
    %c0_i32 = arith.constant 0 : i32
    %c0_i32_0 = arith.constant 0 : i32
    %c0_i32_1 = arith.constant 0 : i32
    return %c0_i32, %c0_i32_0 : i32, i32
  }
  func.func @transform_5(%arg0: i32) -> (i32, i32) {
    %c0_i32 = arith.constant 0 : i32
    %c0_i32_0 = arith.constant 0 : i32
    %c0_i32_1 = arith.constant 0 : i32
    return %c0_i32, %c0_i32_0 : i32, i32
  }
  func.func @transform_6(%arg0: i32) -> (i32, i32) {
    %c0_i32 = arith.constant 0 : i32
    %c0_i32_0 = arith.constant 0 : i32
    %c0_i32_1 = arith.constant 0 : i32
    return %c0_i32, %c0_i32_0 : i32, i32
  }
  func.func @transform_7(%arg0: i32) -> (i32, i32) {
    %c0_i32 = arith.constant 0 : i32
    %c0_i32_0 = arith.constant 0 : i32
    %c0_i32_1 = arith.constant 0 : i32
    return %c0_i32, %c0_i32_0 : i32, i32
  }
  func.func @transform_8(%arg0: i32) -> (i32, i32) {
    %c0_i32 = arith.constant 0 : i32
    %c0_i32_0 = arith.constant 0 : i32
    %c0_i32_1 = arith.constant 0 : i32
    return %c0_i32, %c0_i32_0 : i32, i32
  }
  func.func @transform_9(%arg0: i32) -> (i32, i32) {
    %c0_i32 = arith.constant 0 : i32
    %c0_i32_0 = arith.constant 0 : i32
    %c0_i32_1 = arith.constant 0 : i32
    return %c0_i32, %c0_i32_0 : i32, i32
  }
  func.func @transform_10(%arg0: i32) -> (i32, i32) {
    %c0_i32 = arith.constant 0 : i32
    %c0_i32_0 = arith.constant 0 : i32
    %c0_i32_1 = arith.constant 0 : i32
    return %c0_i32, %c0_i32_0 : i32, i32
  }
  func.func @transform_11(%arg0: i32) -> (i32, i32) {
    %c0_i32 = arith.constant 0 : i32
    %c0_i32_0 = arith.constant 0 : i32
    return %arg0, %c0_i32 : i32, i32
  }
}

</mosaic_0001>

<llo_original>
// kernel: cnn_policy_forward.1
$region0: #{cnn_policy_forward.1}
  #allocation0 [shape = 'u32[]', space=smem, size = 0x4, offset = 0x4, fixed_abs, tag = 'smem constant byte address 0x4 - core index']
  #allocation1 [shape = 'u32[72,128]{1,0:T(1,128)}', space=vmem, size = 0x9000, scoped, tag = 'internal scratch']
  #allocation2 [shape = 'f32[40,1280]{1,0:T(8,128)}', space=vmem, size = 0x32000, scoped, tag = 'scratch operand']
  #allocation3 [shape = 'f32[8,1280]{1,0:T(8,128)}', space=vmem, size = 0xa000, scoped, tag = 'scratch operand']
  #allocation4 [shape = 'f32[8,128]{1,0:T(8,128)}', space=vmem, size = 0x1000, scoped, tag = 'scratch operand']
  %s0 = inlined_call_operand.vmem [shape: f32[104,640], index: 0, kind: input, shape index: {}]
  %s1 = inlined_call_operand.hbm [shape: bf16[640,256], index: 1, kind: input, shape index: {}]
  %s2 = inlined_call_operand.vmem [shape: f32[1,256], index: 2, kind: input, shape index: {}]
  %s3 = inlined_call_operand.vmem [shape: bf16[1280,256], index: 3, kind: input, shape index: {}]
  %s4 = inlined_call_operand.vmem [shape: f32[1,256], index: 4, kind: input, shape index: {}]
  %s5 = inlined_call_operand.hbm [shape: bf16[1280,128], index: 5, kind: input, shape index: {}]
  %s6 = inlined_call_operand.vmem [shape: f32[1,128], index: 6, kind: input, shape index: {}]
  %s7 = inlined_call_operand.vmem [shape: bf16[128,128], index: 7, kind: input, shape index: {}]
  %s8 = inlined_call_operand.vmem [shape: f32[1,128], index: 8, kind: input, shape index: {}]
  %s9 = inlined_call_operand.vmem [shape: bf16[128,128], index: 9, kind: input, shape index: {}]
  %s10 = inlined_call_operand.vmem [shape: f32[1,128], index: 10, kind: input, shape index: {}]
  %s11 = inlined_call_operand.vmem [shape: f32[8,128], index: 11, kind: output, shape index: {}]
  %s12 = sld [smem:[#allocation0]]
  $region62: #{cnn_policy_forward.1} parent=0
    _
  %s14 = ssub.s32 1, %s12
  %s15 = scalar_select 0, %s14, %s12
  $region1: #{cnn_policy_forward.1} parent=0
    #allocation5 [shape = 'u8[327680]{0}', space=vmem, size = 0x50000, scoped, tag = 'input window, operand 1, single buffered']
    #allocation6 [shape = 's32[1]{0}', space=sflag, size = 0x4, scoped, tag = 'scoped memory for cnn_policy_forward.1']
    #allocation7 [shape = 'u8[327680]{0}', space=vmem, size = 0x50000, scoped, tag = 'input window, operand 5, single buffered']
    #allocation8 [shape = 's32[1]{0}', space=sflag, size = 0x4, scoped, tag = 'scoped memory for cnn_policy_forward.1']
    %16 = vsyncpa [#allocation6], 0
    %17 = vsyncpa [#allocation8], 0
    // Predicated region
    $region2: #{cnn_policy_forward.1} parent=1 // pred_check
      _
    $region3: #{cnn_policy_forward.1} parent=1 // pred_check_branch
      %19 = sbr.rel (0) target = $region5
    $region4: #{cnn_policy_forward.1} parent=1 // pred_region
      _
    $region5: #{cnn_policy_forward.1} parent=1 // pred_fallthru
      _
    // Predicated region
    $region6: #{cnn_policy_forward.1} parent=1 // pred_check
      _
    $region7: #{cnn_policy_forward.1} parent=1 // pred_check_branch
      %21 = sbr.rel (0) target = $region9
    $region8: #{cnn_policy_forward.1} parent=1 // pred_region
      %23 = vsyncadd [#allocation6], 0
      %s24 = sshll.u32 %s1, 4
      %s25 = int_to_ptr.hbm [resolvable:$true] %s24
      %s26 = sshll.u32 [#allocation5], 4
      %s27 = int_to_ptr.vmem [resolvable:$true] %s26
      %32 = dma.hbm_to_vmem [thread:$0]  %s25, 10240, %s27, [#allocation6], 128, 128, 8
    $region9: #{cnn_policy_forward.1} parent=1 // pred_fallthru
      _
    // Predicated region
    $region10: #{cnn_policy_forward.1} parent=1 // pred_check
      _
    $region11: #{cnn_policy_forward.1} parent=1 // pred_check_branch
      %34 = sbr.rel (0) target = $region13
    $region12: #{cnn_policy_forward.1} parent=1 // pred_region
      _
    $region13: #{cnn_policy_forward.1} parent=1 // pred_fallthru
      _
    // Predicated region
    $region14: #{cnn_policy_forward.1} parent=1 // pred_check
      _
    $region15: #{cnn_policy_forward.1} parent=1 // pred_check_branch
      %36 = sbr.rel (0) target = $region17
    $region16: #{cnn_policy_forward.1} parent=1 // pred_region
      _
    $region17: #{cnn_policy_forward.1} parent=1 // pred_fallthru
      _
    // Predicated region
    $region18: #{cnn_policy_forward.1} parent=1 // pred_check
      _
    $region19: #{cnn_policy_forward.1} parent=1 // pred_check_branch
      %38 = sbr.rel (0) target = $region21
    $region20: #{cnn_policy_forward.1} parent=1 // pred_region
      _
    $region21: #{cnn_policy_forward.1} parent=1 // pred_fallthru
      _
    // Predicated region
    $region22: #{cnn_policy_forward.1} parent=1 // pred_check
      _
    $region23: #{cnn_policy_forward.1} parent=1 // pred_check_branch
      %40 = sbr.rel (0) target = $region25
    $region24: #{cnn_policy_forward.1} parent=1 // pred_region
      %42 = vsyncadd [#allocation8], 0
      %s43 = sshll.u32 %s5, 4
      %s44 = int_to_ptr.hbm [resolvable:$true] %s43
      %s45 = sshll.u32 [#allocation7], 4
      %s46 = int_to_ptr.vmem [resolvable:$true] %s45
      %51 = dma.hbm_to_vmem [thread:$0]  %s44, 10240, %s46, [#allocation8], 64, 64, 4
    $region25: #{cnn_policy_forward.1} parent=1 // pred_fallthru
      _
    // Predicated region
    $region26: #{cnn_policy_forward.1} parent=1 // pred_check
      _
    $region27: #{cnn_policy_forward.1} parent=1 // pred_check_branch
      %53 = sbr.rel (0) target = $region29
    $region28: #{cnn_policy_forward.1} parent=1 // pred_region
      _
    $region29: #{cnn_policy_forward.1} parent=1 // pred_fallthru
      _
    // Predicated region
    $region30: #{cnn_policy_forward.1} parent=1 // pred_check
      _
    $region31: #{cnn_policy_forward.1} parent=1 // pred_check_branch
      %55 = sbr.rel (0) target = $region33
    $region32: #{cnn_policy_forward.1} parent=1 // pred_region
      _
    $region33: #{cnn_policy_forward.1} parent=1 // pred_fallthru
      _
    // Predicated region
    $region34: #{cnn_policy_forward.1} parent=1 // pred_check
      _
    $region35: #{cnn_policy_forward.1} parent=1 // pred_check_branch
      %57 = sbr.rel (0) target = $region37
    $region36: #{cnn_policy_forward.1} parent=1 // pred_region
      _
    $region37: #{cnn_policy_forward.1} parent=1 // pred_fallthru
      _
    // Predicated region
    $region38: #{cnn_policy_forward.1} parent=1 // pred_check
      _
    $region39: #{cnn_policy_forward.1} parent=1 // pred_check_branch
      %59 = sbr.rel (0) target = $region41
    $region40: #{cnn_policy_forward.1} parent=1 // pred_region
      _
    $region41: #{cnn_policy_forward.1} parent=1 // pred_fallthru
      _
    // Predicated region
    $region42: #{cnn_policy_forward.1} parent=1 // pred_check
      _
    $region43: #{cnn_policy_forward.1} parent=1 // pred_check_branch
      %61 = sbr.rel (0) target = $region45
    $region44: #{cnn_policy_forward.1} parent=1 // pred_region
      _
    $region45: #{cnn_policy_forward.1} parent=1 // pred_fallthru
      _
    // Predicated region
    $region46: #{cnn_policy_forward.1} parent=1 // pred_check
      _
    $region47: #{cnn_policy_forward.1} parent=1 // pred_check_branch
      %63 = sbr.rel (0) target = $region49
    $region48: #{cnn_policy_forward.1} parent=1 // pred_region
      %65 = dma.done [#allocation6], 10240
    $region49: #{cnn_policy_forward.1} parent=1 // pred_fallthru
      _
    // Predicated region
    $region50: #{cnn_policy_forward.1} parent=1 // pred_check
      _
    $region51: #{cnn_policy_forward.1} parent=1 // pred_check_branch
      %67 = sbr.rel (0) target = $region53
    $region52: #{cnn_policy_forward.1} parent=1 // pred_region
      %69 = dma.done [#allocation8], 10240
    $region53: #{cnn_policy_forward.1} parent=1 // pred_fallthru
      _
    %v70 = vld [vmem:[%s0] sm:$0xff]
    %v71 = vld [vmem:[%s0 + $0x8] sm:$0xff]
    %v72 = vld [vmem:[%s0 + $0x10] sm:$0xff]
    %v73 = vld [vmem:[%s0 + $0x18] sm:$0xff]
    %v74 = vld [vmem:[%s0 + $0x20] sm:$0xff]
    %v75 = vld [vmem:[%s0 + $0x28] sm:$0xff]
    %v76 = vld [vmem:[%s0 + $0x30] sm:$0xff]
    %v77 = vld [vmem:[%s0 + $0x38] sm:$0xff]
    %v78 = vld [vmem:[%s0 + $0x40] sm:$0xff]
    %v79 = vld [vmem:[%s0 + $0x48] sm:$0xff]
    %v80 = vld [vmem:[%s0 + $0x50] sm:$0xff]
    %v81 = vld [vmem:[%s0 + $0x58] sm:$0xff]
    %v82 = vld [vmem:[%s0 + $0x60] sm:$0xff]
    %v83 = vld [vmem:[%s0 + $0x68] sm:$0xff]
    %v84 = vld [vmem:[%s0 + $0x70] sm:$0xff]
    %v85 = vld [vmem:[%s0 + $0x78] sm:$0xff]
    %v86 = vld [vmem:[%s0 + $0x80] sm:$0xff]
    %v87 = vld [vmem:[%s0 + $0x88] sm:$0xff]
    %v88 = vld [vmem:[%s0 + $0x90] sm:$0xff]
    %v89 = vld [vmem:[%s0 + $0x98] sm:$0xff]
    %v90 = vld [vmem:[%s0 + $0xa0] sm:$0xff]
    %v91 = vld [vmem:[%s0 + $0xa8] sm:$0xff]
    %v92 = vld [vmem:[%s0 + $0xb0] sm:$0xff]
    %v93 = vld [vmem:[%s0 + $0xb8] sm:$0xff]
    %v94 = vld [vmem:[%s0 + $0xc0] sm:$0xff]
    %v95 = vld [vmem:[%s0 + $0xc8] sm:$0xff]
    %v96 = vld [vmem:[%s0 + $0xd0] sm:$0xff]
    %v97 = vld [vmem:[%s0 + $0xd8] sm:$0xff]
    %v98 = vld [vmem:[%s0 + $0xe0] sm:$0xff]
    %v99 = vld [vmem:[%s0 + $0xe8] sm:$0xff]
    %v100 = vld [vmem:[%s0 + $0xf0] sm:$0xff]
    %v101 = vld [vmem:[%s0 + $0xf8] sm:$0xff]
    %v102 = vld [vmem:[%s0 + $0x100] sm:$0xff]
    %v103 = vld [vmem:[%s0 + $0x108] sm:$0xff]
    %v104 = vld [vmem:[%s0 + $0x110] sm:$0xff]
    %v105 = vld [vmem:[%s0 + $0x118] sm:$0xff]
    %v106 = vld [vmem:[%s0 + $0x120] sm:$0xff]
    %v107 = vld [vmem:[%s0 + $0x128] sm:$0xff]
    %v108 = vld [vmem:[%s0 + $0x130] sm:$0xff]
    %v109 = vld [vmem:[%s0 + $0x138] sm:$0xff]
    %v110 = vld [vmem:[%s0 + $0x140] sm:$0xff]
    %v111 = vld [vmem:[%s0 + $0x148] sm:$0xff]
    %v112 = vld [vmem:[%s0 + $0x150] sm:$0xff]
    %v113 = vld [vmem:[%s0 + $0x158] sm:$0xff]
    %v114 = vld [vmem:[%s0 + $0x160] sm:$0xff]
    %v115 = vld [vmem:[%s0 + $0x168] sm:$0xff]
    %v116 = vld [vmem:[%s0 + $0x170] sm:$0xff]
    %v117 = vld [vmem:[%s0 + $0x178] sm:$0xff]
    %v118 = vld [vmem:[%s0 + $0x180] sm:$0xff]
    %v119 = vld [vmem:[%s0 + $0x188] sm:$0xff]
    %v120 = vld [vmem:[%s0 + $0x190] sm:$0xff]
    %v121 = vld [vmem:[%s0 + $0x198] sm:$0xff]
    %v122 = vld [vmem:[%s0 + $0x1a0] sm:$0xff]
    %v123 = vld [vmem:[%s0 + $0x1a8] sm:$0xff]
    %v124 = vld [vmem:[%s0 + $0x1b0] sm:$0xff]
    %v125 = vld [vmem:[%s0 + $0x1b8] sm:$0xff]
    %v126 = vld [vmem:[%s0 + $0x1c0] sm:$0xff]
    %v127 = vld [vmem:[%s0 + $0x1c8] sm:$0xff]
    %v128 = vld [vmem:[%s0 + $0x1d0] sm:$0xff]
    %v129 = vld [vmem:[%s0 + $0x1d8] sm:$0xff]
    %v130 = vld [vmem:[%s0 + $0x1e0] sm:$0xff]
    %v131 = vld [vmem:[%s0 + $0x1e8] sm:$0xff]
    %v132 = vld [vmem:[%s0 + $0x1f0] sm:$0xff]
    %v133 = vld [vmem:[%s0 + $0x1f8] sm:$0xff]
    %v134 = vld [vmem:[%s0 + $0x200] sm:$0xff]
    %v135 = vpack.c.bf16 %v75, %v70
    %v136 = vpack.c.bf16 %v76, %v71
    %v137 = vpack.c.bf16 %v77, %v72
    %v138 = vpack.c.bf16 %v78, %v73
    %v139 = vpack.c.bf16 %v79, %v74
    %v140 = vpack.c.bf16 %v85, %v80
    %v141 = vpack.c.bf16 %v86, %v81
    %v142 = vpack.c.bf16 %v87, %v82
    %v143 = vpack.c.bf16 %v88, %v83
    %v144 = vpack.c.bf16 %v89, %v84
    %v145 = vpack.c.bf16 %v95, %v90
    %v146 = vpack.c.bf16 %v96, %v91
    %v147 = vpack.c.bf16 %v97, %v92
    %v148 = vpack.c.bf16 %v98, %v93
    %v149 = vpack.c.bf16 %v99, %v94
    %v150 = vpack.c.bf16 %v105, %v100
    %v151 = vpack.c.bf16 %v106, %v101
    %v152 = vpack.c.bf16 %v107, %v102
    %v153 = vpack.c.bf16 %v108, %v103
    %v154 = vpack.c.bf16 %v109, %v104
    %v155 = vpack.c.bf16 %v115, %v110
    %v156 = vpack.c.bf16 %v116, %v111
    %v157 = vpack.c.bf16 %v117, %v112
    %v158 = vpack.c.bf16 %v118, %v113
    %v159 = vpack.c.bf16 %v119, %v114
    %v160 = vpack.c.bf16 %v125, %v120
    %v161 = vpack.c.bf16 %v126, %v121
    %v162 = vpack.c.bf16 %v127, %v122
    %v163 = vpack.c.bf16 %v128, %v123
    %v164 = vpack.c.bf16 %v129, %v124
    %v165 = vpack.c.bf16 %v130, %v130
    %v166 = vpack.c.bf16 %v131, %v131
    %v167 = vpack.c.bf16 %v132, %v132
    %v168 = vpack.c.bf16 %v133, %v133
    %v169 = vpack.c.bf16 %v134, %v134
    %v170 = vld [vmem:[#allocation5] sm:$0xff]
    %v171 = vld [vmem:[#allocation5 + $0x8] sm:$0xff]
    %v172 = vld [vmem:[#allocation5 + $0x10] sm:$0xff]
    %v173 = vld [vmem:[#allocation5 + $0x18] sm:$0xff]
    %v174 = vld [vmem:[#allocation5 + $0x20] sm:$0xff]
    %v175 = vld [vmem:[#allocation5 + $0x28] sm:$0xff]
    %v176 = vld [vmem:[#allocation5 + $0x30] sm:$0xff]
    %v177 = vld [vmem:[#allocation5 + $0x38] sm:$0xff]
    %v178 = vld [vmem:[#allocation5 + $0x40] sm:$0xff]
    %v179 = vld [vmem:[#allocation5 + $0x48] sm:$0xff]
    %v180 = vld [vmem:[#allocation5 + $0x50] sm:$0xff]
    %v181 = vld [vmem:[#allocation5 + $0x58] sm:$0xff]
    %v182 = vld [vmem:[#allocation5 + $0x60] sm:$0xff]
    %v183 = vld [vmem:[#allocation5 + $0x68] sm:$0xff]
    %v184 = vld [vmem:[#allocation5 + $0x70] sm:$0xff]
    %v185 = vld [vmem:[#allocation5 + $0x78] sm:$0xff]
    %v186 = vld [vmem:[#allocation5 + $0x80] sm:$0xff]
    %v187 = vld [vmem:[#allocation5 + $0x88] sm:$0xff]
    %v188 = vld [vmem:[#allocation5 + $0x90] sm:$0xff]
    %v189 = vld [vmem:[#allocation5 + $0x98] sm:$0xff]
    %v190 = vld [vmem:[#allocation5 + $0xa0] sm:$0xff]
    %v191 = vld [vmem:[#allocation5 + $0xa8] sm:$0xff]
    %v192 = vld [vmem:[#allocation5 + $0xb0] sm:$0xff]
    %v193 = vld [vmem:[#allocation5 + $0xb8] sm:$0xff]
    %v194 = vld [vmem:[#allocation5 + $0xc0] sm:$0xff]
    %v195 = vld [vmem:[#allocation5 + $0xc8] sm:$0xff]
    %v196 = vld [vmem:[#allocation5 + $0xd0] sm:$0xff]
    %v197 = vld [vmem:[#allocation5 + $0xd8] sm:$0xff]
    %v198 = vld [vmem:[#allocation5 + $0xe0] sm:$0xff]
    %v199 = vld [vmem:[#allocation5 + $0xe8] sm:$0xff]
    %v200 = vld [vmem:[#allocation5 + $0xf0] sm:$0xff]
    %v201 = vld [vmem:[#allocation5 + $0xf8] sm:$0xff]
    %v202 = vld [vmem:[#allocation5 + $0x100] sm:$0xff]
    %v203 = vld [vmem:[#allocation5 + $0x108] sm:$0xff]
    %v204 = vld [vmem:[#allocation5 + $0x110] sm:$0xff]
    %v205 = vld [vmem:[#allocation5 + $0x118] sm:$0xff]
    %v206 = vld [vmem:[#allocation5 + $0x120] sm:$0xff]
    %v207 = vld [vmem:[#allocation5 + $0x128] sm:$0xff]
    %v208 = vld [vmem:[#allocation5 + $0x130] sm:$0xff]
    %v209 = vld [vmem:[#allocation5 + $0x138] sm:$0xff]
    %v210 = vld [vmem:[#allocation5 + $0x140] sm:$0xff]
    %v211 = vld [vmem:[#allocation5 + $0x148] sm:$0xff]
    %v212 = vld [vmem:[#allocation5 + $0x150] sm:$0xff]
    %v213 = vld [vmem:[#allocation5 + $0x158] sm:$0xff]
    %v214 = vld [vmem:[#allocation5 + $0x160] sm:$0xff]
    %v215 = vld [vmem:[#allocation5 + $0x168] sm:$0xff]
    %v216 = vld [vmem:[#allocation5 + $0x170] sm:$0xff]
    %v217 = vld [vmem:[#allocation5 + $0x178] sm:$0xff]
    %v218 = vld [vmem:[#allocation5 + $0x180] sm:$0xff]
    %v219 = vld [vmem:[#allocation5 + $0x188] sm:$0xff]
    %v220 = vld [vmem:[#allocation5 + $0x190] sm:$0xff]
    %v221 = vld [vmem:[#allocation5 + $0x198] sm:$0xff]
    %v222 = vld [vmem:[#allocation5 + $0x1a0] sm:$0xff]
    %v223 = vld [vmem:[#allocation5 + $0x1a8] sm:$0xff]
    %v224 = vld [vmem:[#allocation5 + $0x1b0] sm:$0xff]
    %v225 = vld [vmem:[#allocation5 + $0x1b8] sm:$0xff]
    %v226 = vld [vmem:[#allocation5 + $0x1c0] sm:$0xff]
    %v227 = vld [vmem:[#allocation5 + $0x1c8] sm:$0xff]
    %v228 = vld [vmem:[#allocation5 + $0x1d0] sm:$0xff]
    %v229 = vld [vmem:[#allocation5 + $0x1d8] sm:$0xff]
    %v230 = vld [vmem:[#allocation5 + $0x1e0] sm:$0xff]
    %v231 = vld [vmem:[#allocation5 + $0x1e8] sm:$0xff]
    %v232 = vld [vmem:[#allocation5 + $0x1f0] sm:$0xff]
    %v233 = vld [vmem:[#allocation5 + $0x1f8] sm:$0xff]
    %v234 = vld [vmem:[#allocation5 + $0x200] sm:$0xff]
    %v235 = vld [vmem:[#allocation5 + $0x208] sm:$0xff]
    %v236 = vld [vmem:[#allocation5 + $0x210] sm:$0xff]
    %v237 = vld [vmem:[#allocation5 + $0x218] sm:$0xff]
    %v238 = vld [vmem:[#allocation5 + $0x220] sm:$0xff]
    %v239 = vld [vmem:[#allocation5 + $0x228] sm:$0xff]
    %v240 = vld [vmem:[#allocation5 + $0x230] sm:$0xff]
    %v241 = vld [vmem:[#allocation5 + $0x238] sm:$0xff]
    %v242 = vld [vmem:[#allocation5 + $0x240] sm:$0xff]
    %v243 = vld [vmem:[#allocation5 + $0x248] sm:$0xff]
    %v244 = vld [vmem:[#allocation5 + $0x250] sm:$0xff]
    %v245 = vld [vmem:[#allocation5 + $0x258] sm:$0xff]
    %v246 = vld [vmem:[#allocation5 + $0x260] sm:$0xff]
    %v247 = vld [vmem:[#allocation5 + $0x268] sm:$0xff]
    %v248 = vld [vmem:[#allocation5 + $0x270] sm:$0xff]
    %v249 = vld [vmem:[#allocation5 + $0x278] sm:$0xff]
    %v250 = vld [vmem:[%s2] sm:$0x3]
    %v252 = vperm.slane %v250, 0
    %v253 = vperm.slane %v250, 1
    %v336 = vunpack.c.l.b16 %v170
    %v337 = vunpack.c.h.b16 %v170
    %v338 = vunpack.c.l.b16 %v171
    %v339 = vunpack.c.h.b16 %v171
    %v340 = vunpack.c.l.b16 %v172
    %v341 = vunpack.c.h.b16 %v172
    %v342 = vunpack.c.l.b16 %v173
    %v343 = vunpack.c.h.b16 %v173
    %v344 = vunpack.c.l.b16 %v174
    %v345 = vunpack.c.h.b16 %v174
    %v346 = vunpack.c.l.b16 %v175
    %v347 = vunpack.c.h.b16 %v175
    %v348 = vunpack.c.l.b16 %v176
    %v349 = vunpack.c.h.b16 %v176
    %v350 = vunpack.c.l.b16 %v177
    %v351 = vunpack.c.h.b16 %v177
    %v352 = vunpack.c.l.b16 %v178
    %v353 = vunpack.c.h.b16 %v178
    %v354 = vunpack.c.l.b16 %v179
    %v355 = vunpack.c.h.b16 %v179
    %v356 = vunpack.c.l.b16 %v180
    %v357 = vunpack.c.h.b16 %v180
    %v358 = vunpack.c.l.b16 %v181
    %v359 = vunpack.c.h.b16 %v181
    %v360 = vunpack.c.l.b16 %v182
    %v361 = vunpack.c.h.b16 %v182
    %v362 = vunpack.c.l.b16 %v183
    %v363 = vunpack.c.h.b16 %v183
    %v364 = vunpack.c.l.b16 %v184
    %v365 = vunpack.c.h.b16 %v184
    %v366 = vunpack.c.l.b16 %v185
    %v367 = vunpack.c.h.b16 %v185
    %v368 = vunpack.c.l.b16 %v186
    %v369 = vunpack.c.h.b16 %v186
    %v370 = vunpack.c.l.b16 %v187
    %v371 = vunpack.c.h.b16 %v187
    %v372 = vunpack.c.l.b16 %v188
    %v373 = vunpack.c.h.b16 %v188
    %v374 = vunpack.c.l.b16 %v189
    %v375 = vunpack.c.h.b16 %v189
    %v376 = vunpack.c.l.b16 %v190
    %v377 = vunpack.c.h.b16 %v190
    %v378 = vunpack.c.l.b16 %v191
    %v379 = vunpack.c.h.b16 %v191
    %v380 = vunpack.c.l.b16 %v192
    %v381 = vunpack.c.h.b16 %v192
    %v382 = vunpack.c.l.b16 %v193
    %v383 = vunpack.c.h.b16 %v193
    %v384 = vunpack.c.l.b16 %v194
    %v385 = vunpack.c.h.b16 %v194
    %v386 = vunpack.c.l.b16 %v195
    %v387 = vunpack.c.h.b16 %v195
    %v388 = vunpack.c.l.b16 %v196
    %v389 = vunpack.c.h.b16 %v196
    %v390 = vunpack.c.l.b16 %v197
    %v391 = vunpack.c.h.b16 %v197
    %v392 = vunpack.c.l.b16 %v198
    %v393 = vunpack.c.h.b16 %v198
    %v394 = vunpack.c.l.b16 %v199
    %v395 = vunpack.c.h.b16 %v199
    %v396 = vunpack.c.l.b16 %v200
    %v397 = vunpack.c.h.b16 %v200
    %v398 = vunpack.c.l.b16 %v201
    %v399 = vunpack.c.h.b16 %v201
    %v400 = vunpack.c.l.b16 %v202
    %v401 = vunpack.c.h.b16 %v202
    %v402 = vunpack.c.l.b16 %v203
    %v403 = vunpack.c.h.b16 %v203
    %v404 = vunpack.c.l.b16 %v204
    %v405 = vunpack.c.h.b16 %v204
    %v406 = vunpack.c.l.b16 %v205
    %v407 = vunpack.c.h.b16 %v205
    %v408 = vunpack.c.l.b16 %v206
    %v409 = vunpack.c.h.b16 %v206
    %v410 = vunpack.c.l.b16 %v207
    %v411 = vunpack.c.h.b16 %v207
    %v412 = vunpack.c.l.b16 %v208
    %v413 = vunpack.c.h.b16 %v208
    %v414 = vunpack.c.l.b16 %v209
    %v415 = vunpack.c.h.b16 %v209
    %v416 = vunpack.c.l.b16 %v210
    %v417 = vunpack.c.h.b16 %v210
    %v418 = vunpack.c.l.b16 %v211
    %v419 = vunpack.c.h.b16 %v211
    %v420 = vunpack.c.l.b16 %v212
    %v421 = vunpack.c.h.b16 %v212
    %v422 = vunpack.c.l.b16 %v213
    %v423 = vunpack.c.h.b16 %v213
    %v424 = vunpack.c.l.b16 %v214
    %v425 = vunpack.c.h.b16 %v214
    %v426 = vunpack.c.l.b16 %v215
    %v427 = vunpack.c.h.b16 %v215
    %v428 = vunpack.c.l.b16 %v216
    %v429 = vunpack.c.h.b16 %v216
    %v430 = vunpack.c.l.b16 %v217
    %v431 = vunpack.c.h.b16 %v217
    %v432 = vunpack.c.l.b16 %v218
    %v433 = vunpack.c.h.b16 %v218
    %v434 = vunpack.c.l.b16 %v219
    %v435 = vunpack.c.h.b16 %v219
    %v436 = vunpack.c.l.b16 %v220
    %v437 = vunpack.c.h.b16 %v220
    %v438 = vunpack.c.l.b16 %v221
    %v439 = vunpack.c.h.b16 %v221
    %v440 = vunpack.c.l.b16 %v222
    %v441 = vunpack.c.h.b16 %v222
    %v442 = vunpack.c.l.b16 %v223
    %v443 = vunpack.c.h.b16 %v223
    %v444 = vunpack.c.l.b16 %v224
    %v445 = vunpack.c.h.b16 %v224
    %v446 = vunpack.c.l.b16 %v225
    %v447 = vunpack.c.h.b16 %v225
    %v448 = vunpack.c.l.b16 %v226
    %v449 = vunpack.c.h.b16 %v226
    %v450 = vunpack.c.l.b16 %v227
    %v451 = vunpack.c.h.b16 %v227
    %v452 = vunpack.c.l.b16 %v228
    %v453 = vunpack.c.h.b16 %v228
    %v454 = vunpack.c.l.b16 %v229
    %v455 = vunpack.c.h.b16 %v229
    %v456 = vunpack.c.l.b16 %v230
    %v457 = vunpack.c.h.b16 %v230
    %v458 = vunpack.c.l.b16 %v231
    %v459 = vunpack.c.h.b16 %v231
    %v460 = vunpack.c.l.b16 %v232
    %v461 = vunpack.c.h.b16 %v232
    %v462 = vunpack.c.l.b16 %v233
    %v463 = vunpack.c.h.b16 %v233
    %v464 = vunpack.c.l.b16 %v234
    %v465 = vunpack.c.h.b16 %v234
    %v466 = vunpack.c.l.b16 %v235
    %v467 = vunpack.c.h.b16 %v235
    %v468 = vunpack.c.l.b16 %v236
    %v469 = vunpack.c.h.b16 %v236
    %v470 = vunpack.c.l.b16 %v237
    %v471 = vunpack.c.h.b16 %v237
    %v472 = vunpack.c.l.b16 %v238
    %v473 = vunpack.c.h.b16 %v238
    %v474 = vunpack.c.l.b16 %v239
    %v475 = vunpack.c.h.b16 %v239
    %v476 = vunpack.c.l.b16 %v240
    %v477 = vunpack.c.h.b16 %v240
    %v478 = vunpack.c.l.b16 %v241
    %v479 = vunpack.c.h.b16 %v241
    %v480 = vunpack.c.l.b16 %v242
    %v481 = vunpack.c.h.b16 %v242
    %v482 = vunpack.c.l.b16 %v243
    %v483 = vunpack.c.h.b16 %v243
    %v484 = vunpack.c.l.b16 %v244
    %v485 = vunpack.c.h.b16 %v244
    %v486 = vunpack.c.l.b16 %v245
    %v487 = vunpack.c.h.b16 %v245
    %v488 = vunpack.c.l.b16 %v246
    %v489 = vunpack.c.h.b16 %v246
    %v490 = vunpack.c.l.b16 %v247
    %v491 = vunpack.c.h.b16 %v247
    %v492 = vunpack.c.l.b16 %v248
    %v493 = vunpack.c.h.b16 %v248
    %v494 = vunpack.c.l.b16 %v249
    %v495 = vunpack.c.h.b16 %v249
    %v496 = vpack.c.b16 %v338, %v336
    %v497 = vpack.c.b16 %v339, %v337
    %v498 = vpack.c.b16 %v342, %v340
    %v499 = vpack.c.b16 %v343, %v341
    %v500 = vpack.c.b16 %v346, %v344
    %v501 = vpack.c.b16 %v347, %v345
    %v502 = vpack.c.b16 %v350, %v348
    %v503 = vpack.c.b16 %v351, %v349
    %v504 = vpack.c.b16 %v354, %v352
    %v505 = vpack.c.b16 %v355, %v353
    %v506 = vpack.c.b16 %v358, %v356
    %v507 = vpack.c.b16 %v359, %v357
    %v508 = vpack.c.b16 %v362, %v360
    %v509 = vpack.c.b16 %v363, %v361
    %v510 = vpack.c.b16 %v366, %v364
    %v511 = vpack.c.b16 %v367, %v365
    %v512 = vpack.c.b16 %v370, %v368
    %v513 = vpack.c.b16 %v371, %v369
    %v514 = vpack.c.b16 %v374, %v372
    %v515 = vpack.c.b16 %v375, %v373
    %v516 = vpack.c.b16 %v378, %v376
    %v517 = vpack.c.b16 %v379, %v377
    %v518 = vpack.c.b16 %v382, %v380
    %v519 = vpack.c.b16 %v383, %v381
    %v520 = vpack.c.b16 %v386, %v384
    %v521 = vpack.c.b16 %v387, %v385
    %v522 = vpack.c.b16 %v390, %v388
    %v523 = vpack.c.b16 %v391, %v389
    %v524 = vpack.c.b16 %v394, %v392
    %v525 = vpack.c.b16 %v395, %v393
    %v526 = vpack.c.b16 %v398, %v396
    %v527 = vpack.c.b16 %v399, %v397
    %v528 = vpack.c.b16 %v402, %v400
    %v529 = vpack.c.b16 %v403, %v401
    %v530 = vpack.c.b16 %v406, %v404
    %v531 = vpack.c.b16 %v407, %v405
    %v532 = vpack.c.b16 %v410, %v408
    %v533 = vpack.c.b16 %v411, %v409
    %v534 = vpack.c.b16 %v414, %v412
    %v535 = vpack.c.b16 %v415, %v413
    %v536 = vpack.c.b16 %v418, %v416
    %v537 = vpack.c.b16 %v419, %v417
    %v538 = vpack.c.b16 %v422, %v420
    %v539 = vpack.c.b16 %v423, %v421
    %v540 = vpack.c.b16 %v426, %v424
    %v541 = vpack.c.b16 %v427, %v425
    %v542 = vpack.c.b16 %v430, %v428
    %v543 = vpack.c.b16 %v431, %v429
    %v544 = vpack.c.b16 %v434, %v432
    %v545 = vpack.c.b16 %v435, %v433
    %v546 = vpack.c.b16 %v438, %v436
    %v547 = vpack.c.b16 %v439, %v437
    %v548 = vpack.c.b16 %v442, %v440
    %v549 = vpack.c.b16 %v443, %v441
    %v550 = vpack.c.b16 %v446, %v444
    %v551 = vpack.c.b16 %v447, %v445
    %v552 = vpack.c.b16 %v450, %v448
    %v553 = vpack.c.b16 %v451, %v449
    %v554 = vpack.c.b16 %v454, %v452
    %v555 = vpack.c.b16 %v455, %v453
    %v556 = vpack.c.b16 %v458, %v456
    %v557 = vpack.c.b16 %v459, %v457
    %v558 = vpack.c.b16 %v462, %v460
    %v559 = vpack.c.b16 %v463, %v461
    %v560 = vpack.c.b16 %v466, %v464
    %v561 = vpack.c.b16 %v467, %v465
    %v562 = vpack.c.b16 %v470, %v468
    %v563 = vpack.c.b16 %v471, %v469
    %v564 = vpack.c.b16 %v474, %v472
    %v565 = vpack.c.b16 %v475, %v473
    %v566 = vpack.c.b16 %v478, %v476
    %v567 = vpack.c.b16 %v479, %v477
    %v568 = vpack.c.b16 %v482, %v480
    %v569 = vpack.c.b16 %v483, %v481
    %v570 = vpack.c.b16 %v486, %v484
    %v571 = vpack.c.b16 %v487, %v485
    %v572 = vpack.c.b16 %v490, %v488
    %v573 = vpack.c.b16 %v491, %v489
    %v574 = vpack.c.b16 %v494, %v492
    %v575 = vpack.c.b16 %v495, %v493
    %656 = vmatpush.bf16.msra.mxu0 %v510
    %657 = vmatpush.bf16.msra.mxu0 %v508
    %658 = vmatpush.bf16.msra.mxu0 %v506
    %659 = vmatpush.bf16.msra.mxu0 %v504
    %660 = vmatpush.bf16.msra.mxu0 %v502
    %661 = vmatpush.bf16.msra.mxu0 %v500
    %662 = vmatpush.bf16.msra.mxu0 %v498
    %663 = vmatpush.bf16.msra.mxu0 %v496
    %664 = vmatmul.bf16.gmra.mxu0 %v135
    %v665 = vpop.f32.mrf.mxu0
    %v666 = vadd.f32 %v252, %v665
    %v667 = vpop.f32.mrf.mxu0
    %v668 = vadd.f32 %v252, %v667
    %669 = vmatmul.bf16.gmra.mxu0 %v140
    %v670 = vpop.f32.mrf.mxu0
    %v671 = vadd.f32 %v252, %v670
    %v672 = vpop.f32.mrf.mxu0
    %v673 = vadd.f32 %v252, %v672
    %674 = vmatmul.bf16.gmra.mxu0 %v145
    %v675 = vpop.f32.mrf.mxu0
    %v676 = vadd.f32 %v252, %v675
    %v677 = vpop.f32.mrf.mxu0
    %v678 = vadd.f32 %v252, %v677
    %679 = vmatmul.bf16.gmra.mxu0 %v150
    %v680 = vpop.f32.mrf.mxu0
    %v681 = vadd.f32 %v252, %v680
    %v682 = vpop.f32.mrf.mxu0
    %v683 = vadd.f32 %v252, %v682
    %684 = vmatmul.bf16.gmra.mxu0 %v155
    %v685 = vpop.f32.mrf.mxu0
    %v686 = vadd.f32 %v252, %v685
    %v687 = vpop.f32.mrf.mxu0
    %v688 = vadd.f32 %v252, %v687
    %689 = vmatmul.bf16.gmra.mxu0 %v160
    %v690 = vpop.f32.mrf.mxu0
    %v691 = vadd.f32 %v252, %v690
    %v692 = vpop.f32.mrf.mxu0
    %v693 = vadd.f32 %v252, %v692
    %694 = vmatmul.bf16.gmra.mxu0 %v165
    %v695 = vpop.f32.mrf.mxu0
    %v696 = vadd.f32 %v252, %v695
    %v697 = vpop.f32.mrf.mxu0
    %698 = vdwg.mxu0
    %699 = vmatpush.bf16.msra.mxu0 %v526
    %700 = vmatpush.bf16.msra.mxu0 %v524
    %701 = vmatpush.bf16.msra.mxu0 %v522
    %702 = vmatpush.bf16.msra.mxu0 %v520
    %703 = vmatpush.bf16.msra.mxu0 %v518
    %704 = vmatpush.bf16.msra.mxu0 %v516
    %705 = vmatpush.bf16.msra.mxu0 %v514
    %706 = vmatpush.bf16.msra.mxu0 %v512
    %707 = vmatmul.bf16.gmra.mxu0 %v136
    %v708 = vpop.f32.mrf.mxu0
    %v709 = vadd.f32 %v666, %v708
    %v710 = vpop.f32.mrf.mxu0
    %v711 = vadd.f32 %v668, %v710
    %712 = vmatmul.bf16.gmra.mxu0 %v141
    %v713 = vpop.f32.mrf.mxu0
    %v714 = vadd.f32 %v671, %v713
    %v715 = vpop.f32.mrf.mxu0
    %v716 = vadd.f32 %v673, %v715
    %717 = vmatmul.bf16.gmra.mxu0 %v146
    %v718 = vpop.f32.mrf.mxu0
    %v719 = vadd.f32 %v676, %v718
    %v720 = vpop.f32.mrf.mxu0
    %v721 = vadd.f32 %v678, %v720
    %722 = vmatmul.bf16.gmra.mxu0 %v151
    %v723 = vpop.f32.mrf.mxu0
    %v724 = vadd.f32 %v681, %v723
    %v725 = vpop.f32.mrf.mxu0
    %v726 = vadd.f32 %v683, %v725
    %727 = vmatmul.bf16.gmra.mxu0 %v156
    %v728 = vpop.f32.mrf.mxu0
    %v729 = vadd.f32 %v686, %v728
    %v730 = vpop.f32.mrf.mxu0
    %v731 = vadd.f32 %v688, %v730
    %732 = vmatmul.bf16.gmra.mxu0 %v161
    %v733 = vpop.f32.mrf.mxu0
    %v734 = vadd.f32 %v691, %v733
    %v735 = vpop.f32.mrf.mxu0
    %v736 = vadd.f32 %v693, %v735
    %737 = vmatmul.bf16.gmra.mxu0 %v166
    %v738 = vpop.f32.mrf.mxu0
    %v739 = vadd.f32 %v696, %v738
    %v740 = vpop.f32.mrf.mxu0
    %741 = vdwg.mxu0
    %742 = vmatpush.bf16.msra.mxu0 %v542
    %743 = vmatpush.bf16.msra.mxu0 %v540
    %744 = vmatpush.bf16.msra.mxu0 %v538
    %745 = vmatpush.bf16.msra.mxu0 %v536
    %746 = vmatpush.bf16.msra.mxu0 %v534
    %747 = vmatpush.bf16.msra.mxu0 %v532
    %748 = vmatpush.bf16.msra.mxu0 %v530
    %749 = vmatpush.bf16.msra.mxu0 %v528
    %750 = vmatmul.bf16.gmra.mxu0 %v137
    %v751 = vpop.f32.mrf.mxu0
    %v752 = vadd.f32 %v709, %v751
    %v753 = vpop.f32.mrf.mxu0
    %v754 = vadd.f32 %v711, %v753
    %755 = vmatmul.bf16.gmra.mxu0 %v142
    %v756 = vpop.f32.mrf.mxu0
    %v757 = vadd.f32 %v714, %v756
    %v758 = vpop.f32.mrf.mxu0
    %v759 = vadd.f32 %v716, %v758
    %760 = vmatmul.bf16.gmra.mxu0 %v147
    %v761 = vpop.f32.mrf.mxu0
    %v762 = vadd.f32 %v719, %v761
    %v763 = vpop.f32.mrf.mxu0
    %v764 = vadd.f32 %v721, %v763
    %765 = vmatmul.bf16.gmra.mxu0 %v152
    %v766 = vpop.f32.mrf.mxu0
    %v767 = vadd.f32 %v724, %v766
    %v768 = vpop.f32.mrf.mxu0
    %v769 = vadd.f32 %v726, %v768
    %770 = vmatmul.bf16.gmra.mxu0 %v157
    %v771 = vpop.f32.mrf.mxu0
    %v772 = vadd.f32 %v729, %v771
    %v773 = vpop.f32.mrf.mxu0
    %v774 = vadd.f32 %v731, %v773
    %775 = vmatmul.bf16.gmra.mxu0 %v162
    %v776 = vpop.f32.mrf.mxu0
    %v777 = vadd.f32 %v734, %v776
    %v778 = vpop.f32.mrf.mxu0
    %v779 = vadd.f32 %v736, %v778
    %780 = vmatmul.bf16.gmra.mxu0 %v167
    %v781 = vpop.f32.mrf.mxu0
    %v782 = vadd.f32 %v739, %v781
    %v783 = vpop.f32.mrf.mxu0
    %784 = vdwg.mxu0
    %785 = vmatpush.bf16.msra.mxu0 %v558
    %786 = vmatpush.bf16.msra.mxu0 %v556
    %787 = vmatpush.bf16.msra.mxu0 %v554
    %788 = vmatpush.bf16.msra.mxu0 %v552
    %789 = vmatpush.bf16.msra.mxu0 %v550
    %790 = vmatpush.bf16.msra.mxu0 %v548
    %791 = vmatpush.bf16.msra.mxu0 %v546
    %792 = vmatpush.bf16.msra.mxu0 %v544
    %793 = vmatmul.bf16.gmra.mxu0 %v138
    %v794 = vpop.f32.mrf.mxu0
    %v795 = vadd.f32 %v752, %v794
    %v796 = vpop.f32.mrf.mxu0
    %v797 = vadd.f32 %v754, %v796
    %798 = vmatmul.bf16.gmra.mxu0 %v143
    %v799 = vpop.f32.mrf.mxu0
    %v800 = vadd.f32 %v757, %v799
    %v801 = vpop.f32.mrf.mxu0
    %v802 = vadd.f32 %v759, %v801
    %803 = vmatmul.bf16.gmra.mxu0 %v148
    %v804 = vpop.f32.mrf.mxu0
    %v805 = vadd.f32 %v762, %v804
    %v806 = vpop.f32.mrf.mxu0
    %v807 = vadd.f32 %v764, %v806
    %808 = vmatmul.bf16.gmra.mxu0 %v153
    %v809 = vpop.f32.mrf.mxu0
    %v810 = vadd.f32 %v767, %v809
    %v811 = vpop.f32.mrf.mxu0
    %v812 = vadd.f32 %v769, %v811
    %813 = vmatmul.bf16.gmra.mxu0 %v158
    %v814 = vpop.f32.mrf.mxu0
    %v815 = vadd.f32 %v772, %v814
    %v816 = vpop.f32.mrf.mxu0
    %v817 = vadd.f32 %v774, %v816
    %818 = vmatmul.bf16.gmra.mxu0 %v163
    %v819 = vpop.f32.mrf.mxu0
    %v820 = vadd.f32 %v777, %v819
    %v821 = vpop.f32.mrf.mxu0
    %v822 = vadd.f32 %v779, %v821
    %823 = vmatmul.bf16.gmra.mxu0 %v168
    %v824 = vpop.f32.mrf.mxu0
    %v825 = vadd.f32 %v782, %v824
    %v826 = vpop.f32.mrf.mxu0
    %827 = vdwg.mxu0
    %828 = vmatpush.bf16.msra.mxu0 %v574
    %829 = vmatpush.bf16.msra.mxu0 %v572
    %830 = vmatpush.bf16.msra.mxu0 %v570
    %831 = vmatpush.bf16.msra.mxu0 %v568
    %832 = vmatpush.bf16.msra.mxu0 %v566
    %833 = vmatpush.bf16.msra.mxu0 %v564
    %834 = vmatpush.bf16.msra.mxu0 %v562
    %835 = vmatpush.bf16.msra.mxu0 %v560
    %836 = vmatmul.bf16.gmra.mxu0 %v139
    %v837 = vpop.f32.mrf.mxu0
    %v838 = vadd.f32 %v795, %v837
    %v839 = vpop.f32.mrf.mxu0
    %v840 = vadd.f32 %v797, %v839
    %841 = vmatmul.bf16.gmra.mxu0 %v144
    %v842 = vpop.f32.mrf.mxu0
    %v843 = vadd.f32 %v800, %v842
    %v844 = vpop.f32.mrf.mxu0
    %v845 = vadd.f32 %v802, %v844
    %846 = vmatmul.bf16.gmra.mxu0 %v149
    %v847 = vpop.f32.mrf.mxu0
    %v848 = vadd.f32 %v805, %v847
    %v849 = vpop.f32.mrf.mxu0
    %v850 = vadd.f32 %v807, %v849
    %851 = vmatmul.bf16.gmra.mxu0 %v154
    %v852 = vpop.f32.mrf.mxu0
    %v853 = vadd.f32 %v810, %v852
    %v854 = vpop.f32.mrf.mxu0
    %v855 = vadd.f32 %v812, %v854
    %856 = vmatmul.bf16.gmra.mxu0 %v159
    %v857 = vpop.f32.mrf.mxu0
    %v858 = vadd.f32 %v815, %v857
    %v859 = vpop.f32.mrf.mxu0
    %v860 = vadd.f32 %v817, %v859
    %861 = vmatmul.bf16.gmra.mxu0 %v164
    %v862 = vpop.f32.mrf.mxu0
    %v863 = vadd.f32 %v820, %v862
    %v864 = vpop.f32.mrf.mxu0
    %v865 = vadd.f32 %v822, %v864
    %866 = vmatmul.bf16.gmra.mxu0 %v169
    %v867 = vpop.f32.mrf.mxu0
    %v868 = vadd.f32 %v825, %v867
    %v869 = vpop.f32.mrf.mxu0
    %870 = vdwg.mxu0
    %871 = vmatpush.bf16.msra.mxu0 %v511
    %872 = vmatpush.bf16.msra.mxu0 %v509
    %873 = vmatpush.bf16.msra.mxu0 %v507
    %874 = vmatpush.bf16.msra.mxu0 %v505
    %875 = vmatpush.bf16.msra.mxu0 %v503
    %876 = vmatpush.bf16.msra.mxu0 %v501
    %877 = vmatpush.bf16.msra.mxu0 %v499
    %878 = vmatpush.bf16.msra.mxu0 %v497
    %879 = vmatmul.bf16.gmra.mxu0 %v135
    %v880 = vpop.f32.mrf.mxu0
    %v881 = vadd.f32 %v253, %v880
    %v882 = vpop.f32.mrf.mxu0
    %v883 = vadd.f32 %v253, %v882
    %884 = vmatmul.bf16.gmra.mxu0 %v140
    %v885 = vpop.f32.mrf.mxu0
    %v886 = vadd.f32 %v253, %v885
    %v887 = vpop.f32.mrf.mxu0
    %v888 = vadd.f32 %v253, %v887
    %889 = vmatmul.bf16.gmra.mxu0 %v145
    %v890 = vpop.f32.mrf.mxu0
    %v891 = vadd.f32 %v253, %v890
    %v892 = vpop.f32.mrf.mxu0
    %v893 = vadd.f32 %v253, %v892
    %894 = vmatmul.bf16.gmra.mxu0 %v150
    %v895 = vpop.f32.mrf.mxu0
    %v896 = vadd.f32 %v253, %v895
    %v897 = vpop.f32.mrf.mxu0
    %v898 = vadd.f32 %v253, %v897
    %899 = vmatmul.bf16.gmra.mxu0 %v155
    %v900 = vpop.f32.mrf.mxu0
    %v901 = vadd.f32 %v253, %v900
    %v902 = vpop.f32.mrf.mxu0
    %v903 = vadd.f32 %v253, %v902
    %904 = vmatmul.bf16.gmra.mxu0 %v160
    %v905 = vpop.f32.mrf.mxu0
    %v906 = vadd.f32 %v253, %v905
    %v907 = vpop.f32.mrf.mxu0
    %v908 = vadd.f32 %v253, %v907
    %909 = vmatmul.bf16.gmra.mxu0 %v165
    %v910 = vpop.f32.mrf.mxu0
    %v911 = vadd.f32 %v253, %v910
    %v912 = vpop.f32.mrf.mxu0
    %913 = vdwg.mxu0
    %914 = vmatpush.bf16.msra.mxu0 %v527
    %915 = vmatpush.bf16.msra.mxu0 %v525
    %916 = vmatpush.bf16.msra.mxu0 %v523
    %917 = vmatpush.bf16.msra.mxu0 %v521
    %918 = vmatpush.bf16.msra.mxu0 %v519
    %919 = vmatpush.bf16.msra.mxu0 %v517
    %920 = vmatpush.bf16.msra.mxu0 %v515
    %921 = vmatpush.bf16.msra.mxu0 %v513
    %922 = vmatmul.bf16.gmra.mxu0 %v136
    %v923 = vpop.f32.mrf.mxu0
    %v924 = vadd.f32 %v881, %v923
    %v925 = vpop.f32.mrf.mxu0
    %v926 = vadd.f32 %v883, %v925
    %927 = vmatmul.bf16.gmra.mxu0 %v141
    %v928 = vpop.f32.mrf.mxu0
    %v929 = vadd.f32 %v886, %v928
    %v930 = vpop.f32.mrf.mxu0
    %v931 = vadd.f32 %v888, %v930
    %932 = vmatmul.bf16.gmra.mxu0 %v146
    %v933 = vpop.f32.mrf.mxu0
    %v934 = vadd.f32 %v891, %v933
    %v935 = vpop.f32.mrf.mxu0
    %v936 = vadd.f32 %v893, %v935
    %937 = vmatmul.bf16.gmra.mxu0 %v151
    %v938 = vpop.f32.mrf.mxu0
    %v939 = vadd.f32 %v896, %v938
    %v940 = vpop.f32.mrf.mxu0
    %v941 = vadd.f32 %v898, %v940
    %942 = vmatmul.bf16.gmra.mxu0 %v156
    %v943 = vpop.f32.mrf.mxu0
    %v944 = vadd.f32 %v901, %v943
    %v945 = vpop.f32.mrf.mxu0
    %v946 = vadd.f32 %v903, %v945
    %947 = vmatmul.bf16.gmra.mxu0 %v161
    %v948 = vpop.f32.mrf.mxu0
    %v949 = vadd.f32 %v906, %v948
    %v950 = vpop.f32.mrf.mxu0
    %v951 = vadd.f32 %v908, %v950
    %952 = vmatmul.bf16.gmra.mxu0 %v166
    %v953 = vpop.f32.mrf.mxu0
    %v954 = vadd.f32 %v911, %v953
    %v955 = vpop.f32.mrf.mxu0
    %956 = vdwg.mxu0
    %957 = vmatpush.bf16.msra.mxu0 %v543
    %958 = vmatpush.bf16.msra.mxu0 %v541
    %959 = vmatpush.bf16.msra.mxu0 %v539
    %960 = vmatpush.bf16.msra.mxu0 %v537
    %961 = vmatpush.bf16.msra.mxu0 %v535
    %962 = vmatpush.bf16.msra.mxu0 %v533
    %963 = vmatpush.bf16.msra.mxu0 %v531
    %964 = vmatpush.bf16.msra.mxu0 %v529
    %965 = vmatmul.bf16.gmra.mxu0 %v137
    %v966 = vpop.f32.mrf.mxu0
    %v967 = vadd.f32 %v924, %v966
    %v968 = vpop.f32.mrf.mxu0
    %v969 = vadd.f32 %v926, %v968
    %970 = vmatmul.bf16.gmra.mxu0 %v142
    %v971 = vpop.f32.mrf.mxu0
    %v972 = vadd.f32 %v929, %v971
    %v973 = vpop.f32.mrf.mxu0
    %v974 = vadd.f32 %v931, %v973
    %975 = vmatmul.bf16.gmra.mxu0 %v147
    %v976 = vpop.f32.mrf.mxu0
    %v977 = vadd.f32 %v934, %v976
    %v978 = vpop.f32.mrf.mxu0
    %v979 = vadd.f32 %v936, %v978
    %980 = vmatmul.bf16.gmra.mxu0 %v152
    %v981 = vpop.f32.mrf.mxu0
    %v982 = vadd.f32 %v939, %v981
    %v983 = vpop.f32.mrf.mxu0
    %v984 = vadd.f32 %v941, %v983
    %985 = vmatmul.bf16.gmra.mxu0 %v157
    %v986 = vpop.f32.mrf.mxu0
    %v987 = vadd.f32 %v944, %v986
    %v988 = vpop.f32.mrf.mxu0
    %v989 = vadd.f32 %v946, %v988
    %990 = vmatmul.bf16.gmra.mxu0 %v162
    %v991 = vpop.f32.mrf.mxu0
    %v992 = vadd.f32 %v949, %v991
    %v993 = vpop.f32.mrf.mxu0
    %v994 = vadd.f32 %v951, %v993
    %995 = vmatmul.bf16.gmra.mxu0 %v167
    %v996 = vpop.f32.mrf.mxu0
    %v997 = vadd.f32 %v954, %v996
    %v998 = vpop.f32.mrf.mxu0
    %999 = vdwg.mxu0
    %1000 = vmatpush.bf16.msra.mxu0 %v559
    %1001 = vmatpush.bf16.msra.mxu0 %v557
    %1002 = vmatpush.bf16.msra.mxu0 %v555
    %1003 = vmatpush.bf16.msra.mxu0 %v553
    %1004 = vmatpush.bf16.msra.mxu0 %v551
    %1005 = vmatpush.bf16.msra.mxu0 %v549
    %1006 = vmatpush.bf16.msra.mxu0 %v547
    %1007 = vmatpush.bf16.msra.mxu0 %v545
    %1008 = vmatmul.bf16.gmra.mxu0 %v138
    %v1009 = vpop.f32.mrf.mxu0
    %v1010 = vadd.f32 %v967, %v1009
    %v1011 = vpop.f32.mrf.mxu0
    %v1012 = vadd.f32 %v969, %v1011
    %1013 = vmatmul.bf16.gmra.mxu0 %v143
    %v1014 = vpop.f32.mrf.mxu0
    %v1015 = vadd.f32 %v972, %v1014
    %v1016 = vpop.f32.mrf.mxu0
    %v1017 = vadd.f32 %v974, %v1016
    %1018 = vmatmul.bf16.gmra.mxu0 %v148
    %v1019 = vpop.f32.mrf.mxu0
    %v1020 = vadd.f32 %v977, %v1019
    %v1021 = vpop.f32.mrf.mxu0
    %v1022 = vadd.f32 %v979, %v1021
    %1023 = vmatmul.bf16.gmra.mxu0 %v153
    %v1024 = vpop.f32.mrf.mxu0
    %v1025 = vadd.f32 %v982, %v1024
    %v1026 = vpop.f32.mrf.mxu0
    %v1027 = vadd.f32 %v984, %v1026
    %1028 = vmatmul.bf16.gmra.mxu0 %v158
    %v1029 = vpop.f32.mrf.mxu0
    %v1030 = vadd.f32 %v987, %v1029
    %v1031 = vpop.f32.mrf.mxu0
    %v1032 = vadd.f32 %v989, %v1031
    %1033 = vmatmul.bf16.gmra.mxu0 %v163
    %v1034 = vpop.f32.mrf.mxu0
    %v1035 = vadd.f32 %v992, %v1034
    %v1036 = vpop.f32.mrf.mxu0
    %v1037 = vadd.f32 %v994, %v1036
    %1038 = vmatmul.bf16.gmra.mxu0 %v168
    %v1039 = vpop.f32.mrf.mxu0
    %v1040 = vadd.f32 %v997, %v1039
    %v1041 = vpop.f32.mrf.mxu0
    %1042 = vdwg.mxu0
    %1043 = vmatpush.bf16.msra.mxu0 %v575
    %1044 = vmatpush.bf16.msra.mxu0 %v573
    %1045 = vmatpush.bf16.msra.mxu0 %v571
    %1046 = vmatpush.bf16.msra.mxu0 %v569
    %1047 = vmatpush.bf16.msra.mxu0 %v567
    %1048 = vmatpush.bf16.msra.mxu0 %v565
    %1049 = vmatpush.bf16.msra.mxu0 %v563
    %1050 = vmatpush.bf16.msra.mxu0 %v561
    %1051 = vmatmul.bf16.gmra.mxu0 %v139
    %v1052 = vpop.f32.mrf.mxu0
    %v1053 = vadd.f32 %v1010, %v1052
    %v1054 = vpop.f32.mrf.mxu0
    %v1055 = vadd.f32 %v1012, %v1054
    %1056 = vmatmul.bf16.gmra.mxu0 %v144
    %v1057 = vpop.f32.mrf.mxu0
    %v1058 = vadd.f32 %v1015, %v1057
    %v1059 = vpop.f32.mrf.mxu0
    %v1060 = vadd.f32 %v1017, %v1059
    %1061 = vmatmul.bf16.gmra.mxu0 %v149
    %v1062 = vpop.f32.mrf.mxu0
    %v1063 = vadd.f32 %v1020, %v1062
    %v1064 = vpop.f32.mrf.mxu0
    %v1065 = vadd.f32 %v1022, %v1064
    %1066 = vmatmul.bf16.gmra.mxu0 %v154
    %v1067 = vpop.f32.mrf.mxu0
    %v1068 = vadd.f32 %v1025, %v1067
    %v1069 = vpop.f32.mrf.mxu0
    %v1070 = vadd.f32 %v1027, %v1069
    %1071 = vmatmul.bf16.gmra.mxu0 %v159
    %v1072 = vpop.f32.mrf.mxu0
    %v1073 = vadd.f32 %v1030, %v1072
    %v1074 = vpop.f32.mrf.mxu0
    %v1075 = vadd.f32 %v1032, %v1074
    %1076 = vmatmul.bf16.gmra.mxu0 %v164
    %v1077 = vpop.f32.mrf.mxu0
    %v1078 = vadd.f32 %v1035, %v1077
    %v1079 = vpop.f32.mrf.mxu0
    %v1080 = vadd.f32 %v1037, %v1079
    %1081 = vmatmul.bf16.gmra.mxu0 %v169
    %v1082 = vpop.f32.mrf.mxu0
    %v1083 = vadd.f32 %v1040, %v1082
    %v1084 = vpop.f32.mrf.mxu0
    %1085 = vdwg.mxu0
    %v1086 = vmax.f32 %v838, 0.0
    %v1087 = vmax.f32 %v1053, 0.0
    %v1088 = vmax.f32 %v840, 0.0
    %v1089 = vmax.f32 %v1055, 0.0
    %v1090 = vmax.f32 %v843, 0.0
    %v1091 = vmax.f32 %v1058, 0.0
    %v1092 = vmax.f32 %v845, 0.0
    %v1093 = vmax.f32 %v1060, 0.0
    %v1094 = vmax.f32 %v848, 0.0
    %v1095 = vmax.f32 %v1063, 0.0
    %v1096 = vmax.f32 %v850, 0.0
    %v1097 = vmax.f32 %v1065, 0.0
    %v1098 = vmax.f32 %v853, 0.0
    %v1099 = vmax.f32 %v1068, 0.0
    %v1100 = vmax.f32 %v855, 0.0
    %v1101 = vmax.f32 %v1070, 0.0
    %v1102 = vmax.f32 %v858, 0.0
    %v1103 = vmax.f32 %v1073, 0.0
    %v1104 = vmax.f32 %v860, 0.0
    %v1105 = vmax.f32 %v1075, 0.0
    %v1106 = vmax.f32 %v863, 0.0
    %v1107 = vmax.f32 %v1078, 0.0
    %v1108 = vmax.f32 %v865, 0.0
    %v1109 = vmax.f32 %v1080, 0.0
    %v1110 = vmax.f32 %v868, 0.0
    %v1111 = vmax.f32 %v1083, 0.0
    %1112 = vst [vmem:[#allocation2] sm:$0xff] %v1086
    %1113 = vst [vmem:[#allocation2 + $0x8] sm:$0xff] %v1087
    %1114 = vst [vmem:[#allocation2 + $0x10] sm:$0xff] %v1088
    %1115 = vst [vmem:[#allocation2 + $0x18] sm:$0xff] %v1089
    %1116 = vst [vmem:[#allocation2 + $0x20] sm:$0xff] %v1090
    %1117 = vst [vmem:[#allocation2 + $0x28] sm:$0xff] %v1091
    %1118 = vst [vmem:[#allocation2 + $0x30] sm:$0xff] %v1092
    %1119 = vst [vmem:[#allocation2 + $0x38] sm:$0xff] %v1093
    %1120 = vst [vmem:[#allocation2 + $0x40] sm:$0xff] %v1094
    %1121 = vst [vmem:[#allocation2 + $0x48] sm:$0xff] %v1095
    %1122 = vst [vmem:[#allocation2 + $0x50] sm:$0xff] %v1090
    %1123 = vst [vmem:[#allocation2 + $0x58] sm:$0xff] %v1091
    %1124 = vst [vmem:[#allocation2 + $0x60] sm:$0xff] %v1092
    %1125 = vst [vmem:[#allocation2 + $0x68] sm:$0xff] %v1093
    %1126 = vst [vmem:[#allocation2 + $0x70] sm:$0xff] %v1094
    %1127 = vst [vmem:[#allocation2 + $0x78] sm:$0xff] %v1095
    %1128 = vst [vmem:[#allocation2 + $0x80] sm:$0xff] %v1096
    %1129 = vst [vmem:[#allocation2 + $0x88] sm:$0xff] %v1097
    %1130 = vst [vmem:[#allocation2 + $0x90] sm:$0xff] %v1098
    %1131 = vst [vmem:[#allocation2 + $0x98] sm:$0xff] %v1099
    %1132 = vst [vmem:[#allocation2 + $0xa0] sm:$0xff] %v1094
    %1133 = vst [vmem:[#allocation2 + $0xa8] sm:$0xff] %v1095
    %1134 = vst [vmem:[#allocation2 + $0xb0] sm:$0xff] %v1096
    %1135 = vst [vmem:[#allocation2 + $0xb8] sm:$0xff] %v1097
    %1136 = vst [vmem:[#allocation2 + $0xc0] sm:$0xff] %v1098
    %1137 = vst [vmem:[#allocation2 + $0xc8] sm:$0xff] %v1099
    %1138 = vst [vmem:[#allocation2 + $0xd0] sm:$0xff] %v1100
    %1139 = vst [vmem:[#allocation2 + $0xd8] sm:$0xff] %v1101
    %1140 = vst [vmem:[#allocation2 + $0xe0] sm:$0xff] %v1102
    %1141 = vst [vmem:[#allocation2 + $0xe8] sm:$0xff] %v1103
    %1142 = vst [vmem:[#allocation2 + $0xf0] sm:$0xff] %v1098
    %1143 = vst [vmem:[#allocation2 + $0xf8] sm:$0xff] %v1099
    %1144 = vst [vmem:[#allocation2 + $0x100] sm:$0xff] %v1100
    %1145 = vst [vmem:[#allocation2 + $0x108] sm:$0xff] %v1101
    %1146 = vst [vmem:[#allocation2 + $0x110] sm:$0xff] %v1102
    %1147 = vst [vmem:[#allocation2 + $0x118] sm:$0xff] %v1103
    %1148 = vst [vmem:[#allocation2 + $0x120] sm:$0xff] %v1104
    %1149 = vst [vmem:[#allocation2 + $0x128] sm:$0xff] %v1105
    %1150 = vst [vmem:[#allocation2 + $0x130] sm:$0xff] %v1106
    %1151 = vst [vmem:[#allocation2 + $0x138] sm:$0xff] %v1107
    %1152 = vst [vmem:[#allocation2 + $0x140] sm:$0xff] %v1102
    %1153 = vst [vmem:[#allocation2 + $0x148] sm:$0xff] %v1103
    %1154 = vst [vmem:[#allocation2 + $0x150] sm:$0xff] %v1104
    %1155 = vst [vmem:[#allocation2 + $0x158] sm:$0xff] %v1105
    %1156 = vst [vmem:[#allocation2 + $0x160] sm:$0xff] %v1106
    %1157 = vst [vmem:[#allocation2 + $0x168] sm:$0xff] %v1107
    %1158 = vst [vmem:[#allocation2 + $0x170] sm:$0xff] %v1108
    %1159 = vst [vmem:[#allocation2 + $0x178] sm:$0xff] %v1109
    %1160 = vst [vmem:[#allocation2 + $0x180] sm:$0xff] %v1110
    %1161 = vst [vmem:[#allocation2 + $0x188] sm:$0xff] %v1111
    %v1162 = vld [vmem:[#allocation2] sm:$0xff]
    %v1163 = vld [vmem:[#allocation2 + $0x8] sm:$0xff]
    %v1164 = vld [vmem:[#allocation2 + $0x10] sm:$0xff]
    %v1165 = vld [vmem:[#allocation2 + $0x18] sm:$0xff]
    %v1166 = vld [vmem:[#allocation2 + $0x20] sm:$0xff]
    %v1167 = vld [vmem:[#allocation2 + $0x28] sm:$0xff]
    %v1168 = vld [vmem:[#allocation2 + $0x30] sm:$0xff]
    %v1169 = vld [vmem:[#allocation2 + $0x38] sm:$0xff]
    %v1170 = vld [vmem:[#allocation2 + $0x40] sm:$0xff]
    %v1171 = vld [vmem:[#allocation2 + $0x48] sm:$0xff]
    %v1172 = vld [vmem:[#allocation2 + $0x50] sm:$0xff]
    %v1173 = vld [vmem:[#allocation2 + $0x58] sm:$0xff]
    %v1174 = vld [vmem:[#allocation2 + $0x60] sm:$0xff]
    %v1175 = vld [vmem:[#allocation2 + $0x68] sm:$0xff]
    %v1176 = vld [vmem:[#allocation2 + $0x70] sm:$0xff]
    %v1177 = vld [vmem:[#allocation2 + $0x78] sm:$0xff]
    %v1178 = vld [vmem:[#allocation2 + $0x80] sm:$0xff]
    %v1179 = vld [vmem:[#allocation2 + $0x88] sm:$0xff]
    %v1180 = vld [vmem:[#allocation2 + $0x90] sm:$0xff]
    %v1181 = vld [vmem:[#allocation2 + $0x98] sm:$0xff]
    %v1182 = vld [vmem:[#allocation2 + $0xa0] sm:$0xff]
    %v1183 = vld [vmem:[#allocation2 + $0xa8] sm:$0xff]
    %v1184 = vld [vmem:[#allocation2 + $0xb0] sm:$0xff]
    %v1185 = vld [vmem:[#allocation2 + $0xb8] sm:$0xff]
    %v1186 = vld [vmem:[#allocation2 + $0xc0] sm:$0xff]
    %v1187 = vld [vmem:[#allocation2 + $0xc8] sm:$0xff]
    %v1188 = vld [vmem:[#allocation2 + $0xd0] sm:$0xff]
    %v1189 = vld [vmem:[#allocation2 + $0xd8] sm:$0xff]
    %v1190 = vld [vmem:[#allocation2 + $0xe0] sm:$0xff]
    %v1191 = vld [vmem:[#allocation2 + $0xe8] sm:$0xff]
    %v1192 = vld [vmem:[#allocation2 + $0xf0] sm:$0xff]
    %v1193 = vld [vmem:[#allocation2 + $0xf8] sm:$0xff]
    %v1194 = vld [vmem:[#allocation2 + $0x100] sm:$0xff]
    %v1195 = vld [vmem:[#allocation2 + $0x108] sm:$0xff]
    %v1196 = vld [vmem:[#allocation2 + $0x110] sm:$0xff]
    %v1197 = vld [vmem:[#allocation2 + $0x118] sm:$0xff]
    %v1198 = vld [vmem:[#allocation2 + $0x120] sm:$0xff]
    %v1199 = vld [vmem:[#allocation2 + $0x128] sm:$0xff]
    %v1200 = vld [vmem:[#allocation2 + $0x130] sm:$0xff]
    %v1201 = vld [vmem:[#allocation2 + $0x138] sm:$0xff]
    %v1202 = vld [vmem:[#allocation2 + $0x140] sm:$0xff]
    %v1203 = vld [vmem:[#allocation2 + $0x148] sm:$0xff]
    %v1204 = vld [vmem:[#allocation2 + $0x150] sm:$0xff]
    %v1205 = vld [vmem:[#allocation2 + $0x158] sm:$0xff]
    %v1206 = vld [vmem:[#allocation2 + $0x160] sm:$0xff]
    %v1207 = vld [vmem:[#allocation2 + $0x168] sm:$0xff]
    %v1208 = vld [vmem:[#allocation2 + $0x170] sm:$0xff]
    %v1209 = vld [vmem:[#allocation2 + $0x178] sm:$0xff]
    %v1210 = vld [vmem:[#allocation2 + $0x180] sm:$0xff]
    %v1211 = vld [vmem:[#allocation2 + $0x188] sm:$0xff]
    %v1212 = vpack.c.bf16 %v1172, %v1162
    %v1213 = vpack.c.bf16 %v1173, %v1163
    %v1214 = vpack.c.bf16 %v1174, %v1164
    %v1215 = vpack.c.bf16 %v1175, %v1165
    %v1216 = vpack.c.bf16 %v1176, %v1166
    %v1217 = vpack.c.bf16 %v1177, %v1167
    %v1218 = vpack.c.bf16 %v1178, %v1168
    %v1219 = vpack.c.bf16 %v1179, %v1169
    %v1220 = vpack.c.bf16 %v1180, %v1170
    %v1221 = vpack.c.bf16 %v1181, %v1171
    %v1222 = vpack.c.bf16 %v1192, %v1182
    %v1223 = vpack.c.bf16 %v1193, %v1183
    %v1224 = vpack.c.bf16 %v1194, %v1184
    %v1225 = vpack.c.bf16 %v1195, %v1185
    %v1226 = vpack.c.bf16 %v1196, %v1186
    %v1227 = vpack.c.bf16 %v1197, %v1187
    %v1228 = vpack.c.bf16 %v1198, %v1188
    %v1229 = vpack.c.bf16 %v1199, %v1189
    %v1230 = vpack.c.bf16 %v1200, %v1190
    %v1231 = vpack.c.bf16 %v1201, %v1191
    %v1232 = vpack.c.bf16 %v1202, %v1202
    %v1233 = vpack.c.bf16 %v1203, %v1203
    %v1234 = vpack.c.bf16 %v1204, %v1204
    %v1235 = vpack.c.bf16 %v1205, %v1205
    %v1236 = vpack.c.bf16 %v1206, %v1206
    %v1237 = vpack.c.bf16 %v1207, %v1207
    %v1238 = vpack.c.bf16 %v1208, %v1208
    %v1239 = vpack.c.bf16 %v1209, %v1209
    %v1240 = vpack.c.bf16 %v1210, %v1210
    %v1241 = vpack.c.bf16 %v1211, %v1211
    %v1242 = vld [vmem:[%s3] sm:$0xff]
    %v1243 = vld [vmem:[%s3 + $0x8] sm:$0xff]
    %v1244 = vld [vmem:[%s3 + $0x10] sm:$0xff]
    %v1245 = vld [vmem:[%s3 + $0x18] sm:$0xff]
    %v1246 = vld [vmem:[%s3 + $0x20] sm:$0xff]
    %v1247 = vld [vmem:[%s3 + $0x28] sm:$0xff]
    %v1248 = vld [vmem:[%s3 + $0x30] sm:$0xff]
    %v1249 = vld [vmem:[%s3 + $0x38] sm:$0xff]
    %v1250 = vld [vmem:[%s3 + $0x40] sm:$0xff]
    %v1251 = vld [vmem:[%s3 + $0x48] sm:$0xff]
    %v1252 = vld [vmem:[%s3 + $0x50] sm:$0xff]
    %v1253 = vld [vmem:[%s3 + $0x58] sm:$0xff]
    %v1254 = vld [vmem:[%s3 + $0x60] sm:$0xff]
    %v1255 = vld [vmem:[%s3 + $0x68] sm:$0xff]
    %v1256 = vld [vmem:[%s3 + $0x70] sm:$0xff]
    %v1257 = vld [vmem:[%s3 + $0x78] sm:$0xff]
    %v1258 = vld [vmem:[%s3 + $0x80] sm:$0xff]
    %v1259 = vld [vmem:[%s3 + $0x88] sm:$0xff]
    %v1260 = vld [vmem:[%s3 + $0x90] sm:$0xff]
    %v1261 = vld [vmem:[%s3 + $0x98] sm:$0xff]
    %v1262 = vld [vmem:[%s3 + $0xa0] sm:$0xff]
    %v1263 = vld [vmem:[%s3 + $0xa8] sm:$0xff]
    %v1264 = vld [vmem:[%s3 + $0xb0] sm:$0xff]
    %v1265 = vld [vmem:[%s3 + $0xb8] sm:$0xff]
    %v1266 = vld [vmem:[%s3 + $0xc0] sm:$0xff]
    %v1267 = vld [vmem:[%s3 + $0xc8] sm:$0xff]
    %v1268 = vld [vmem:[%s3 + $0xd0] sm:$0xff]
    %v1269 = vld [vmem:[%s3 + $0xd8] sm:$0xff]
    %v1270 = vld [vmem:[%s3 + $0xe0] sm:$0xff]
    %v1271 = vld [vmem:[%s3 + $0xe8] sm:$0xff]
    %v1272 = vld [vmem:[%s3 + $0xf0] sm:$0xff]
    %v1273 = vld [vmem:[%s3 + $0xf8] sm:$0xff]
    %v1274 = vld [vmem:[%s3 + $0x100] sm:$0xff]
    %v1275 = vld [vmem:[%s3 + $0x108] sm:$0xff]
    %v1276 = vld [vmem:[%s3 + $0x110] sm:$0xff]
    %v1277 = vld [vmem:[%s3 + $0x118] sm:$0xff]
    %v1278 = vld [vmem:[%s3 + $0x120] sm:$0xff]
    %v1279 = vld [vmem:[%s3 + $0x128] sm:$0xff]
    %v1280 = vld [vmem:[%s3 + $0x130] sm:$0xff]
    %v1281 = vld [vmem:[%s3 + $0x138] sm:$0xff]
    %v1282 = vld [vmem:[%s3 + $0x140] sm:$0xff]
    %v1283 = vld [vmem:[%s3 + $0x148] sm:$0xff]
    %v1284 = vld [vmem:[%s3 + $0x150] sm:$0xff]
    %v1285 = vld [vmem:[%s3 + $0x158] sm:$0xff]
    %v1286 = vld [vmem:[%s3 + $0x160] sm:$0xff]
    %v1287 = vld [vmem:[%s3 + $0x168] sm:$0xff]
    %v1288 = vld [vmem:[%s3 + $0x170] sm:$0xff]
    %v1289 = vld [vmem:[%s3 + $0x178] sm:$0xff]
    %v1290 = vld [vmem:[%s3 + $0x180] sm:$0xff]
    %v1291 = vld [vmem:[%s3 + $0x188] sm:$0xff]
    %v1292 = vld [vmem:[%s3 + $0x190] sm:$0xff]
    %v1293 = vld [vmem:[%s3 + $0x198] sm:$0xff]
    %v1294 = vld [vmem:[%s3 + $0x1a0] sm:$0xff]
    %v1295 = vld [vmem:[%s3 + $0x1a8] sm:$0xff]
    %v1296 = vld [vmem:[%s3 + $0x1b0] sm:$0xff]
    %v1297 = vld [vmem:[%s3 + $0x1b8] sm:$0xff]
    %v1298 = vld [vmem:[%s3 + $0x1c0] sm:$0xff]
    %v1299 = vld [vmem:[%s3 + $0x1c8] sm:$0xff]
    %v1300 = vld [vmem:[%s3 + $0x1d0] sm:$0xff]
    %v1301 = vld [vmem:[%s3 + $0x1d8] sm:$0xff]
    %v1302 = vld [vmem:[%s3 + $0x1e0] sm:$0xff]
    %v1303 = vld [vmem:[%s3 + $0x1e8] sm:$0xff]
    %v1304 = vld [vmem:[%s3 + $0x1f0] sm:$0xff]
    %v1305 = vld [vmem:[%s3 + $0x1f8] sm:$0xff]
    %v1306 = vld [vmem:[%s3 + $0x200] sm:$0xff]
    %v1307 = vld [vmem:[%s3 + $0x208] sm:$0xff]
    %v1308 = vld [vmem:[%s3 + $0x210] sm:$0xff]
    %v1309 = vld [vmem:[%s3 + $0x218] sm:$0xff]
    %v1310 = vld [vmem:[%s3 + $0x220] sm:$0xff]
    %v1311 = vld [vmem:[%s3 + $0x228] sm:$0xff]
    %v1312 = vld [vmem:[%s3 + $0x230] sm:$0xff]
    %v1313 = vld [vmem:[%s3 + $0x238] sm:$0xff]
    %v1314 = vld [vmem:[%s3 + $0x240] sm:$0xff]
    %v1315 = vld [vmem:[%s3 + $0x248] sm:$0xff]
    %v1316 = vld [vmem:[%s3 + $0x250] sm:$0xff]
    %v1317 = vld [vmem:[%s3 + $0x258] sm:$0xff]
    %v1318 = vld [vmem:[%s3 + $0x260] sm:$0xff]
    %v1319 = vld [vmem:[%s3 + $0x268] sm:$0xff]
    %v1320 = vld [vmem:[%s3 + $0x270] sm:$0xff]
    %v1321 = vld [vmem:[%s3 + $0x278] sm:$0xff]
    %v1322 = vld [vmem:[%s3 + $0x280] sm:$0xff]
    %v1323 = vld [vmem:[%s3 + $0x288] sm:$0xff]
    %v1324 = vld [vmem:[%s3 + $0x290] sm:$0xff]
    %v1325 = vld [vmem:[%s3 + $0x298] sm:$0xff]
    %v1326 = vld [vmem:[%s3 + $0x2a0] sm:$0xff]
    %v1327 = vld [vmem:[%s3 + $0x2a8] sm:$0xff]
    %v1328 = vld [vmem:[%s3 + $0x2b0] sm:$0xff]
    %v1329 = vld [vmem:[%s3 + $0x2b8] sm:$0xff]
    %v1330 = vld [vmem:[%s3 + $0x2c0] sm:$0xff]
    %v1331 = vld [vmem:[%s3 + $0x2c8] sm:$0xff]
    %v1332 = vld [vmem:[%s3 + $0x2d0] sm:$0xff]
    %v1333 = vld [vmem:[%s3 + $0x2d8] sm:$0xff]
    %v1334 = vld [vmem:[%s3 + $0x2e0] sm:$0xff]
    %v1335 = vld [vmem:[%s3 + $0x2e8] sm:$0xff]
    %v1336 = vld [vmem:[%s3 + $0x2f0] sm:$0xff]
    %v1337 = vld [vmem:[%s3 + $0x2f8] sm:$0xff]
    %v1338 = vld [vmem:[%s3 + $0x300] sm:$0xff]
    %v1339 = vld [vmem:[%s3 + $0x308] sm:$0xff]
    %v1340 = vld [vmem:[%s3 + $0x310] sm:$0xff]
    %v1341 = vld [vmem:[%s3 + $0x318] sm:$0xff]
    %v1342 = vld [vmem:[%s3 + $0x320] sm:$0xff]
    %v1343 = vld [vmem:[%s3 + $0x328] sm:$0xff]
    %v1344 = vld [vmem:[%s3 + $0x330] sm:$0xff]
    %v1345 = vld [vmem:[%s3 + $0x338] sm:$0xff]
    %v1346 = vld [vmem:[%s3 + $0x340] sm:$0xff]
    %v1347 = vld [vmem:[%s3 + $0x348] sm:$0xff]
    %v1348 = vld [vmem:[%s3 + $0x350] sm:$0xff]
    %v1349 = vld [vmem:[%s3 + $0x358] sm:$0xff]
    %v1350 = vld [vmem:[%s3 + $0x360] sm:$0xff]
    %v1351 = vld [vmem:[%s3 + $0x368] sm:$0xff]
    %v1352 = vld [vmem:[%s3 + $0x370] sm:$0xff]
    %v1353 = vld [vmem:[%s3 + $0x378] sm:$0xff]
    %v1354 = vld [vmem:[%s3 + $0x380] sm:$0xff]
    %v1355 = vld [vmem:[%s3 + $0x388] sm:$0xff]
    %v1356 = vld [vmem:[%s3 + $0x390] sm:$0xff]
    %v1357 = vld [vmem:[%s3 + $0x398] sm:$0xff]
    %v1358 = vld [vmem:[%s3 + $0x3a0] sm:$0xff]
    %v1359 = vld [vmem:[%s3 + $0x3a8] sm:$0xff]
    %v1360 = vld [vmem:[%s3 + $0x3b0] sm:$0xff]
    %v1361 = vld [vmem:[%s3 + $0x3b8] sm:$0xff]
    %v1362 = vld [vmem:[%s3 + $0x3c0] sm:$0xff]
    %v1363 = vld [vmem:[%s3 + $0x3c8] sm:$0xff]
    %v1364 = vld [vmem:[%s3 + $0x3d0] sm:$0xff]
    %v1365 = vld [vmem:[%s3 + $0x3d8] sm:$0xff]
    %v1366 = vld [vmem:[%s3 + $0x3e0] sm:$0xff]
    %v1367 = vld [vmem:[%s3 + $0x3e8] sm:$0xff]
    %v1368 = vld [vmem:[%s3 + $0x3f0] sm:$0xff]
    %v1369 = vld [vmem:[%s3 + $0x3f8] sm:$0xff]
    %v1370 = vld [vmem:[%s3 + $0x400] sm:$0xff]
    %v1371 = vld [vmem:[%s3 + $0x408] sm:$0xff]
    %v1372 = vld [vmem:[%s3 + $0x410] sm:$0xff]
    %v1373 = vld [vmem:[%s3 + $0x418] sm:$0xff]
    %v1374 = vld [vmem:[%s3 + $0x420] sm:$0xff]
    %v1375 = vld [vmem:[%s3 + $0x428] sm:$0xff]
    %v1376 = vld [vmem:[%s3 + $0x430] sm:$0xff]
    %v1377 = vld [vmem:[%s3 + $0x438] sm:$0xff]
    %v1378 = vld [vmem:[%s3 + $0x440] sm:$0xff]
    %v1379 = vld [vmem:[%s3 + $0x448] sm:$0xff]
    %v1380 = vld [vmem:[%s3 + $0x450] sm:$0xff]
    %v1381 = vld [vmem:[%s3 + $0x458] sm:$0xff]
    %v1382 = vld [vmem:[%s3 + $0x460] sm:$0xff]
    %v1383 = vld [vmem:[%s3 + $0x468] sm:$0xff]
    %v1384 = vld [vmem:[%s3 + $0x470] sm:$0xff]
    %v1385 = vld [vmem:[%s3 + $0x478] sm:$0xff]
    %v1386 = vld [vmem:[%s3 + $0x480] sm:$0xff]
    %v1387 = vld [vmem:[%s3 + $0x488] sm:$0xff]
    %v1388 = vld [vmem:[%s3 + $0x490] sm:$0xff]
    %v1389 = vld [vmem:[%s3 + $0x498] sm:$0xff]
    %v1390 = vld [vmem:[%s3 + $0x4a0] sm:$0xff]
    %v1391 = vld [vmem:[%s3 + $0x4a8] sm:$0xff]
    %v1392 = vld [vmem:[%s3 + $0x4b0] sm:$0xff]
    %v1393 = vld [vmem:[%s3 + $0x4b8] sm:$0xff]
    %v1394 = vld [vmem:[%s3 + $0x4c0] sm:$0xff]
    %v1395 = vld [vmem:[%s3 + $0x4c8] sm:$0xff]
    %v1396 = vld [vmem:[%s3 + $0x4d0] sm:$0xff]
    %v1397 = vld [vmem:[%s3 + $0x4d8] sm:$0xff]
    %v1398 = vld [vmem:[%s3 + $0x4e0] sm:$0xff]
    %v1399 = vld [vmem:[%s3 + $0x4e8] sm:$0xff]
    %v1400 = vld [vmem:[%s3 + $0x4f0] sm:$0xff]
    %v1401 = vld [vmem:[%s3 + $0x4f8] sm:$0xff]
    %v1402 = vld [vmem:[%s4] sm:$0x3]
    %v1404 = vperm.slane %v1402, 0
    %v1405 = vperm.slane %v1402, 1
    %v1568 = vunpack.c.l.b16 %v1242
    %v1569 = vunpack.c.h.b16 %v1242
    %v1570 = vunpack.c.l.b16 %v1243
    %v1571 = vunpack.c.h.b16 %v1243
    %v1572 = vunpack.c.l.b16 %v1244
    %v1573 = vunpack.c.h.b16 %v1244
    %v1574 = vunpack.c.l.b16 %v1245
    %v1575 = vunpack.c.h.b16 %v1245
    %v1576 = vunpack.c.l.b16 %v1246
    %v1577 = vunpack.c.h.b16 %v1246
    %v1578 = vunpack.c.l.b16 %v1247
    %v1579 = vunpack.c.h.b16 %v1247
    %v1580 = vunpack.c.l.b16 %v1248
    %v1581 = vunpack.c.h.b16 %v1248
    %v1582 = vunpack.c.l.b16 %v1249
    %v1583 = vunpack.c.h.b16 %v1249
    %v1584 = vunpack.c.l.b16 %v1250
    %v1585 = vunpack.c.h.b16 %v1250
    %v1586 = vunpack.c.l.b16 %v1251
    %v1587 = vunpack.c.h.b16 %v1251
    %v1588 = vunpack.c.l.b16 %v1252
    %v1589 = vunpack.c.h.b16 %v1252
    %v1590 = vunpack.c.l.b16 %v1253
    %v1591 = vunpack.c.h.b16 %v1253
    %v1592 = vunpack.c.l.b16 %v1254
    %v1593 = vunpack.c.h.b16 %v1254
    %v1594 = vunpack.c.l.b16 %v1255
    %v1595 = vunpack.c.h.b16 %v1255
    %v1596 = vunpack.c.l.b16 %v1256
    %v1597 = vunpack.c.h.b16 %v1256
    %v1598 = vunpack.c.l.b16 %v1257
    %v1599 = vunpack.c.h.b16 %v1257
    %v1600 = vunpack.c.l.b16 %v1258
    %v1601 = vunpack.c.h.b16 %v1258
    %v1602 = vunpack.c.l.b16 %v1259
    %v1603 = vunpack.c.h.b16 %v1259
    %v1604 = vunpack.c.l.b16 %v1260
    %v1605 = vunpack.c.h.b16 %v1260
    %v1606 = vunpack.c.l.b16 %v1261
    %v1607 = vunpack.c.h.b16 %v1261
    %v1608 = vunpack.c.l.b16 %v1262
    %v1609 = vunpack.c.h.b16 %v1262
    %v1610 = vunpack.c.l.b16 %v1263
    %v1611 = vunpack.c.h.b16 %v1263
    %v1612 = vunpack.c.l.b16 %v1264
    %v1613 = vunpack.c.h.b16 %v1264
    %v1614 = vunpack.c.l.b16 %v1265
    %v1615 = vunpack.c.h.b16 %v1265
    %v1616 = vunpack.c.l.b16 %v1266
    %v1617 = vunpack.c.h.b16 %v1266
    %v1618 = vunpack.c.l.b16 %v1267
    %v1619 = vunpack.c.h.b16 %v1267
    %v1620 = vunpack.c.l.b16 %v1268
    %v1621 = vunpack.c.h.b16 %v1268
    %v1622 = vunpack.c.l.b16 %v1269
    %v1623 = vunpack.c.h.b16 %v1269
    %v1624 = vunpack.c.l.b16 %v1270
    %v1625 = vunpack.c.h.b16 %v1270
    %v1626 = vunpack.c.l.b16 %v1271
    %v1627 = vunpack.c.h.b16 %v1271
    %v1628 = vunpack.c.l.b16 %v1272
    %v1629 = vunpack.c.h.b16 %v1272
    %v1630 = vunpack.c.l.b16 %v1273
    %v1631 = vunpack.c.h.b16 %v1273
    %v1632 = vunpack.c.l.b16 %v1274
    %v1633 = vunpack.c.h.b16 %v1274
    %v1634 = vunpack.c.l.b16 %v1275
    %v1635 = vunpack.c.h.b16 %v1275
    %v1636 = vunpack.c.l.b16 %v1276
    %v1637 = vunpack.c.h.b16 %v1276
    %v1638 = vunpack.c.l.b16 %v1277
    %v1639 = vunpack.c.h.b16 %v1277
    %v1640 = vunpack.c.l.b16 %v1278
    %v1641 = vunpack.c.h.b16 %v1278
    %v1642 = vunpack.c.l.b16 %v1279
    %v1643 = vunpack.c.h.b16 %v1279
    %v1644 = vunpack.c.l.b16 %v1280
    %v1645 = vunpack.c.h.b16 %v1280
    %v1646 = vunpack.c.l.b16 %v1281
    %v1647 = vunpack.c.h.b16 %v1281
    %v1648 = vunpack.c.l.b16 %v1282
    %v1649 = vunpack.c.h.b16 %v1282
    %v1650 = vunpack.c.l.b16 %v1283
    %v1651 = vunpack.c.h.b16 %v1283
    %v1652 = vunpack.c.l.b16 %v1284
    %v1653 = vunpack.c.h.b16 %v1284
    %v1654 = vunpack.c.l.b16 %v1285
    %v1655 = vunpack.c.h.b16 %v1285
    %v1656 = vunpack.c.l.b16 %v1286
    %v1657 = vunpack.c.h.b16 %v1286
    %v1658 = vunpack.c.l.b16 %v1287
    %v1659 = vunpack.c.h.b16 %v1287
    %v1660 = vunpack.c.l.b16 %v1288
    %v1661 = vunpack.c.h.b16 %v1288
    %v1662 = vunpack.c.l.b16 %v1289
    %v1663 = vunpack.c.h.b16 %v1289
    %v1664 = vunpack.c.l.b16 %v1290
    %v1665 = vunpack.c.h.b16 %v1290
    %v1666 = vunpack.c.l.b16 %v1291
    %v1667 = vunpack.c.h.b16 %v1291
    %v1668 = vunpack.c.l.b16 %v1292
    %v1669 = vunpack.c.h.b16 %v1292
    %v1670 = vunpack.c.l.b16 %v1293
    %v1671 = vunpack.c.h.b16 %v1293
    %v1672 = vunpack.c.l.b16 %v1294
    %v1673 = vunpack.c.h.b16 %v1294
    %v1674 = vunpack.c.l.b16 %v1295
    %v1675 = vunpack.c.h.b16 %v1295
    %v1676 = vunpack.c.l.b16 %v1296
    %v1677 = vunpack.c.h.b16 %v1296
    %v1678 = vunpack.c.l.b16 %v1297
    %v1679 = vunpack.c.h.b16 %v1297
    %v1680 = vunpack.c.l.b16 %v1298
    %v1681 = vunpack.c.h.b16 %v1298
    %v1682 = vunpack.c.l.b16 %v1299
    %v1683 = vunpack.c.h.b16 %v1299
    %v1684 = vunpack.c.l.b16 %v1300
    %v1685 = vunpack.c.h.b16 %v1300
    %v1686 = vunpack.c.l.b16 %v1301
    %v1687 = vunpack.c.h.b16 %v1301
    %v1688 = vunpack.c.l.b16 %v1302
    %v1689 = vunpack.c.h.b16 %v1302
    %v1690 = vunpack.c.l.b16 %v1303
    %v1691 = vunpack.c.h.b16 %v1303
    %v1692 = vunpack.c.l.b16 %v1304
    %v1693 = vunpack.c.h.b16 %v1304
    %v1694 = vunpack.c.l.b16 %v1305
    %v1695 = vunpack.c.h.b16 %v1305
    %v1696 = vunpack.c.l.b16 %v1306
    %v1697 = vunpack.c.h.b16 %v1306
    %v1698 = vunpack.c.l.b16 %v1307
    %v1699 = vunpack.c.h.b16 %v1307
    %v1700 = vunpack.c.l.b16 %v1308
    %v1701 = vunpack.c.h.b16 %v1308
    %v1702 = vunpack.c.l.b16 %v1309
    %v1703 = vunpack.c.h.b16 %v1309
    %v1704 = vunpack.c.l.b16 %v1310
    %v1705 = vunpack.c.h.b16 %v1310
    %v1706 = vunpack.c.l.b16 %v1311
    %v1707 = vunpack.c.h.b16 %v1311
    %v1708 = vunpack.c.l.b16 %v1312
    %v1709 = vunpack.c.h.b16 %v1312
    %v1710 = vunpack.c.l.b16 %v1313
    %v1711 = vunpack.c.h.b16 %v1313
    %v1712 = vunpack.c.l.b16 %v1314
    %v1713 = vunpack.c.h.b16 %v1314
    %v1714 = vunpack.c.l.b16 %v1315
    %v1715 = vunpack.c.h.b16 %v1315
    %v1716 = vunpack.c.l.b16 %v1316
    %v1717 = vunpack.c.h.b16 %v1316
    %v1718 = vunpack.c.l.b16 %v1317
    %v1719 = vunpack.c.h.b16 %v1317
    %v1720 = vunpack.c.l.b16 %v1318
    %v1721 = vunpack.c.h.b16 %v1318
    %v1722 = vunpack.c.l.b16 %v1319
    %v1723 = vunpack.c.h.b16 %v1319
    %v1724 = vunpack.c.l.b16 %v1320
    %v1725 = vunpack.c.h.b16 %v1320
    %v1726 = vunpack.c.l.b16 %v1321
    %v1727 = vunpack.c.h.b16 %v1321
    %v1728 = vunpack.c.l.b16 %v1322
    %v1729 = vunpack.c.h.b16 %v1322
    %v1730 = vunpack.c.l.b16 %v1323
    %v1731 = vunpack.c.h.b16 %v1323
    %v1732 = vunpack.c.l.b16 %v1324
    %v1733 = vunpack.c.h.b16 %v1324
    %v1734 = vunpack.c.l.b16 %v1325
    %v1735 = vunpack.c.h.b16 %v1325
    %v1736 = vunpack.c.l.b16 %v1326
    %v1737 = vunpack.c.h.b16 %v1326
    %v1738 = vunpack.c.l.b16 %v1327
    %v1739 = vunpack.c.h.b16 %v1327
    %v1740 = vunpack.c.l.b16 %v1328
    %v1741 = vunpack.c.h.b16 %v1328
    %v1742 = vunpack.c.l.b16 %v1329
    %v1743 = vunpack.c.h.b16 %v1329
    %v1744 = vunpack.c.l.b16 %v1330
    %v1745 = vunpack.c.h.b16 %v1330
    %v1746 = vunpack.c.l.b16 %v1331
    %v1747 = vunpack.c.h.b16 %v1331
    %v1748 = vunpack.c.l.b16 %v1332
    %v1749 = vunpack.c.h.b16 %v1332
    %v1750 = vunpack.c.l.b16 %v1333
    %v1751 = vunpack.c.h.b16 %v1333
    %v1752 = vunpack.c.l.b16 %v1334
    %v1753 = vunpack.c.h.b16 %v1334
    %v1754 = vunpack.c.l.b16 %v1335
    %v1755 = vunpack.c.h.b16 %v1335
    %v1756 = vunpack.c.l.b16 %v1336
    %v1757 = vunpack.c.h.b16 %v1336
    %v1758 = vunpack.c.l.b16 %v1337
    %v1759 = vunpack.c.h.b16 %v1337
    %v1760 = vunpack.c.l.b16 %v1338
    %v1761 = vunpack.c.h.b16 %v1338
    %v1762 = vunpack.c.l.b16 %v1339
    %v1763 = vunpack.c.h.b16 %v1339
    %v1764 = vunpack.c.l.b16 %v1340
    %v1765 = vunpack.c.h.b16 %v1340
    %v1766 = vunpack.c.l.b16 %v1341
    %v1767 = vunpack.c.h.b16 %v1341
    %v1768 = vunpack.c.l.b16 %v1342
    %v1769 = vunpack.c.h.b16 %v1342
    %v1770 = vunpack.c.l.b16 %v1343
    %v1771 = vunpack.c.h.b16 %v1343
    %v1772 = vunpack.c.l.b16 %v1344
    %v1773 = vunpack.c.h.b16 %v1344
    %v1774 = vunpack.c.l.b16 %v1345
    %v1775 = vunpack.c.h.b16 %v1345
    %v1776 = vunpack.c.l.b16 %v1346
    %v1777 = vunpack.c.h.b16 %v1346
    %v1778 = vunpack.c.l.b16 %v1347
    %v1779 = vunpack.c.h.b16 %v1347
    %v1780 = vunpack.c.l.b16 %v1348
    %v1781 = vunpack.c.h.b16 %v1348
    %v1782 = vunpack.c.l.b16 %v1349
    %v1783 = vunpack.c.h.b16 %v1349
    %v1784 = vunpack.c.l.b16 %v1350
    %v1785 = vunpack.c.h.b16 %v1350
    %v1786 = vunpack.c.l.b16 %v1351
    %v1787 = vunpack.c.h.b16 %v1351
    %v1788 = vunpack.c.l.b16 %v1352
    %v1789 = vunpack.c.h.b16 %v1352
    %v1790 = vunpack.c.l.b16 %v1353
    %v1791 = vunpack.c.h.b16 %v1353
    %v1792 = vunpack.c.l.b16 %v1354
    %v1793 = vunpack.c.h.b16 %v1354
    %v1794 = vunpack.c.l.b16 %v1355
    %v1795 = vunpack.c.h.b16 %v1355
    %v1796 = vunpack.c.l.b16 %v1356
    %v1797 = vunpack.c.h.b16 %v1356
    %v1798 = vunpack.c.l.b16 %v1357
    %v1799 = vunpack.c.h.b16 %v1357
    %v1800 = vunpack.c.l.b16 %v1358
    %v1801 = vunpack.c.h.b16 %v1358
    %v1802 = vunpack.c.l.b16 %v1359
    %v1803 = vunpack.c.h.b16 %v1359
    %v1804 = vunpack.c.l.b16 %v1360
    %v1805 = vunpack.c.h.b16 %v1360
    %v1806 = vunpack.c.l.b16 %v1361
    %v1807 = vunpack.c.h.b16 %v1361
    %v1808 = vunpack.c.l.b16 %v1362
    %v1809 = vunpack.c.h.b16 %v1362
    %v1810 = vunpack.c.l.b16 %v1363
    %v1811 = vunpack.c.h.b16 %v1363
    %v1812 = vunpack.c.l.b16 %v1364
    %v1813 = vunpack.c.h.b16 %v1364
    %v1814 = vunpack.c.l.b16 %v1365
    %v1815 = vunpack.c.h.b16 %v1365
    %v1816 = vunpack.c.l.b16 %v1366
    %v1817 = vunpack.c.h.b16 %v1366
    %v1818 = vunpack.c.l.b16 %v1367
    %v1819 = vunpack.c.h.b16 %v1367
    %v1820 = vunpack.c.l.b16 %v1368
    %v1821 = vunpack.c.h.b16 %v1368
    %v1822 = vunpack.c.l.b16 %v1369
    %v1823 = vunpack.c.h.b16 %v1369
    %v1824 = vunpack.c.l.b16 %v1370
    %v1825 = vunpack.c.h.b16 %v1370
    %v1826 = vunpack.c.l.b16 %v1371
    %v1827 = vunpack.c.h.b16 %v1371
    %v1828 = vunpack.c.l.b16 %v1372
    %v1829 = vunpack.c.h.b16 %v1372
    %v1830 = vunpack.c.l.b16 %v1373
    %v1831 = vunpack.c.h.b16 %v1373
    %v1832 = vunpack.c.l.b16 %v1374
    %v1833 = vunpack.c.h.b16 %v1374
    %v1834 = vunpack.c.l.b16 %v1375
    %v1835 = vunpack.c.h.b16 %v1375
    %v1836 = vunpack.c.l.b16 %v1376
    %v1837 = vunpack.c.h.b16 %v1376
    %v1838 = vunpack.c.l.b16 %v1377
    %v1839 = vunpack.c.h.b16 %v1377
    %v1840 = vunpack.c.l.b16 %v1378
    %v1841 = vunpack.c.h.b16 %v1378
    %v1842 = vunpack.c.l.b16 %v1379
    %v1843 = vunpack.c.h.b16 %v1379
    %v1844 = vunpack.c.l.b16 %v1380
    %v1845 = vunpack.c.h.b16 %v1380
    %v1846 = vunpack.c.l.b16 %v1381
    %v1847 = vunpack.c.h.b16 %v1381
    %v1848 = vunpack.c.l.b16 %v1382
    %v1849 = vunpack.c.h.b16 %v1382
    %v1850 = vunpack.c.l.b16 %v1383
    %v1851 = vunpack.c.h.b16 %v1383
    %v1852 = vunpack.c.l.b16 %v1384
    %v1853 = vunpack.c.h.b16 %v1384
    %v1854 = vunpack.c.l.b16 %v1385
    %v1855 = vunpack.c.h.b16 %v1385
    %v1856 = vunpack.c.l.b16 %v1386
    %v1857 = vunpack.c.h.b16 %v1386
    %v1858 = vunpack.c.l.b16 %v1387
    %v1859 = vunpack.c.h.b16 %v1387
    %v1860 = vunpack.c.l.b16 %v1388
    %v1861 = vunpack.c.h.b16 %v1388
    %v1862 = vunpack.c.l.b16 %v1389
    %v1863 = vunpack.c.h.b16 %v1389
    %v1864 = vunpack.c.l.b16 %v1390
    %v1865 = vunpack.c.h.b16 %v1390
    %v1866 = vunpack.c.l.b16 %v1391
    %v1867 = vunpack.c.h.b16 %v1391
    %v1868 = vunpack.c.l.b16 %v1392
    %v1869 = vunpack.c.h.b16 %v1392
    %v1870 = vunpack.c.l.b16 %v1393
    %v1871 = vunpack.c.h.b16 %v1393
    %v1872 = vunpack.c.l.b16 %v1394
    %v1873 = vunpack.c.h.b16 %v1394
    %v1874 = vunpack.c.l.b16 %v1395
    %v1875 = vunpack.c.h.b16 %v1395
    %v1876 = vunpack.c.l.b16 %v1396
    %v1877 = vunpack.c.h.b16 %v1396
    %v1878 = vunpack.c.l.b16 %v1397
    %v1879 = vunpack.c.h.b16 %v1397
    %v1880 = vunpack.c.l.b16 %v1398
    %v1881 = vunpack.c.h.b16 %v1398
    %v1882 = vunpack.c.l.b16 %v1399
    %v1883 = vunpack.c.h.b16 %v1399
    %v1884 = vunpack.c.l.b16 %v1400
    %v1885 = vunpack.c.h.b16 %v1400
    %v1886 = vunpack.c.l.b16 %v1401
    %v1887 = vunpack.c.h.b16 %v1401
    %v1888 = vpack.c.b16 %v1570, %v1568
    %v1889 = vpack.c.b16 %v1571, %v1569
    %v1890 = vpack.c.b16 %v1574, %v1572
    %v1891 = vpack.c.b16 %v1575, %v1573
    %v1892 = vpack.c.b16 %v1578, %v1576
    %v1893 = vpack.c.b16 %v1579, %v1577
    %v1894 = vpack.c.b16 %v1582, %v1580
    %v1895 = vpack.c.b16 %v1583, %v1581
    %v1896 = vpack.c.b16 %v1586, %v1584
    %v1897 = vpack.c.b16 %v1587, %v1585
    %v1898 = vpack.c.b16 %v1590, %v1588
    %v1899 = vpack.c.b16 %v1591, %v1589
    %v1900 = vpack.c.b16 %v1594, %v1592
    %v1901 = vpack.c.b16 %v1595, %v1593
    %v1902 = vpack.c.b16 %v1598, %v1596
    %v1903 = vpack.c.b16 %v1599, %v1597
    %v1904 = vpack.c.b16 %v1602, %v1600
    %v1905 = vpack.c.b16 %v1603, %v1601
    %v1906 = vpack.c.b16 %v1606, %v1604
    %v1907 = vpack.c.b16 %v1607, %v1605
    %v1908 = vpack.c.b16 %v1610, %v1608
    %v1909 = vpack.c.b16 %v1611, %v1609
    %v1910 = vpack.c.b16 %v1614, %v1612
    %v1911 = vpack.c.b16 %v1615, %v1613
    %v1912 = vpack.c.b16 %v1618, %v1616
    %v1913 = vpack.c.b16 %v1619, %v1617
    %v1914 = vpack.c.b16 %v1622, %v1620
    %v1915 = vpack.c.b16 %v1623, %v1621
    %v1916 = vpack.c.b16 %v1626, %v1624
    %v1917 = vpack.c.b16 %v1627, %v1625
    %v1918 = vpack.c.b16 %v1630, %v1628
    %v1919 = vpack.c.b16 %v1631, %v1629
    %v1920 = vpack.c.b16 %v1634, %v1632
    %v1921 = vpack.c.b16 %v1635, %v1633
    %v1922 = vpack.c.b16 %v1638, %v1636
    %v1923 = vpack.c.b16 %v1639, %v1637
    %v1924 = vpack.c.b16 %v1642, %v1640
    %v1925 = vpack.c.b16 %v1643, %v1641
    %v1926 = vpack.c.b16 %v1646, %v1644
    %v1927 = vpack.c.b16 %v1647, %v1645
    %v1928 = vpack.c.b16 %v1650, %v1648
    %v1929 = vpack.c.b16 %v1651, %v1649
    %v1930 = vpack.c.b16 %v1654, %v1652
    %v1931 = vpack.c.b16 %v1655, %v1653
    %v1932 = vpack.c.b16 %v1658, %v1656
    %v1933 = vpack.c.b16 %v1659, %v1657
    %v1934 = vpack.c.b16 %v1662, %v1660
    %v1935 = vpack.c.b16 %v1663, %v1661
    %v1936 = vpack.c.b16 %v1666, %v1664
    %v1937 = vpack.c.b16 %v1667, %v1665
    %v1938 = vpack.c.b16 %v1670, %v1668
    %v1939 = vpack.c.b16 %v1671, %v1669
    %v1940 = vpack.c.b16 %v1674, %v1672
    %v1941 = vpack.c.b16 %v1675, %v1673
    %v1942 = vpack.c.b16 %v1678, %v1676
    %v1943 = vpack.c.b16 %v1679, %v1677
    %v1944 = vpack.c.b16 %v1682, %v1680
    %v1945 = vpack.c.b16 %v1683, %v1681
    %v1946 = vpack.c.b16 %v1686, %v1684
    %v1947 = vpack.c.b16 %v1687, %v1685
    %v1948 = vpack.c.b16 %v1690, %v1688
    %v1949 = vpack.c.b16 %v1691, %v1689
    %v1950 = vpack.c.b16 %v1694, %v1692
    %v1951 = vpack.c.b16 %v1695, %v1693
    %v1952 = vpack.c.b16 %v1698, %v1696
    %v1953 = vpack.c.b16 %v1699, %v1697
    %v1954 = vpack.c.b16 %v1702, %v1700
    %v1955 = vpack.c.b16 %v1703, %v1701
    %v1956 = vpack.c.b16 %v1706, %v1704
    %v1957 = vpack.c.b16 %v1707, %v1705
    %v1958 = vpack.c.b16 %v1710, %v1708
    %v1959 = vpack.c.b16 %v1711, %v1709
    %v1960 = vpack.c.b16 %v1714, %v1712
    %v1961 = vpack.c.b16 %v1715, %v1713
    %v1962 = vpack.c.b16 %v1718, %v1716
    %v1963 = vpack.c.b16 %v1719, %v1717
    %v1964 = vpack.c.b16 %v1722, %v1720
    %v1965 = vpack.c.b16 %v1723, %v1721
    %v1966 = vpack.c.b16 %v1726, %v1724
    %v1967 = vpack.c.b16 %v1727, %v1725
    %v1968 = vpack.c.b16 %v1730, %v1728
    %v1969 = vpack.c.b16 %v1731, %v1729
    %v1970 = vpack.c.b16 %v1734, %v1732
    %v1971 = vpack.c.b16 %v1735, %v1733
    %v1972 = vpack.c.b16 %v1738, %v1736
    %v1973 = vpack.c.b16 %v1739, %v1737
    %v1974 = vpack.c.b16 %v1742, %v1740
    %v1975 = vpack.c.b16 %v1743, %v1741
    %v1976 = vpack.c.b16 %v1746, %v1744
    %v1977 = vpack.c.b16 %v1747, %v1745
    %v1978 = vpack.c.b16 %v1750, %v1748
    %v1979 = vpack.c.b16 %v1751, %v1749
    %v1980 = vpack.c.b16 %v1754, %v1752
    %v1981 = vpack.c.b16 %v1755, %v1753
    %v1982 = vpack.c.b16 %v1758, %v1756
    %v1983 = vpack.c.b16 %v1759, %v1757
    %v1984 = vpack.c.b16 %v1762, %v1760
    %v1985 = vpack.c.b16 %v1763, %v1761
    %v1986 = vpack.c.b16 %v1766, %v1764
    %v1987 = vpack.c.b16 %v1767, %v1765
    %v1988 = vpack.c.b16 %v1770, %v1768
    %v1989 = vpack.c.b16 %v1771, %v1769
    %v1990 = vpack.c.b16 %v1774, %v1772
    %v1991 = vpack.c.b16 %v1775, %v1773
    %v1992 = vpack.c.b16 %v1778, %v1776
    %v1993 = vpack.c.b16 %v1779, %v1777
    %v1994 = vpack.c.b16 %v1782, %v1780
    %v1995 = vpack.c.b16 %v1783, %v1781
    %v1996 = vpack.c.b16 %v1786, %v1784
    %v1997 = vpack.c.b16 %v1787, %v1785
    %v1998 = vpack.c.b16 %v1790, %v1788
    %v1999 = vpack.c.b16 %v1791, %v1789
    %v2000 = vpack.c.b16 %v1794, %v1792
    %v2001 = vpack.c.b16 %v1795, %v1793
    %v2002 = vpack.c.b16 %v1798, %v1796
    %v2003 = vpack.c.b16 %v1799, %v1797
    %v2004 = vpack.c.b16 %v1802, %v1800
    %v2005 = vpack.c.b16 %v1803, %v1801
    %v2006 = vpack.c.b16 %v1806, %v1804
    %v2007 = vpack.c.b16 %v1807, %v1805
    %v2008 = vpack.c.b16 %v1810, %v1808
    %v2009 = vpack.c.b16 %v1811, %v1809
    %v2010 = vpack.c.b16 %v1814, %v1812
    %v2011 = vpack.c.b16 %v1815, %v1813
    %v2012 = vpack.c.b16 %v1818, %v1816
    %v2013 = vpack.c.b16 %v1819, %v1817
    %v2014 = vpack.c.b16 %v1822, %v1820
    %v2015 = vpack.c.b16 %v1823, %v1821
    %v2016 = vpack.c.b16 %v1826, %v1824
    %v2017 = vpack.c.b16 %v1827, %v1825
    %v2018 = vpack.c.b16 %v1830, %v1828
    %v2019 = vpack.c.b16 %v1831, %v1829
    %v2020 = vpack.c.b16 %v1834, %v1832
    %v2021 = vpack.c.b16 %v1835, %v1833
    %v2022 = vpack.c.b16 %v1838, %v1836
    %v2023 = vpack.c.b16 %v1839, %v1837
    %v2024 = vpack.c.b16 %v1842, %v1840
    %v2025 = vpack.c.b16 %v1843, %v1841
    %v2026 = vpack.c.b16 %v1846, %v1844
    %v2027 = vpack.c.b16 %v1847, %v1845
    %v2028 = vpack.c.b16 %v1850, %v1848
    %v2029 = vpack.c.b16 %v1851, %v1849
    %v2030 = vpack.c.b16 %v1854, %v1852
    %v2031 = vpack.c.b16 %v1855, %v1853
    %v2032 = vpack.c.b16 %v1858, %v1856
    %v2033 = vpack.c.b16 %v1859, %v1857
    %v2034 = vpack.c.b16 %v1862, %v1860
    %v2035 = vpack.c.b16 %v1863, %v1861
    %v2036 = vpack.c.b16 %v1866, %v1864
    %v2037 = vpack.c.b16 %v1867, %v1865
    %v2038 = vpack.c.b16 %v1870, %v1868
    %v2039 = vpack.c.b16 %v1871, %v1869
    %v2040 = vpack.c.b16 %v1874, %v1872
    %v2041 = vpack.c.b16 %v1875, %v1873
    %v2042 = vpack.c.b16 %v1878, %v1876
    %v2043 = vpack.c.b16 %v1879, %v1877
    %v2044 = vpack.c.b16 %v1882, %v1880
    %v2045 = vpack.c.b16 %v1883, %v1881
    %v2046 = vpack.c.b16 %v1886, %v1884
    %v2047 = vpack.c.b16 %v1887, %v1885
    %2208 = vmatpush.bf16.msra.mxu0 %v1902
    %2209 = vmatpush.bf16.msra.mxu0 %v1900
    %2210 = vmatpush.bf16.msra.mxu0 %v1898
    %2211 = vmatpush.bf16.msra.mxu0 %v1896
    %2212 = vmatpush.bf16.msra.mxu0 %v1894
    %2213 = vmatpush.bf16.msra.mxu0 %v1892
    %2214 = vmatpush.bf16.msra.mxu0 %v1890
    %2215 = vmatpush.bf16.msra.mxu0 %v1888
    %2216 = vmatmul.bf16.gmra.mxu0 %v1212
    %v2217 = vpop.f32.mrf.mxu0
    %v2218 = vadd.f32 %v1404, %v2217
    %v2219 = vpop.f32.mrf.mxu0
    %v2220 = vadd.f32 %v1404, %v2219
    %2221 = vmatmul.bf16.gmra.mxu0 %v1222
    %v2222 = vpop.f32.mrf.mxu0
    %v2223 = vadd.f32 %v1404, %v2222
    %v2224 = vpop.f32.mrf.mxu0
    %v2225 = vadd.f32 %v1404, %v2224
    %2226 = vmatmul.bf16.gmra.mxu0 %v1232
    %v2227 = vpop.f32.mrf.mxu0
    %v2228 = vadd.f32 %v1404, %v2227
    %v2229 = vpop.f32.mrf.mxu0
    %2230 = vdwg.mxu0
    %2231 = vmatpush.bf16.msra.mxu0 %v1918
    %2232 = vmatpush.bf16.msra.mxu0 %v1916
    %2233 = vmatpush.bf16.msra.mxu0 %v1914
    %2234 = vmatpush.bf16.msra.mxu0 %v1912
    %2235 = vmatpush.bf16.msra.mxu0 %v1910
    %2236 = vmatpush.bf16.msra.mxu0 %v1908
    %2237 = vmatpush.bf16.msra.mxu0 %v1906
    %2238 = vmatpush.bf16.msra.mxu0 %v1904
    %2239 = vmatmul.bf16.gmra.mxu0 %v1213
    %v2240 = vpop.f32.mrf.mxu0
    %v2241 = vadd.f32 %v2218, %v2240
    %v2242 = vpop.f32.mrf.mxu0
    %v2243 = vadd.f32 %v2220, %v2242
    %2244 = vmatmul.bf16.gmra.mxu0 %v1223
    %v2245 = vpop.f32.mrf.mxu0
    %v2246 = vadd.f32 %v2223, %v2245
    %v2247 = vpop.f32.mrf.mxu0
    %v2248 = vadd.f32 %v2225, %v2247
    %2249 = vmatmul.bf16.gmra.mxu0 %v1233
    %v2250 = vpop.f32.mrf.mxu0
    %v2251 = vadd.f32 %v2228, %v2250
    %v2252 = vpop.f32.mrf.mxu0
    %2253 = vdwg.mxu0
    %2254 = vmatpush.bf16.msra.mxu0 %v1934
    %2255 = vmatpush.bf16.msra.mxu0 %v1932
    %2256 = vmatpush.bf16.msra.mxu0 %v1930
    %2257 = vmatpush.bf16.msra.mxu0 %v1928
    %2258 = vmatpush.bf16.msra.mxu0 %v1926
    %2259 = vmatpush.bf16.msra.mxu0 %v1924
    %2260 = vmatpush.bf16.msra.mxu0 %v1922
    %2261 = vmatpush.bf16.msra.mxu0 %v1920
    %2262 = vmatmul.bf16.gmra.mxu0 %v1214
    %v2263 = vpop.f32.mrf.mxu0
    %v2264 = vadd.f32 %v2241, %v2263
    %v2265 = vpop.f32.mrf.mxu0
    %v2266 = vadd.f32 %v2243, %v2265
    %2267 = vmatmul.bf16.gmra.mxu0 %v1224
    %v2268 = vpop.f32.mrf.mxu0
    %v2269 = vadd.f32 %v2246, %v2268
    %v2270 = vpop.f32.mrf.mxu0
    %v2271 = vadd.f32 %v2248, %v2270
    %2272 = vmatmul.bf16.gmra.mxu0 %v1234
    %v2273 = vpop.f32.mrf.mxu0
    %v2274 = vadd.f32 %v2251, %v2273
    %v2275 = vpop.f32.mrf.mxu0
    %2276 = vdwg.mxu0
    %2277 = vmatpush.bf16.msra.mxu0 %v1950
    %2278 = vmatpush.bf16.msra.mxu0 %v1948
    %2279 = vmatpush.bf16.msra.mxu0 %v1946
    %2280 = vmatpush.bf16.msra.mxu0 %v1944
    %2281 = vmatpush.bf16.msra.mxu0 %v1942
    %2282 = vmatpush.bf16.msra.mxu0 %v1940
    %2283 = vmatpush.bf16.msra.mxu0 %v1938
    %2284 = vmatpush.bf16.msra.mxu0 %v1936
    %2285 = vmatmul.bf16.gmra.mxu0 %v1215
    %v2286 = vpop.f32.mrf.mxu0
    %v2287 = vadd.f32 %v2264, %v2286
    %v2288 = vpop.f32.mrf.mxu0
    %v2289 = vadd.f32 %v2266, %v2288
    %2290 = vmatmul.bf16.gmra.mxu0 %v1225
    %v2291 = vpop.f32.mrf.mxu0
    %v2292 = vadd.f32 %v2269, %v2291
    %v2293 = vpop.f32.mrf.mxu0
    %v2294 = vadd.f32 %v2271, %v2293
    %2295 = vmatmul.bf16.gmra.mxu0 %v1235
    %v2296 = vpop.f32.mrf.mxu0
    %v2297 = vadd.f32 %v2274, %v2296
    %v2298 = vpop.f32.mrf.mxu0
    %2299 = vdwg.mxu0
    %2300 = vmatpush.bf16.msra.mxu0 %v1966
    %2301 = vmatpush.bf16.msra.mxu0 %v1964
    %2302 = vmatpush.bf16.msra.mxu0 %v1962
    %2303 = vmatpush.bf16.msra.mxu0 %v1960
    %2304 = vmatpush.bf16.msra.mxu0 %v1958
    %2305 = vmatpush.bf16.msra.mxu0 %v1956
    %2306 = vmatpush.bf16.msra.mxu0 %v1954
    %2307 = vmatpush.bf16.msra.mxu0 %v1952
    %2308 = vmatmul.bf16.gmra.mxu0 %v1216
    %v2309 = vpop.f32.mrf.mxu0
    %v2310 = vadd.f32 %v2287, %v2309
    %v2311 = vpop.f32.mrf.mxu0
    %v2312 = vadd.f32 %v2289, %v2311
    %2313 = vmatmul.bf16.gmra.mxu0 %v1226
    %v2314 = vpop.f32.mrf.mxu0
    %v2315 = vadd.f32 %v2292, %v2314
    %v2316 = vpop.f32.mrf.mxu0
    %v2317 = vadd.f32 %v2294, %v2316
    %2318 = vmatmul.bf16.gmra.mxu0 %v1236
    %v2319 = vpop.f32.mrf.mxu0
    %v2320 = vadd.f32 %v2297, %v2319
    %v2321 = vpop.f32.mrf.mxu0
    %2322 = vdwg.mxu0
    %2323 = vmatpush.bf16.msra.mxu0 %v1982
    %2324 = vmatpush.bf16.msra.mxu0 %v1980
    %2325 = vmatpush.bf16.msra.mxu0 %v1978
    %2326 = vmatpush.bf16.msra.mxu0 %v1976
    %2327 = vmatpush.bf16.msra.mxu0 %v1974
    %2328 = vmatpush.bf16.msra.mxu0 %v1972
    %2329 = vmatpush.bf16.msra.mxu0 %v1970
    %2330 = vmatpush.bf16.msra.mxu0 %v1968
    %2331 = vmatmul.bf16.gmra.mxu0 %v1217
    %v2332 = vpop.f32.mrf.mxu0
    %v2333 = vadd.f32 %v2310, %v2332
    %v2334 = vpop.f32.mrf.mxu0
    %v2335 = vadd.f32 %v2312, %v2334
    %2336 = vmatmul.bf16.gmra.mxu0 %v1227
    %v2337 = vpop.f32.mrf.mxu0
    %v2338 = vadd.f32 %v2315, %v2337
    %v2339 = vpop.f32.mrf.mxu0
    %v2340 = vadd.f32 %v2317, %v2339
    %2341 = vmatmul.bf16.gmra.mxu0 %v1237
    %v2342 = vpop.f32.mrf.mxu0
    %v2343 = vadd.f32 %v2320, %v2342
    %v2344 = vpop.f32.mrf.mxu0
    %2345 = vdwg.mxu0
    %2346 = vmatpush.bf16.msra.mxu0 %v1998
    %2347 = vmatpush.bf16.msra.mxu0 %v1996
    %2348 = vmatpush.bf16.msra.mxu0 %v1994
    %2349 = vmatpush.bf16.msra.mxu0 %v1992
    %2350 = vmatpush.bf16.msra.mxu0 %v1990
    %2351 = vmatpush.bf16.msra.mxu0 %v1988
    %2352 = vmatpush.bf16.msra.mxu0 %v1986
    %2353 = vmatpush.bf16.msra.mxu0 %v1984
    %2354 = vmatmul.bf16.gmra.mxu0 %v1218
    %v2355 = vpop.f32.mrf.mxu0
    %v2356 = vadd.f32 %v2333, %v2355
    %v2357 = vpop.f32.mrf.mxu0
    %v2358 = vadd.f32 %v2335, %v2357
    %2359 = vmatmul.bf16.gmra.mxu0 %v1228
    %v2360 = vpop.f32.mrf.mxu0
    %v2361 = vadd.f32 %v2338, %v2360
    %v2362 = vpop.f32.mrf.mxu0
    %v2363 = vadd.f32 %v2340, %v2362
    %2364 = vmatmul.bf16.gmra.mxu0 %v1238
    %v2365 = vpop.f32.mrf.mxu0
    %v2366 = vadd.f32 %v2343, %v2365
    %v2367 = vpop.f32.mrf.mxu0
    %2368 = vdwg.mxu0
    %2369 = vmatpush.bf16.msra.mxu0 %v2014
    %2370 = vmatpush.bf16.msra.mxu0 %v2012
    %2371 = vmatpush.bf16.msra.mxu0 %v2010
    %2372 = vmatpush.bf16.msra.mxu0 %v2008
    %2373 = vmatpush.bf16.msra.mxu0 %v2006
    %2374 = vmatpush.bf16.msra.mxu0 %v2004
    %2375 = vmatpush.bf16.msra.mxu0 %v2002
    %2376 = vmatpush.bf16.msra.mxu0 %v2000
    %2377 = vmatmul.bf16.gmra.mxu0 %v1219
    %v2378 = vpop.f32.mrf.mxu0
    %v2379 = vadd.f32 %v2356, %v2378
    %v2380 = vpop.f32.mrf.mxu0
    %v2381 = vadd.f32 %v2358, %v2380
    %2382 = vmatmul.bf16.gmra.mxu0 %v1229
    %v2383 = vpop.f32.mrf.mxu0
    %v2384 = vadd.f32 %v2361, %v2383
    %v2385 = vpop.f32.mrf.mxu0
    %v2386 = vadd.f32 %v2363, %v2385
    %2387 = vmatmul.bf16.gmra.mxu0 %v1239
    %v2388 = vpop.f32.mrf.mxu0
    %v2389 = vadd.f32 %v2366, %v2388
    %v2390 = vpop.f32.mrf.mxu0
    %2391 = vdwg.mxu0
    %2392 = vmatpush.bf16.msra.mxu0 %v2030
    %2393 = vmatpush.bf16.msra.mxu0 %v2028
    %2394 = vmatpush.bf16.msra.mxu0 %v2026
    %2395 = vmatpush.bf16.msra.mxu0 %v2024
    %2396 = vmatpush.bf16.msra.mxu0 %v2022
    %2397 = vmatpush.bf16.msra.mxu0 %v2020
    %2398 = vmatpush.bf16.msra.mxu0 %v2018
    %2399 = vmatpush.bf16.msra.mxu0 %v2016
    %2400 = vmatmul.bf16.gmra.mxu0 %v1220
    %v2401 = vpop.f32.mrf.mxu0
    %v2402 = vadd.f32 %v2379, %v2401
    %v2403 = vpop.f32.mrf.mxu0
    %v2404 = vadd.f32 %v2381, %v2403
    %2405 = vmatmul.bf16.gmra.mxu0 %v1230
    %v2406 = vpop.f32.mrf.mxu0
    %v2407 = vadd.f32 %v2384, %v2406
    %v2408 = vpop.f32.mrf.mxu0
    %v2409 = vadd.f32 %v2386, %v2408
    %2410 = vmatmul.bf16.gmra.mxu0 %v1240
    %v2411 = vpop.f32.mrf.mxu0
    %v2412 = vadd.f32 %v2389, %v2411
    %v2413 = vpop.f32.mrf.mxu0
    %2414 = vdwg.mxu0
    %2415 = vmatpush.bf16.msra.mxu0 %v2046
    %2416 = vmatpush.bf16.msra.mxu0 %v2044
    %2417 = vmatpush.bf16.msra.mxu0 %v2042
    %2418 = vmatpush.bf16.msra.mxu0 %v2040
    %2419 = vmatpush.bf16.msra.mxu0 %v2038
    %2420 = vmatpush.bf16.msra.mxu0 %v2036
    %2421 = vmatpush.bf16.msra.mxu0 %v2034
    %2422 = vmatpush.bf16.msra.mxu0 %v2032
    %2423 = vmatmul.bf16.gmra.mxu0 %v1221
    %v2424 = vpop.f32.mrf.mxu0
    %v2425 = vadd.f32 %v2402, %v2424
    %v2426 = vpop.f32.mrf.mxu0
    %v2427 = vadd.f32 %v2404, %v2426
    %2428 = vmatmul.bf16.gmra.mxu0 %v1231
    %v2429 = vpop.f32.mrf.mxu0
    %v2430 = vadd.f32 %v2407, %v2429
    %v2431 = vpop.f32.mrf.mxu0
    %v2432 = vadd.f32 %v2409, %v2431
    %2433 = vmatmul.bf16.gmra.mxu0 %v1241
    %v2434 = vpop.f32.mrf.mxu0
    %v2435 = vadd.f32 %v2412, %v2434
    %v2436 = vpop.f32.mrf.mxu0
    %2437 = vdwg.mxu0
    %2438 = vmatpush.bf16.msra.mxu0 %v1903
    %2439 = vmatpush.bf16.msra.mxu0 %v1901
    %2440 = vmatpush.bf16.msra.mxu0 %v1899
    %2441 = vmatpush.bf16.msra.mxu0 %v1897
    %2442 = vmatpush.bf16.msra.mxu0 %v1895
    %2443 = vmatpush.bf16.msra.mxu0 %v1893
    %2444 = vmatpush.bf16.msra.mxu0 %v1891
    %2445 = vmatpush.bf16.msra.mxu0 %v1889
    %2446 = vmatmul.bf16.gmra.mxu0 %v1212
    %v2447 = vpop.f32.mrf.mxu0
    %v2448 = vadd.f32 %v1405, %v2447
    %v2449 = vpop.f32.mrf.mxu0
    %v2450 = vadd.f32 %v1405, %v2449
    %2451 = vmatmul.bf16.gmra.mxu0 %v1222
    %v2452 = vpop.f32.mrf.mxu0
    %v2453 = vadd.f32 %v1405, %v2452
    %v2454 = vpop.f32.mrf.mxu0
    %v2455 = vadd.f32 %v1405, %v2454
    %2456 = vmatmul.bf16.gmra.mxu0 %v1232
    %v2457 = vpop.f32.mrf.mxu0
    %v2458 = vadd.f32 %v1405, %v2457
    %v2459 = vpop.f32.mrf.mxu0
    %2460 = vdwg.mxu0
    %2461 = vmatpush.bf16.msra.mxu0 %v1919
    %2462 = vmatpush.bf16.msra.mxu0 %v1917
    %2463 = vmatpush.bf16.msra.mxu0 %v1915
    %2464 = vmatpush.bf16.msra.mxu0 %v1913
    %2465 = vmatpush.bf16.msra.mxu0 %v1911
    %2466 = vmatpush.bf16.msra.mxu0 %v1909
    %2467 = vmatpush.bf16.msra.mxu0 %v1907
    %2468 = vmatpush.bf16.msra.mxu0 %v1905
    %2469 = vmatmul.bf16.gmra.mxu0 %v1213
    %v2470 = vpop.f32.mrf.mxu0
    %v2471 = vadd.f32 %v2448, %v2470
    %v2472 = vpop.f32.mrf.mxu0
    %v2473 = vadd.f32 %v2450, %v2472
    %2474 = vmatmul.bf16.gmra.mxu0 %v1223
    %v2475 = vpop.f32.mrf.mxu0
    %v2476 = vadd.f32 %v2453, %v2475
    %v2477 = vpop.f32.mrf.mxu0
    %v2478 = vadd.f32 %v2455, %v2477
    %2479 = vmatmul.bf16.gmra.mxu0 %v1233
    %v2480 = vpop.f32.mrf.mxu0
    %v2481 = vadd.f32 %v2458, %v2480
    %v2482 = vpop.f32.mrf.mxu0
    %2483 = vdwg.mxu0
    %2484 = vmatpush.bf16.msra.mxu0 %v1935
    %2485 = vmatpush.bf16.msra.mxu0 %v1933
    %2486 = vmatpush.bf16.msra.mxu0 %v1931
    %2487 = vmatpush.bf16.msra.mxu0 %v1929
    %2488 = vmatpush.bf16.msra.mxu0 %v1927
    %2489 = vmatpush.bf16.msra.mxu0 %v1925
    %2490 = vmatpush.bf16.msra.mxu0 %v1923
    %2491 = vmatpush.bf16.msra.mxu0 %v1921
    %2492 = vmatmul.bf16.gmra.mxu0 %v1214
    %v2493 = vpop.f32.mrf.mxu0
    %v2494 = vadd.f32 %v2471, %v2493
    %v2495 = vpop.f32.mrf.mxu0
    %v2496 = vadd.f32 %v2473, %v2495
    %2497 = vmatmul.bf16.gmra.mxu0 %v1224
    %v2498 = vpop.f32.mrf.mxu0
    %v2499 = vadd.f32 %v2476, %v2498
    %v2500 = vpop.f32.mrf.mxu0
    %v2501 = vadd.f32 %v2478, %v2500
    %2502 = vmatmul.bf16.gmra.mxu0 %v1234
    %v2503 = vpop.f32.mrf.mxu0
    %v2504 = vadd.f32 %v2481, %v2503
    %v2505 = vpop.f32.mrf.mxu0
    %2506 = vdwg.mxu0
    %2507 = vmatpush.bf16.msra.mxu0 %v1951
    %2508 = vmatpush.bf16.msra.mxu0 %v1949
    %2509 = vmatpush.bf16.msra.mxu0 %v1947
    %2510 = vmatpush.bf16.msra.mxu0 %v1945
    %2511 = vmatpush.bf16.msra.mxu0 %v1943
    %2512 = vmatpush.bf16.msra.mxu0 %v1941
    %2513 = vmatpush.bf16.msra.mxu0 %v1939
    %2514 = vmatpush.bf16.msra.mxu0 %v1937
    %2515 = vmatmul.bf16.gmra.mxu0 %v1215
    %v2516 = vpop.f32.mrf.mxu0
    %v2517 = vadd.f32 %v2494, %v2516
    %v2518 = vpop.f32.mrf.mxu0
    %v2519 = vadd.f32 %v2496, %v2518
    %2520 = vmatmul.bf16.gmra.mxu0 %v1225
    %v2521 = vpop.f32.mrf.mxu0
    %v2522 = vadd.f32 %v2499, %v2521
    %v2523 = vpop.f32.mrf.mxu0
    %v2524 = vadd.f32 %v2501, %v2523
    %2525 = vmatmul.bf16.gmra.mxu0 %v1235
    %v2526 = vpop.f32.mrf.mxu0
    %v2527 = vadd.f32 %v2504, %v2526
    %v2528 = vpop.f32.mrf.mxu0
    %2529 = vdwg.mxu0
    %2530 = vmatpush.bf16.msra.mxu0 %v1967
    %2531 = vmatpush.bf16.msra.mxu0 %v1965
    %2532 = vmatpush.bf16.msra.mxu0 %v1963
    %2533 = vmatpush.bf16.msra.mxu0 %v1961
    %2534 = vmatpush.bf16.msra.mxu0 %v1959
    %2535 = vmatpush.bf16.msra.mxu0 %v1957
    %2536 = vmatpush.bf16.msra.mxu0 %v1955
    %2537 = vmatpush.bf16.msra.mxu0 %v1953
    %2538 = vmatmul.bf16.gmra.mxu0 %v1216
    %v2539 = vpop.f32.mrf.mxu0
    %v2540 = vadd.f32 %v2517, %v2539
    %v2541 = vpop.f32.mrf.mxu0
    %v2542 = vadd.f32 %v2519, %v2541
    %2543 = vmatmul.bf16.gmra.mxu0 %v1226
    %v2544 = vpop.f32.mrf.mxu0
    %v2545 = vadd.f32 %v2522, %v2544
    %v2546 = vpop.f32.mrf.mxu0
    %v2547 = vadd.f32 %v2524, %v2546
    %2548 = vmatmul.bf16.gmra.mxu0 %v1236
    %v2549 = vpop.f32.mrf.mxu0
    %v2550 = vadd.f32 %v2527, %v2549
    %v2551 = vpop.f32.mrf.mxu0
    %2552 = vdwg.mxu0
    %2553 = vmatpush.bf16.msra.mxu0 %v1983
    %2554 = vmatpush.bf16.msra.mxu0 %v1981
    %2555 = vmatpush.bf16.msra.mxu0 %v1979
    %2556 = vmatpush.bf16.msra.mxu0 %v1977
    %2557 = vmatpush.bf16.msra.mxu0 %v1975
    %2558 = vmatpush.bf16.msra.mxu0 %v1973
    %2559 = vmatpush.bf16.msra.mxu0 %v1971
    %2560 = vmatpush.bf16.msra.mxu0 %v1969
    %2561 = vmatmul.bf16.gmra.mxu0 %v1217
    %v2562 = vpop.f32.mrf.mxu0
    %v2563 = vadd.f32 %v2540, %v2562
    %v2564 = vpop.f32.mrf.mxu0
    %v2565 = vadd.f32 %v2542, %v2564
    %2566 = vmatmul.bf16.gmra.mxu0 %v1227
    %v2567 = vpop.f32.mrf.mxu0
    %v2568 = vadd.f32 %v2545, %v2567
    %v2569 = vpop.f32.mrf.mxu0
    %v2570 = vadd.f32 %v2547, %v2569
    %2571 = vmatmul.bf16.gmra.mxu0 %v1237
    %v2572 = vpop.f32.mrf.mxu0
    %v2573 = vadd.f32 %v2550, %v2572
    %v2574 = vpop.f32.mrf.mxu0
    %2575 = vdwg.mxu0
    %2576 = vmatpush.bf16.msra.mxu0 %v1999
    %2577 = vmatpush.bf16.msra.mxu0 %v1997
    %2578 = vmatpush.bf16.msra.mxu0 %v1995
    %2579 = vmatpush.bf16.msra.mxu0 %v1993
    %2580 = vmatpush.bf16.msra.mxu0 %v1991
    %2581 = vmatpush.bf16.msra.mxu0 %v1989
    %2582 = vmatpush.bf16.msra.mxu0 %v1987
    %2583 = vmatpush.bf16.msra.mxu0 %v1985
    %2584 = vmatmul.bf16.gmra.mxu0 %v1218
    %v2585 = vpop.f32.mrf.mxu0
    %v2586 = vadd.f32 %v2563, %v2585
    %v2587 = vpop.f32.mrf.mxu0
    %v2588 = vadd.f32 %v2565, %v2587
    %2589 = vmatmul.bf16.gmra.mxu0 %v1228
    %v2590 = vpop.f32.mrf.mxu0
    %v2591 = vadd.f32 %v2568, %v2590
    %v2592 = vpop.f32.mrf.mxu0
    %v2593 = vadd.f32 %v2570, %v2592
    %2594 = vmatmul.bf16.gmra.mxu0 %v1238
    %v2595 = vpop.f32.mrf.mxu0
    %v2596 = vadd.f32 %v2573, %v2595
    %v2597 = vpop.f32.mrf.mxu0
    %2598 = vdwg.mxu0
    %2599 = vmatpush.bf16.msra.mxu0 %v2015
    %2600 = vmatpush.bf16.msra.mxu0 %v2013
    %2601 = vmatpush.bf16.msra.mxu0 %v2011
    %2602 = vmatpush.bf16.msra.mxu0 %v2009
    %2603 = vmatpush.bf16.msra.mxu0 %v2007
    %2604 = vmatpush.bf16.msra.mxu0 %v2005
    %2605 = vmatpush.bf16.msra.mxu0 %v2003
    %2606 = vmatpush.bf16.msra.mxu0 %v2001
    %2607 = vmatmul.bf16.gmra.mxu0 %v1219
    %v2608 = vpop.f32.mrf.mxu0
    %v2609 = vadd.f32 %v2586, %v2608
    %v2610 = vpop.f32.mrf.mxu0
    %v2611 = vadd.f32 %v2588, %v2610
    %2612 = vmatmul.bf16.gmra.mxu0 %v1229
    %v2613 = vpop.f32.mrf.mxu0
    %v2614 = vadd.f32 %v2591, %v2613
    %v2615 = vpop.f32.mrf.mxu0
    %v2616 = vadd.f32 %v2593, %v2615
    %2617 = vmatmul.bf16.gmra.mxu0 %v1239
    %v2618 = vpop.f32.mrf.mxu0
    %v2619 = vadd.f32 %v2596, %v2618
    %v2620 = vpop.f32.mrf.mxu0
    %2621 = vdwg.mxu0
    %2622 = vmatpush.bf16.msra.mxu0 %v2031
    %2623 = vmatpush.bf16.msra.mxu0 %v2029
    %2624 = vmatpush.bf16.msra.mxu0 %v2027
    %2625 = vmatpush.bf16.msra.mxu0 %v2025
    %2626 = vmatpush.bf16.msra.mxu0 %v2023
    %2627 = vmatpush.bf16.msra.mxu0 %v2021
    %2628 = vmatpush.bf16.msra.mxu0 %v2019
    %2629 = vmatpush.bf16.msra.mxu0 %v2017
    %2630 = vmatmul.bf16.gmra.mxu0 %v1220
    %v2631 = vpop.f32.mrf.mxu0
    %v2632 = vadd.f32 %v2609, %v2631
    %v2633 = vpop.f32.mrf.mxu0
    %v2634 = vadd.f32 %v2611, %v2633
    %2635 = vmatmul.bf16.gmra.mxu0 %v1230
    %v2636 = vpop.f32.mrf.mxu0
    %v2637 = vadd.f32 %v2614, %v2636
    %v2638 = vpop.f32.mrf.mxu0
    %v2639 = vadd.f32 %v2616, %v2638
    %2640 = vmatmul.bf16.gmra.mxu0 %v1240
    %v2641 = vpop.f32.mrf.mxu0
    %v2642 = vadd.f32 %v2619, %v2641
    %v2643 = vpop.f32.mrf.mxu0
    %2644 = vdwg.mxu0
    %2645 = vmatpush.bf16.msra.mxu0 %v2047
    %2646 = vmatpush.bf16.msra.mxu0 %v2045
    %2647 = vmatpush.bf16.msra.mxu0 %v2043
    %2648 = vmatpush.bf16.msra.mxu0 %v2041
    %2649 = vmatpush.bf16.msra.mxu0 %v2039
    %2650 = vmatpush.bf16.msra.mxu0 %v2037
    %2651 = vmatpush.bf16.msra.mxu0 %v2035
    %2652 = vmatpush.bf16.msra.mxu0 %v2033
    %2653 = vmatmul.bf16.gmra.mxu0 %v1221
    %v2654 = vpop.f32.mrf.mxu0
    %v2655 = vadd.f32 %v2632, %v2654
    %v2656 = vpop.f32.mrf.mxu0
    %v2657 = vadd.f32 %v2634, %v2656
    %2658 = vmatmul.bf16.gmra.mxu0 %v1231
    %v2659 = vpop.f32.mrf.mxu0
    %v2660 = vadd.f32 %v2637, %v2659
    %v2661 = vpop.f32.mrf.mxu0
    %v2662 = vadd.f32 %v2639, %v2661
    %2663 = vmatmul.bf16.gmra.mxu0 %v1241
    %v2664 = vpop.f32.mrf.mxu0
    %v2665 = vadd.f32 %v2642, %v2664
    %v2666 = vpop.f32.mrf.mxu0
    %2667 = vdwg.mxu0
    %v2668 = vmax.f32 %v2425, 0.0
    %v2669 = vmax.f32 %v2655, 0.0
    %v2670 = vmax.f32 %v2427, 0.0
    %v2671 = vmax.f32 %v2657, 0.0
    %v2672 = vmax.f32 %v2430, 0.0
    %v2673 = vmax.f32 %v2660, 0.0
    %v2674 = vmax.f32 %v2432, 0.0
    %v2675 = vmax.f32 %v2662, 0.0
    %v2676 = vmax.f32 %v2435, 0.0
    %v2677 = vmax.f32 %v2665, 0.0
    %2678 = vst [vmem:[#allocation3] sm:$0xff] %v2668
    %2679 = vst [vmem:[#allocation3 + $0x8] sm:$0xff] %v2669
    %2680 = vst [vmem:[#allocation3 + $0x10] sm:$0xff] %v2670
    %2681 = vst [vmem:[#allocation3 + $0x18] sm:$0xff] %v2671
    %2682 = vst [vmem:[#allocation3 + $0x20] sm:$0xff] %v2672
    %2683 = vst [vmem:[#allocation3 + $0x28] sm:$0xff] %v2673
    %2684 = vst [vmem:[#allocation3 + $0x30] sm:$0xff] %v2674
    %2685 = vst [vmem:[#allocation3 + $0x38] sm:$0xff] %v2675
    %2686 = vst [vmem:[#allocation3 + $0x40] sm:$0xff] %v2676
    %2687 = vst [vmem:[#allocation3 + $0x48] sm:$0xff] %v2677
    %v2688 = vld [vmem:[#allocation3] sm:$0xff]
    %v2689 = vld [vmem:[#allocation3 + $0x8] sm:$0xff]
    %v2690 = vld [vmem:[#allocation3 + $0x10] sm:$0xff]
    %v2691 = vld [vmem:[#allocation3 + $0x18] sm:$0xff]
    %v2692 = vld [vmem:[#allocation3 + $0x20] sm:$0xff]
    %v2693 = vld [vmem:[#allocation3 + $0x28] sm:$0xff]
    %v2694 = vld [vmem:[#allocation3 + $0x30] sm:$0xff]
    %v2695 = vld [vmem:[#allocation3 + $0x38] sm:$0xff]
    %v2696 = vld [vmem:[#allocation3 + $0x40] sm:$0xff]
    %v2697 = vld [vmem:[#allocation3 + $0x48] sm:$0xff]
    %v2698 = vpack.c.bf16 %v2688, %v2688
    %v2699 = vpack.c.bf16 %v2689, %v2689
    %v2700 = vpack.c.bf16 %v2690, %v2690
    %v2701 = vpack.c.bf16 %v2691, %v2691
    %v2702 = vpack.c.bf16 %v2692, %v2692
    %v2703 = vpack.c.bf16 %v2693, %v2693
    %v2704 = vpack.c.bf16 %v2694, %v2694
    %v2705 = vpack.c.bf16 %v2695, %v2695
    %v2706 = vpack.c.bf16 %v2696, %v2696
    %v2707 = vpack.c.bf16 %v2697, %v2697
    %v2708 = vld [vmem:[#allocation7] sm:$0xf]
    %v2709 = vld [vmem:[#allocation7 + $0x4] sm:$0xf]
    %v2710 = vld [vmem:[#allocation7 + $0x8] sm:$0xf]
    %v2711 = vld [vmem:[#allocation7 + $0xc] sm:$0xf]
    %v2712 = vld [vmem:[#allocation7 + $0x10] sm:$0xf]
    %v2713 = vld [vmem:[#allocation7 + $0x14] sm:$0xf]
    %v2714 = vld [vmem:[#allocation7 + $0x18] sm:$0xf]
    %v2715 = vld [vmem:[#allocation7 + $0x1c] sm:$0xf]
    %v2716 = vld [vmem:[#allocation7 + $0x20] sm:$0xf]
    %v2717 = vld [vmem:[#allocation7 + $0x24] sm:$0xf]
    %v2718 = vld [vmem:[#allocation7 + $0x28] sm:$0xf]
    %v2719 = vld [vmem:[#allocation7 + $0x2c] sm:$0xf]
    %v2720 = vld [vmem:[#allocation7 + $0x30] sm:$0xf]
    %v2721 = vld [vmem:[#allocation7 + $0x34] sm:$0xf]
    %v2722 = vld [vmem:[#allocation7 + $0x38] sm:$0xf]
    %v2723 = vld [vmem:[#allocation7 + $0x3c] sm:$0xf]
    %v2724 = vld [vmem:[#allocation7 + $0x40] sm:$0xf]
    %v2725 = vld [vmem:[#allocation7 + $0x44] sm:$0xf]
    %v2726 = vld [vmem:[#allocation7 + $0x48] sm:$0xf]
    %v2727 = vld [vmem:[#allocation7 + $0x4c] sm:$0xf]
    %v2728 = vld [vmem:[#allocation7 + $0x50] sm:$0xf]
    %v2729 = vld [vmem:[#allocation7 + $0x54] sm:$0xf]
    %v2730 = vld [vmem:[#allocation7 + $0x58] sm:$0xf]
    %v2731 = vld [vmem:[#allocation7 + $0x5c] sm:$0xf]
    %v2732 = vld [vmem:[#allocation7 + $0x60] sm:$0xf]
    %v2733 = vld [vmem:[#allocation7 + $0x64] sm:$0xf]
    %v2734 = vld [vmem:[#allocation7 + $0x68] sm:$0xf]
    %v2735 = vld [vmem:[#allocation7 + $0x6c] sm:$0xf]
    %v2736 = vld [vmem:[#allocation7 + $0x70] sm:$0xf]
    %v2737 = vld [vmem:[#allocation7 + $0x74] sm:$0xf]
    %v2738 = vld [vmem:[#allocation7 + $0x78] sm:$0xf]
    %v2739 = vld [vmem:[#allocation7 + $0x7c] sm:$0xf]
    %v2740 = vld [vmem:[#allocation7 + $0x80] sm:$0xf]
    %v2741 = vld [vmem:[#allocation7 + $0x84] sm:$0xf]
    %v2742 = vld [vmem:[#allocation7 + $0x88] sm:$0xf]
    %v2743 = vld [vmem:[#allocation7 + $0x8c] sm:$0xf]
    %v2744 = vld [vmem:[#allocation7 + $0x90] sm:$0xf]
    %v2745 = vld [vmem:[#allocation7 + $0x94] sm:$0xf]
    %v2746 = vld [vmem:[#allocation7 + $0x98] sm:$0xf]
    %v2747 = vld [vmem:[#allocation7 + $0x9c] sm:$0xf]
    %v2748 = vld [vmem:[#allocation7 + $0xa0] sm:$0xf]
    %v2749 = vld [vmem:[#allocation7 + $0xa4] sm:$0xf]
    %v2750 = vld [vmem:[#allocation7 + $0xa8] sm:$0xf]
    %v2751 = vld [vmem:[#allocation7 + $0xac] sm:$0xf]
    %v2752 = vld [vmem:[#allocation7 + $0xb0] sm:$0xf]
    %v2753 = vld [vmem:[#allocation7 + $0xb4] sm:$0xf]
    %v2754 = vld [vmem:[#allocation7 + $0xb8] sm:$0xf]
    %v2755 = vld [vmem:[#allocation7 + $0xbc] sm:$0xf]
    %v2756 = vld [vmem:[#allocation7 + $0xc0] sm:$0xf]
    %v2757 = vld [vmem:[#allocation7 + $0xc4] sm:$0xf]
    %v2758 = vld [vmem:[#allocation7 + $0xc8] sm:$0xf]
    %v2759 = vld [vmem:[#allocation7 + $0xcc] sm:$0xf]
    %v2760 = vld [vmem:[#allocation7 + $0xd0] sm:$0xf]
    %v2761 = vld [vmem:[#allocation7 + $0xd4] sm:$0xf]
    %v2762 = vld [vmem:[#allocation7 + $0xd8] sm:$0xf]
    %v2763 = vld [vmem:[#allocation7 + $0xdc] sm:$0xf]
    %v2764 = vld [vmem:[#allocation7 + $0xe0] sm:$0xf]
    %v2765 = vld [vmem:[#allocation7 + $0xe4] sm:$0xf]
    %v2766 = vld [vmem:[#allocation7 + $0xe8] sm:$0xf]
    %v2767 = vld [vmem:[#allocation7 + $0xec] sm:$0xf]
    %v2768 = vld [vmem:[#allocation7 + $0xf0] sm:$0xf]
    %v2769 = vld [vmem:[#allocation7 + $0xf4] sm:$0xf]
    %v2770 = vld [vmem:[#allocation7 + $0xf8] sm:$0xf]
    %v2771 = vld [vmem:[#allocation7 + $0xfc] sm:$0xf]
    %v2772 = vld [vmem:[#allocation7 + $0x100] sm:$0xf]
    %v2773 = vld [vmem:[#allocation7 + $0x104] sm:$0xf]
    %v2774 = vld [vmem:[#allocation7 + $0x108] sm:$0xf]
    %v2775 = vld [vmem:[#allocation7 + $0x10c] sm:$0xf]
    %v2776 = vld [vmem:[#allocation7 + $0x110] sm:$0xf]
    %v2777 = vld [vmem:[#allocation7 + $0x114] sm:$0xf]
    %v2778 = vld [vmem:[#allocation7 + $0x118] sm:$0xf]
    %v2779 = vld [vmem:[#allocation7 + $0x11c] sm:$0xf]
    %v2780 = vld [vmem:[#allocation7 + $0x120] sm:$0xf]
    %v2781 = vld [vmem:[#allocation7 + $0x124] sm:$0xf]
    %v2782 = vld [vmem:[#allocation7 + $0x128] sm:$0xf]
    %v2783 = vld [vmem:[#allocation7 + $0x12c] sm:$0xf]
    %v2784 = vld [vmem:[#allocation7 + $0x130] sm:$0xf]
    %v2785 = vld [vmem:[#allocation7 + $0x134] sm:$0xf]
    %v2786 = vld [vmem:[#allocation7 + $0x138] sm:$0xf]
    %v2787 = vld [vmem:[#allocation7 + $0x13c] sm:$0xf]
    %v2788 = vld [vmem:[#allocation7 + $0x140] sm:$0xf]
    %v2789 = vld [vmem:[#allocation7 + $0x144] sm:$0xf]
    %v2790 = vld [vmem:[#allocation7 + $0x148] sm:$0xf]
    %v2791 = vld [vmem:[#allocation7 + $0x14c] sm:$0xf]
    %v2792 = vld [vmem:[#allocation7 + $0x150] sm:$0xf]
    %v2793 = vld [vmem:[#allocation7 + $0x154] sm:$0xf]
    %v2794 = vld [vmem:[#allocation7 + $0x158] sm:$0xf]
    %v2795 = vld [vmem:[#allocation7 + $0x15c] sm:$0xf]
    %v2796 = vld [vmem:[#allocation7 + $0x160] sm:$0xf]
    %v2797 = vld [vmem:[#allocation7 + $0x164] sm:$0xf]
    %v2798 = vld [vmem:[#allocation7 + $0x168] sm:$0xf]
    %v2799 = vld [vmem:[#allocation7 + $0x16c] sm:$0xf]
    %v2800 = vld [vmem:[#allocation7 + $0x170] sm:$0xf]
    %v2801 = vld [vmem:[#allocation7 + $0x174] sm:$0xf]
    %v2802 = vld [vmem:[#allocation7 + $0x178] sm:$0xf]
    %v2803 = vld [vmem:[#allocation7 + $0x17c] sm:$0xf]
    %v2804 = vld [vmem:[#allocation7 + $0x180] sm:$0xf]
    %v2805 = vld [vmem:[#allocation7 + $0x184] sm:$0xf]
    %v2806 = vld [vmem:[#allocation7 + $0x188] sm:$0xf]
    %v2807 = vld [vmem:[#allocation7 + $0x18c] sm:$0xf]
    %v2808 = vld [vmem:[#allocation7 + $0x190] sm:$0xf]
    %v2809 = vld [vmem:[#allocation7 + $0x194] sm:$0xf]
    %v2810 = vld [vmem:[#allocation7 + $0x198] sm:$0xf]
    %v2811 = vld [vmem:[#allocation7 + $0x19c] sm:$0xf]
    %v2812 = vld [vmem:[#allocation7 + $0x1a0] sm:$0xf]
    %v2813 = vld [vmem:[#allocation7 + $0x1a4] sm:$0xf]
    %v2814 = vld [vmem:[#allocation7 + $0x1a8] sm:$0xf]
    %v2815 = vld [vmem:[#allocation7 + $0x1ac] sm:$0xf]
    %v2816 = vld [vmem:[#allocation7 + $0x1b0] sm:$0xf]
    %v2817 = vld [vmem:[#allocation7 + $0x1b4] sm:$0xf]
    %v2818 = vld [vmem:[#allocation7 + $0x1b8] sm:$0xf]
    %v2819 = vld [vmem:[#allocation7 + $0x1bc] sm:$0xf]
    %v2820 = vld [vmem:[#allocation7 + $0x1c0] sm:$0xf]
    %v2821 = vld [vmem:[#allocation7 + $0x1c4] sm:$0xf]
    %v2822 = vld [vmem:[#allocation7 + $0x1c8] sm:$0xf]
    %v2823 = vld [vmem:[#allocation7 + $0x1cc] sm:$0xf]
    %v2824 = vld [vmem:[#allocation7 + $0x1d0] sm:$0xf]
    %v2825 = vld [vmem:[#allocation7 + $0x1d4] sm:$0xf]
    %v2826 = vld [vmem:[#allocation7 + $0x1d8] sm:$0xf]
    %v2827 = vld [vmem:[#allocation7 + $0x1dc] sm:$0xf]
    %v2828 = vld [vmem:[#allocation7 + $0x1e0] sm:$0xf]
    %v2829 = vld [vmem:[#allocation7 + $0x1e4] sm:$0xf]
    %v2830 = vld [vmem:[#allocation7 + $0x1e8] sm:$0xf]
    %v2831 = vld [vmem:[#allocation7 + $0x1ec] sm:$0xf]
    %v2832 = vld [vmem:[#allocation7 + $0x1f0] sm:$0xf]
    %v2833 = vld [vmem:[#allocation7 + $0x1f4] sm:$0xf]
    %v2834 = vld [vmem:[#allocation7 + $0x1f8] sm:$0xf]
    %v2835 = vld [vmem:[#allocation7 + $0x1fc] sm:$0xf]
    %v2836 = vld [vmem:[#allocation7 + $0x200] sm:$0xf]
    %v2837 = vld [vmem:[#allocation7 + $0x204] sm:$0xf]
    %v2838 = vld [vmem:[#allocation7 + $0x208] sm:$0xf]
    %v2839 = vld [vmem:[#allocation7 + $0x20c] sm:$0xf]
    %v2840 = vld [vmem:[#allocation7 + $0x210] sm:$0xf]
    %v2841 = vld [vmem:[#allocation7 + $0x214] sm:$0xf]
    %v2842 = vld [vmem:[#allocation7 + $0x218] sm:$0xf]
    %v2843 = vld [vmem:[#allocation7 + $0x21c] sm:$0xf]
    %v2844 = vld [vmem:[#allocation7 + $0x220] sm:$0xf]
    %v2845 = vld [vmem:[#allocation7 + $0x224] sm:$0xf]
    %v2846 = vld [vmem:[#allocation7 + $0x228] sm:$0xf]
    %v2847 = vld [vmem:[#allocation7 + $0x22c] sm:$0xf]
    %v2848 = vld [vmem:[#allocation7 + $0x230] sm:$0xf]
    %v2849 = vld [vmem:[#allocation7 + $0x234] sm:$0xf]
    %v2850 = vld [vmem:[#allocation7 + $0x238] sm:$0xf]
    %v2851 = vld [vmem:[#allocation7 + $0x23c] sm:$0xf]
    %v2852 = vld [vmem:[#allocation7 + $0x240] sm:$0xf]
    %v2853 = vld [vmem:[#allocation7 + $0x244] sm:$0xf]
    %v2854 = vld [vmem:[#allocation7 + $0x248] sm:$0xf]
    %v2855 = vld [vmem:[#allocation7 + $0x24c] sm:$0xf]
    %v2856 = vld [vmem:[#allocation7 + $0x250] sm:$0xf]
    %v2857 = vld [vmem:[#allocation7 + $0x254] sm:$0xf]
    %v2858 = vld [vmem:[#allocation7 + $0x258] sm:$0xf]
    %v2859 = vld [vmem:[#allocation7 + $0x25c] sm:$0xf]
    %v2860 = vld [vmem:[#allocation7 + $0x260] sm:$0xf]
    %v2861 = vld [vmem:[#allocation7 + $0x264] sm:$0xf]
    %v2862 = vld [vmem:[#allocation7 + $0x268] sm:$0xf]
    %v2863 = vld [vmem:[#allocation7 + $0x26c] sm:$0xf]
    %v2864 = vld [vmem:[#allocation7 + $0x270] sm:$0xf]
    %v2865 = vld [vmem:[#allocation7 + $0x274] sm:$0xf]
    %v2866 = vld [vmem:[#allocation7 + $0x278] sm:$0xf]
    %v2867 = vld [vmem:[#allocation7 + $0x27c] sm:$0xf]
    %v2868 = vld [vmem:[%s6] sm:$0x1]
    %v2870 = vperm.slane %v2868, 0
    %v3032 = vunpack.c.l.b16 %v2708
    %v3033 = vunpack.c.l.b16 %v2709
    %v3034 = vunpack.c.l.b16 %v2710
    %v3035 = vunpack.c.l.b16 %v2711
    %v3036 = vunpack.c.l.b16 %v2712
    %v3037 = vunpack.c.l.b16 %v2713
    %v3038 = vunpack.c.l.b16 %v2714
    %v3039 = vunpack.c.l.b16 %v2715
    %v3040 = vunpack.c.l.b16 %v2716
    %v3041 = vunpack.c.l.b16 %v2717
    %v3042 = vunpack.c.l.b16 %v2718
    %v3043 = vunpack.c.l.b16 %v2719
    %v3044 = vunpack.c.l.b16 %v2720
    %v3045 = vunpack.c.l.b16 %v2721
    %v3046 = vunpack.c.l.b16 %v2722
    %v3047 = vunpack.c.l.b16 %v2723
    %v3048 = vunpack.c.l.b16 %v2724
    %v3049 = vunpack.c.l.b16 %v2725
    %v3050 = vunpack.c.l.b16 %v2726
    %v3051 = vunpack.c.l.b16 %v2727
    %v3052 = vunpack.c.l.b16 %v2728
    %v3053 = vunpack.c.l.b16 %v2729
    %v3054 = vunpack.c.l.b16 %v2730
    %v3055 = vunpack.c.l.b16 %v2731
    %v3056 = vunpack.c.l.b16 %v2732
    %v3057 = vunpack.c.l.b16 %v2733
    %v3058 = vunpack.c.l.b16 %v2734
    %v3059 = vunpack.c.l.b16 %v2735
    %v3060 = vunpack.c.l.b16 %v2736
    %v3061 = vunpack.c.l.b16 %v2737
    %v3062 = vunpack.c.l.b16 %v2738
    %v3063 = vunpack.c.l.b16 %v2739
    %v3064 = vunpack.c.l.b16 %v2740
    %v3065 = vunpack.c.l.b16 %v2741
    %v3066 = vunpack.c.l.b16 %v2742
    %v3067 = vunpack.c.l.b16 %v2743
    %v3068 = vunpack.c.l.b16 %v2744
    %v3069 = vunpack.c.l.b16 %v2745
    %v3070 = vunpack.c.l.b16 %v2746
    %v3071 = vunpack.c.l.b16 %v2747
    %v3072 = vunpack.c.l.b16 %v2748
    %v3073 = vunpack.c.l.b16 %v2749
    %v3074 = vunpack.c.l.b16 %v2750
    %v3075 = vunpack.c.l.b16 %v2751
    %v3076 = vunpack.c.l.b16 %v2752
    %v3077 = vunpack.c.l.b16 %v2753
    %v3078 = vunpack.c.l.b16 %v2754
    %v3079 = vunpack.c.l.b16 %v2755
    %v3080 = vunpack.c.l.b16 %v2756
    %v3081 = vunpack.c.l.b16 %v2757
    %v3082 = vunpack.c.l.b16 %v2758
    %v3083 = vunpack.c.l.b16 %v2759
    %v3084 = vunpack.c.l.b16 %v2760
    %v3085 = vunpack.c.l.b16 %v2761
    %v3086 = vunpack.c.l.b16 %v2762
    %v3087 = vunpack.c.l.b16 %v2763
    %v3088 = vunpack.c.l.b16 %v2764
    %v3089 = vunpack.c.l.b16 %v2765
    %v3090 = vunpack.c.l.b16 %v2766
    %v3091 = vunpack.c.l.b16 %v2767
    %v3092 = vunpack.c.l.b16 %v2768
    %v3093 = vunpack.c.l.b16 %v2769
    %v3094 = vunpack.c.l.b16 %v2770
    %v3095 = vunpack.c.l.b16 %v2771
    %v3096 = vunpack.c.l.b16 %v2772
    %v3097 = vunpack.c.l.b16 %v2773
    %v3098 = vunpack.c.l.b16 %v2774
    %v3099 = vunpack.c.l.b16 %v2775
    %v3100 = vunpack.c.l.b16 %v2776
    %v3101 = vunpack.c.l.b16 %v2777
    %v3102 = vunpack.c.l.b16 %v2778
    %v3103 = vunpack.c.l.b16 %v2779
    %v3104 = vunpack.c.l.b16 %v2780
    %v3105 = vunpack.c.l.b16 %v2781
    %v3106 = vunpack.c.l.b16 %v2782
    %v3107 = vunpack.c.l.b16 %v2783
    %v3108 = vunpack.c.l.b16 %v2784
    %v3109 = vunpack.c.l.b16 %v2785
    %v3110 = vunpack.c.l.b16 %v2786
    %v3111 = vunpack.c.l.b16 %v2787
    %v3112 = vunpack.c.l.b16 %v2788
    %v3113 = vunpack.c.l.b16 %v2789
    %v3114 = vunpack.c.l.b16 %v2790
    %v3115 = vunpack.c.l.b16 %v2791
    %v3116 = vunpack.c.l.b16 %v2792
    %v3117 = vunpack.c.l.b16 %v2793
    %v3118 = vunpack.c.l.b16 %v2794
    %v3119 = vunpack.c.l.b16 %v2795
    %v3120 = vunpack.c.l.b16 %v2796
    %v3121 = vunpack.c.l.b16 %v2797
    %v3122 = vunpack.c.l.b16 %v2798
    %v3123 = vunpack.c.l.b16 %v2799
    %v3124 = vunpack.c.l.b16 %v2800
    %v3125 = vunpack.c.l.b16 %v2801
    %v3126 = vunpack.c.l.b16 %v2802
    %v3127 = vunpack.c.l.b16 %v2803
    %v3128 = vunpack.c.l.b16 %v2804
    %v3129 = vunpack.c.l.b16 %v2805
    %v3130 = vunpack.c.l.b16 %v2806
    %v3131 = vunpack.c.l.b16 %v2807
    %v3132 = vunpack.c.l.b16 %v2808
    %v3133 = vunpack.c.l.b16 %v2809
    %v3134 = vunpack.c.l.b16 %v2810
    %v3135 = vunpack.c.l.b16 %v2811
    %v3136 = vunpack.c.l.b16 %v2812
    %v3137 = vunpack.c.l.b16 %v2813
    %v3138 = vunpack.c.l.b16 %v2814
    %v3139 = vunpack.c.l.b16 %v2815
    %v3140 = vunpack.c.l.b16 %v2816
    %v3141 = vunpack.c.l.b16 %v2817
    %v3142 = vunpack.c.l.b16 %v2818
    %v3143 = vunpack.c.l.b16 %v2819
    %v3144 = vunpack.c.l.b16 %v2820
    %v3145 = vunpack.c.l.b16 %v2821
    %v3146 = vunpack.c.l.b16 %v2822
    %v3147 = vunpack.c.l.b16 %v2823
    %v3148 = vunpack.c.l.b16 %v2824
    %v3149 = vunpack.c.l.b16 %v2825
    %v3150 = vunpack.c.l.b16 %v2826
    %v3151 = vunpack.c.l.b16 %v2827
    %v3152 = vunpack.c.l.b16 %v2828
    %v3153 = vunpack.c.l.b16 %v2829
    %v3154 = vunpack.c.l.b16 %v2830
    %v3155 = vunpack.c.l.b16 %v2831
    %v3156 = vunpack.c.l.b16 %v2832
    %v3157 = vunpack.c.l.b16 %v2833
    %v3158 = vunpack.c.l.b16 %v2834
    %v3159 = vunpack.c.l.b16 %v2835
    %v3160 = vunpack.c.l.b16 %v2836
    %v3161 = vunpack.c.l.b16 %v2837
    %v3162 = vunpack.c.l.b16 %v2838
    %v3163 = vunpack.c.l.b16 %v2839
    %v3164 = vunpack.c.l.b16 %v2840
    %v3165 = vunpack.c.l.b16 %v2841
    %v3166 = vunpack.c.l.b16 %v2842
    %v3167 = vunpack.c.l.b16 %v2843
    %v3168 = vunpack.c.l.b16 %v2844
    %v3169 = vunpack.c.l.b16 %v2845
    %v3170 = vunpack.c.l.b16 %v2846
    %v3171 = vunpack.c.l.b16 %v2847
    %v3172 = vunpack.c.l.b16 %v2848
    %v3173 = vunpack.c.l.b16 %v2849
    %v3174 = vunpack.c.l.b16 %v2850
    %v3175 = vunpack.c.l.b16 %v2851
    %v3176 = vunpack.c.l.b16 %v2852
    %v3177 = vunpack.c.l.b16 %v2853
    %v3178 = vunpack.c.l.b16 %v2854
    %v3179 = vunpack.c.l.b16 %v2855
    %v3180 = vunpack.c.l.b16 %v2856
    %v3181 = vunpack.c.l.b16 %v2857
    %v3182 = vunpack.c.l.b16 %v2858
    %v3183 = vunpack.c.l.b16 %v2859
    %v3184 = vunpack.c.l.b16 %v2860
    %v3185 = vunpack.c.l.b16 %v2861
    %v3186 = vunpack.c.l.b16 %v2862
    %v3187 = vunpack.c.l.b16 %v2863
    %v3188 = vunpack.c.l.b16 %v2864
    %v3189 = vunpack.c.l.b16 %v2865
    %v3190 = vunpack.c.l.b16 %v2866
    %v3191 = vunpack.c.l.b16 %v2867
    %v3192 = vpack.c.b16 %v3033, %v3032
    %v3193 = vpack.c.b16 %v3035, %v3034
    %v3194 = vpack.c.b16 %v3037, %v3036
    %v3195 = vpack.c.b16 %v3039, %v3038
    %v3196 = vpack.c.b16 %v3041, %v3040
    %v3197 = vpack.c.b16 %v3043, %v3042
    %v3198 = vpack.c.b16 %v3045, %v3044
    %v3199 = vpack.c.b16 %v3047, %v3046
    %v3200 = vpack.c.b16 %v3049, %v3048
    %v3201 = vpack.c.b16 %v3051, %v3050
    %v3202 = vpack.c.b16 %v3053, %v3052
    %v3203 = vpack.c.b16 %v3055, %v3054
    %v3204 = vpack.c.b16 %v3057, %v3056
    %v3205 = vpack.c.b16 %v3059, %v3058
    %v3206 = vpack.c.b16 %v3061, %v3060
    %v3207 = vpack.c.b16 %v3063, %v3062
    %v3208 = vpack.c.b16 %v3065, %v3064
    %v3209 = vpack.c.b16 %v3067, %v3066
    %v3210 = vpack.c.b16 %v3069, %v3068
    %v3211 = vpack.c.b16 %v3071, %v3070
    %v3212 = vpack.c.b16 %v3073, %v3072
    %v3213 = vpack.c.b16 %v3075, %v3074
    %v3214 = vpack.c.b16 %v3077, %v3076
    %v3215 = vpack.c.b16 %v3079, %v3078
    %v3216 = vpack.c.b16 %v3081, %v3080
    %v3217 = vpack.c.b16 %v3083, %v3082
    %v3218 = vpack.c.b16 %v3085, %v3084
    %v3219 = vpack.c.b16 %v3087, %v3086
    %v3220 = vpack.c.b16 %v3089, %v3088
    %v3221 = vpack.c.b16 %v3091, %v3090
    %v3222 = vpack.c.b16 %v3093, %v3092
    %v3223 = vpack.c.b16 %v3095, %v3094
    %v3224 = vpack.c.b16 %v3097, %v3096
    %v3225 = vpack.c.b16 %v3099, %v3098
    %v3226 = vpack.c.b16 %v3101, %v3100
    %v3227 = vpack.c.b16 %v3103, %v3102
    %v3228 = vpack.c.b16 %v3105, %v3104
    %v3229 = vpack.c.b16 %v3107, %v3106
    %v3230 = vpack.c.b16 %v3109, %v3108
    %v3231 = vpack.c.b16 %v3111, %v3110
    %v3232 = vpack.c.b16 %v3113, %v3112
    %v3233 = vpack.c.b16 %v3115, %v3114
    %v3234 = vpack.c.b16 %v3117, %v3116
    %v3235 = vpack.c.b16 %v3119, %v3118
    %v3236 = vpack.c.b16 %v3121, %v3120
    %v3237 = vpack.c.b16 %v3123, %v3122
    %v3238 = vpack.c.b16 %v3125, %v3124
    %v3239 = vpack.c.b16 %v3127, %v3126
    %v3240 = vpack.c.b16 %v3129, %v3128
    %v3241 = vpack.c.b16 %v3131, %v3130
    %v3242 = vpack.c.b16 %v3133, %v3132
    %v3243 = vpack.c.b16 %v3135, %v3134
    %v3244 = vpack.c.b16 %v3137, %v3136
    %v3245 = vpack.c.b16 %v3139, %v3138
    %v3246 = vpack.c.b16 %v3141, %v3140
    %v3247 = vpack.c.b16 %v3143, %v3142
    %v3248 = vpack.c.b16 %v3145, %v3144
    %v3249 = vpack.c.b16 %v3147, %v3146
    %v3250 = vpack.c.b16 %v3149, %v3148
    %v3251 = vpack.c.b16 %v3151, %v3150
    %v3252 = vpack.c.b16 %v3153, %v3152
    %v3253 = vpack.c.b16 %v3155, %v3154
    %v3254 = vpack.c.b16 %v3157, %v3156
    %v3255 = vpack.c.b16 %v3159, %v3158
    %v3256 = vpack.c.b16 %v3161, %v3160
    %v3257 = vpack.c.b16 %v3163, %v3162
    %v3258 = vpack.c.b16 %v3165, %v3164
    %v3259 = vpack.c.b16 %v3167, %v3166
    %v3260 = vpack.c.b16 %v3169, %v3168
    %v3261 = vpack.c.b16 %v3171, %v3170
    %v3262 = vpack.c.b16 %v3173, %v3172
    %v3263 = vpack.c.b16 %v3175, %v3174
    %v3264 = vpack.c.b16 %v3177, %v3176
    %v3265 = vpack.c.b16 %v3179, %v3178
    %v3266 = vpack.c.b16 %v3181, %v3180
    %v3267 = vpack.c.b16 %v3183, %v3182
    %v3268 = vpack.c.b16 %v3185, %v3184
    %v3269 = vpack.c.b16 %v3187, %v3186
    %v3270 = vpack.c.b16 %v3189, %v3188
    %v3271 = vpack.c.b16 %v3191, %v3190
    %3352 = vmatpush.bf16.msra.mxu0 %v3199
    %3353 = vmatpush.bf16.msra.mxu0 %v3198
    %3354 = vmatpush.bf16.msra.mxu0 %v3197
    %3355 = vmatpush.bf16.msra.mxu0 %v3196
    %3356 = vmatpush.bf16.msra.mxu0 %v3195
    %3357 = vmatpush.bf16.msra.mxu0 %v3194
    %3358 = vmatpush.bf16.msra.mxu0 %v3193
    %3359 = vmatpush.bf16.msra.mxu0 %v3192
    %3360 = vmatmul.bf16.gmra.mxu0 %v2698
    %v3361 = vpop.f32.mrf.mxu0
    %v3362 = vadd.f32 %v2870, %v3361
    %v3363 = vpop.f32.mrf.mxu0
    %3364 = vdwg.mxu0
    %3365 = vmatpush.bf16.msra.mxu0 %v3207
    %3366 = vmatpush.bf16.msra.mxu0 %v3206
    %3367 = vmatpush.bf16.msra.mxu0 %v3205
    %3368 = vmatpush.bf16.msra.mxu0 %v3204
    %3369 = vmatpush.bf16.msra.mxu0 %v3203
    %3370 = vmatpush.bf16.msra.mxu0 %v3202
    %3371 = vmatpush.bf16.msra.mxu0 %v3201
    %3372 = vmatpush.bf16.msra.mxu0 %v3200
    %3373 = vmatmul.bf16.gmra.mxu0 %v2699
    %v3374 = vpop.f32.mrf.mxu0
    %v3375 = vadd.f32 %v3362, %v3374
    %v3376 = vpop.f32.mrf.mxu0
    %3377 = vdwg.mxu0
    %3378 = vmatpush.bf16.msra.mxu0 %v3215
    %3379 = vmatpush.bf16.msra.mxu0 %v3214
    %3380 = vmatpush.bf16.msra.mxu0 %v3213
    %3381 = vmatpush.bf16.msra.mxu0 %v3212
    %3382 = vmatpush.bf16.msra.mxu0 %v3211
    %3383 = vmatpush.bf16.msra.mxu0 %v3210
    %3384 = vmatpush.bf16.msra.mxu0 %v3209
    %3385 = vmatpush.bf16.msra.mxu0 %v3208
    %3386 = vmatmul.bf16.gmra.mxu0 %v2700
    %v3387 = vpop.f32.mrf.mxu0
    %v3388 = vadd.f32 %v3375, %v3387
    %v3389 = vpop.f32.mrf.mxu0
    %3390 = vdwg.mxu0
    %3391 = vmatpush.bf16.msra.mxu0 %v3223
    %3392 = vmatpush.bf16.msra.mxu0 %v3222
    %3393 = vmatpush.bf16.msra.mxu0 %v3221
    %3394 = vmatpush.bf16.msra.mxu0 %v3220
    %3395 = vmatpush.bf16.msra.mxu0 %v3219
    %3396 = vmatpush.bf16.msra.mxu0 %v3218
    %3397 = vmatpush.bf16.msra.mxu0 %v3217
    %3398 = vmatpush.bf16.msra.mxu0 %v3216
    %3399 = vmatmul.bf16.gmra.mxu0 %v2701
    %v3400 = vpop.f32.mrf.mxu0
    %v3401 = vadd.f32 %v3388, %v3400
    %v3402 = vpop.f32.mrf.mxu0
    %3403 = vdwg.mxu0
    %3404 = vmatpush.bf16.msra.mxu0 %v3231
    %3405 = vmatpush.bf16.msra.mxu0 %v3230
    %3406 = vmatpush.bf16.msra.mxu0 %v3229
    %3407 = vmatpush.bf16.msra.mxu0 %v3228
    %3408 = vmatpush.bf16.msra.mxu0 %v3227
    %3409 = vmatpush.bf16.msra.mxu0 %v3226
    %3410 = vmatpush.bf16.msra.mxu0 %v3225
    %3411 = vmatpush.bf16.msra.mxu0 %v3224
    %3412 = vmatmul.bf16.gmra.mxu0 %v2702
    %v3413 = vpop.f32.mrf.mxu0
    %v3414 = vadd.f32 %v3401, %v3413
    %v3415 = vpop.f32.mrf.mxu0
    %3416 = vdwg.mxu0
    %3417 = vmatpush.bf16.msra.mxu0 %v3239
    %3418 = vmatpush.bf16.msra.mxu0 %v3238
    %3419 = vmatpush.bf16.msra.mxu0 %v3237
    %3420 = vmatpush.bf16.msra.mxu0 %v3236
    %3421 = vmatpush.bf16.msra.mxu0 %v3235
    %3422 = vmatpush.bf16.msra.mxu0 %v3234
    %3423 = vmatpush.bf16.msra.mxu0 %v3233
    %3424 = vmatpush.bf16.msra.mxu0 %v3232
    %3425 = vmatmul.bf16.gmra.mxu0 %v2703
    %v3426 = vpop.f32.mrf.mxu0
    %v3427 = vadd.f32 %v3414, %v3426
    %v3428 = vpop.f32.mrf.mxu0
    %3429 = vdwg.mxu0
    %3430 = vmatpush.bf16.msra.mxu0 %v3247
    %3431 = vmatpush.bf16.msra.mxu0 %v3246
    %3432 = vmatpush.bf16.msra.mxu0 %v3245
    %3433 = vmatpush.bf16.msra.mxu0 %v3244
    %3434 = vmatpush.bf16.msra.mxu0 %v3243
    %3435 = vmatpush.bf16.msra.mxu0 %v3242
    %3436 = vmatpush.bf16.msra.mxu0 %v3241
    %3437 = vmatpush.bf16.msra.mxu0 %v3240
    %3438 = vmatmul.bf16.gmra.mxu0 %v2704
    %v3439 = vpop.f32.mrf.mxu0
    %v3440 = vadd.f32 %v3427, %v3439
    %v3441 = vpop.f32.mrf.mxu0
    %3442 = vdwg.mxu0
    %3443 = vmatpush.bf16.msra.mxu0 %v3255
    %3444 = vmatpush.bf16.msra.mxu0 %v3254
    %3445 = vmatpush.bf16.msra.mxu0 %v3253
    %3446 = vmatpush.bf16.msra.mxu0 %v3252
    %3447 = vmatpush.bf16.msra.mxu0 %v3251
    %3448 = vmatpush.bf16.msra.mxu0 %v3250
    %3449 = vmatpush.bf16.msra.mxu0 %v3249
    %3450 = vmatpush.bf16.msra.mxu0 %v3248
    %3451 = vmatmul.bf16.gmra.mxu0 %v2705
    %v3452 = vpop.f32.mrf.mxu0
    %v3453 = vadd.f32 %v3440, %v3452
    %v3454 = vpop.f32.mrf.mxu0
    %3455 = vdwg.mxu0
    %3456 = vmatpush.bf16.msra.mxu0 %v3263
    %3457 = vmatpush.bf16.msra.mxu0 %v3262
    %3458 = vmatpush.bf16.msra.mxu0 %v3261
    %3459 = vmatpush.bf16.msra.mxu0 %v3260
    %3460 = vmatpush.bf16.msra.mxu0 %v3259
    %3461 = vmatpush.bf16.msra.mxu0 %v3258
    %3462 = vmatpush.bf16.msra.mxu0 %v3257
    %3463 = vmatpush.bf16.msra.mxu0 %v3256
    %3464 = vmatmul.bf16.gmra.mxu0 %v2706
    %v3465 = vpop.f32.mrf.mxu0
    %v3466 = vadd.f32 %v3453, %v3465
    %v3467 = vpop.f32.mrf.mxu0
    %3468 = vdwg.mxu0
    %3469 = vmatpush.bf16.msra.mxu0 %v3271
    %3470 = vmatpush.bf16.msra.mxu0 %v3270
    %3471 = vmatpush.bf16.msra.mxu0 %v3269
    %3472 = vmatpush.bf16.msra.mxu0 %v3268
    %3473 = vmatpush.bf16.msra.mxu0 %v3267
    %3474 = vmatpush.bf16.msra.mxu0 %v3266
    %3475 = vmatpush.bf16.msra.mxu0 %v3265
    %3476 = vmatpush.bf16.msra.mxu0 %v3264
    %3477 = vmatmul.bf16.gmra.mxu0 %v2707
    %v3478 = vpop.f32.mrf.mxu0
    %v3479 = vadd.f32 %v3466, %v3478
    %v3480 = vpop.f32.mrf.mxu0
    %3481 = vdwg.mxu0
    %v3482 = vmax.f32 %v3479, 0.0
    %3483 = vst [vmem:[#allocation4] sm:$0xff] %v3482
    %v3484 = vld [vmem:[#allocation4] sm:$0xff]
    %v3485 = vpack.c.bf16 %v3484, %v3484
    %v3486 = vld [vmem:[%s7] sm:$0xf]
    %v3487 = vld [vmem:[%s7 + $0x4] sm:$0xf]
    %v3488 = vld [vmem:[%s7 + $0x8] sm:$0xf]
    %v3489 = vld [vmem:[%s7 + $0xc] sm:$0xf]
    %v3490 = vld [vmem:[%s7 + $0x10] sm:$0xf]
    %v3491 = vld [vmem:[%s7 + $0x14] sm:$0xf]
    %v3492 = vld [vmem:[%s7 + $0x18] sm:$0xf]
    %v3493 = vld [vmem:[%s7 + $0x1c] sm:$0xf]
    %v3494 = vld [vmem:[%s7 + $0x20] sm:$0xf]
    %v3495 = vld [vmem:[%s7 + $0x24] sm:$0xf]
    %v3496 = vld [vmem:[%s7 + $0x28] sm:$0xf]
    %v3497 = vld [vmem:[%s7 + $0x2c] sm:$0xf]
    %v3498 = vld [vmem:[%s7 + $0x30] sm:$0xf]
    %v3499 = vld [vmem:[%s7 + $0x34] sm:$0xf]
    %v3500 = vld [vmem:[%s7 + $0x38] sm:$0xf]
    %v3501 = vld [vmem:[%s7 + $0x3c] sm:$0xf]
    %v3502 = vld [vmem:[%s8] sm:$0x1]
    %v3504 = vperm.slane %v3502, 0
    %v3522 = vunpack.c.l.b16 %v3486
    %v3523 = vunpack.c.l.b16 %v3487
    %v3524 = vunpack.c.l.b16 %v3488
    %v3525 = vunpack.c.l.b16 %v3489
    %v3526 = vunpack.c.l.b16 %v3490
    %v3527 = vunpack.c.l.b16 %v3491
    %v3528 = vunpack.c.l.b16 %v3492
    %v3529 = vunpack.c.l.b16 %v3493
    %v3530 = vunpack.c.l.b16 %v3494
    %v3531 = vunpack.c.l.b16 %v3495
    %v3532 = vunpack.c.l.b16 %v3496
    %v3533 = vunpack.c.l.b16 %v3497
    %v3534 = vunpack.c.l.b16 %v3498
    %v3535 = vunpack.c.l.b16 %v3499
    %v3536 = vunpack.c.l.b16 %v3500
    %v3537 = vunpack.c.l.b16 %v3501
    %v3538 = vpack.c.b16 %v3523, %v3522
    %v3539 = vpack.c.b16 %v3525, %v3524
    %v3540 = vpack.c.b16 %v3527, %v3526
    %v3541 = vpack.c.b16 %v3529, %v3528
    %v3542 = vpack.c.b16 %v3531, %v3530
    %v3543 = vpack.c.b16 %v3533, %v3532
    %v3544 = vpack.c.b16 %v3535, %v3534
    %v3545 = vpack.c.b16 %v3537, %v3536
    %3554 = vmatpush.bf16.msra.mxu0 %v3545
    %3555 = vmatpush.bf16.msra.mxu0 %v3544
    %3556 = vmatpush.bf16.msra.mxu0 %v3543
    %3557 = vmatpush.bf16.msra.mxu0 %v3542
    %3558 = vmatpush.bf16.msra.mxu0 %v3541
    %3559 = vmatpush.bf16.msra.mxu0 %v3540
    %3560 = vmatpush.bf16.msra.mxu0 %v3539
    %3561 = vmatpush.bf16.msra.mxu0 %v3538
    %3562 = vmatmul.bf16.gmra.mxu0 %v3485
    %v3563 = vpop.f32.mrf.mxu0
    %v3564 = vadd.f32 %v3504, %v3563
    %v3565 = vpop.f32.mrf.mxu0
    %3566 = vdwg.mxu0
    %v3567 = vmax.f32 %v3564, 0.0
    %v3568 = vpack.c.bf16 %v3567, %v3567
    %v3569 = vld [vmem:[%s9] sm:$0xf]
    %v3570 = vld [vmem:[%s9 + $0x4] sm:$0xf]
    %v3571 = vld [vmem:[%s9 + $0x8] sm:$0xf]
    %v3572 = vld [vmem:[%s9 + $0xc] sm:$0xf]
    %v3573 = vld [vmem:[%s9 + $0x10] sm:$0xf]
    %v3574 = vld [vmem:[%s9 + $0x14] sm:$0xf]
    %v3575 = vld [vmem:[%s9 + $0x18] sm:$0xf]
    %v3576 = vld [vmem:[%s9 + $0x1c] sm:$0xf]
    %v3577 = vld [vmem:[%s9 + $0x20] sm:$0xf]
    %v3578 = vld [vmem:[%s9 + $0x24] sm:$0xf]
    %v3579 = vld [vmem:[%s9 + $0x28] sm:$0xf]
    %v3580 = vld [vmem:[%s9 + $0x2c] sm:$0xf]
    %v3581 = vld [vmem:[%s9 + $0x30] sm:$0xf]
    %v3582 = vld [vmem:[%s9 + $0x34] sm:$0xf]
    %v3583 = vld [vmem:[%s9 + $0x38] sm:$0xf]
    %v3584 = vld [vmem:[%s9 + $0x3c] sm:$0xf]
    %v3585 = vld [vmem:[%s10] sm:$0x1]
    %v3587 = vperm.slane %v3585, 0
    %v3605 = vunpack.c.l.b16 %v3569
    %v3606 = vunpack.c.l.b16 %v3570
    %v3607 = vunpack.c.l.b16 %v3571
    %v3608 = vunpack.c.l.b16 %v3572
    %v3609 = vunpack.c.l.b16 %v3573
    %v3610 = vunpack.c.l.b16 %v3574
    %v3611 = vunpack.c.l.b16 %v3575
    %v3612 = vunpack.c.l.b16 %v3576
    %v3613 = vunpack.c.l.b16 %v3577
    %v3614 = vunpack.c.l.b16 %v3578
    %v3615 = vunpack.c.l.b16 %v3579
    %v3616 = vunpack.c.l.b16 %v3580
    %v3617 = vunpack.c.l.b16 %v3581
    %v3618 = vunpack.c.l.b16 %v3582
    %v3619 = vunpack.c.l.b16 %v3583
    %v3620 = vunpack.c.l.b16 %v3584
    %v3621 = vpack.c.b16 %v3606, %v3605
    %v3622 = vpack.c.b16 %v3608, %v3607
    %v3623 = vpack.c.b16 %v3610, %v3609
    %v3624 = vpack.c.b16 %v3612, %v3611
    %v3625 = vpack.c.b16 %v3614, %v3613
    %v3626 = vpack.c.b16 %v3616, %v3615
    %v3627 = vpack.c.b16 %v3618, %v3617
    %v3628 = vpack.c.b16 %v3620, %v3619
    %3637 = vmatpush.bf16.msra.mxu0 %v3628
    %3638 = vmatpush.bf16.msra.mxu0 %v3627
    %3639 = vmatpush.bf16.msra.mxu0 %v3626
    %3640 = vmatpush.bf16.msra.mxu0 %v3625
    %3641 = vmatpush.bf16.msra.mxu0 %v3624
    %3642 = vmatpush.bf16.msra.mxu0 %v3623
    %3643 = vmatpush.bf16.msra.mxu0 %v3622
    %3644 = vmatpush.bf16.msra.mxu0 %v3621
    %3645 = vmatmul.bf16.gmra.mxu0 %v3568
    %v3646 = vpop.f32.mrf.mxu0
    %v3647 = vadd.f32 %v3587, %v3646
    %v3648 = vpop.f32.mrf.mxu0
    %3649 = vdwg.mxu0
    %3650 = vmax.xlane.f32.xlu0 %v3647
    %v3651 = vpop.xlane.xlu0 %3650
    %v3652 = vsub.f32 %v3647, %v3651
    %v3653 = vmul.f32 %v3652, 1.442695
    %v3654 = vpow.pop %v3653
    %3655 = vadd.xlane.f32.xlu0 %v3654
    %v3656 = vpop.xlane.xlu0 %3655
    %v3657 = vrcp.pop %v3656
    %v3658 = vmul.f32 %v3656, %v3657
    %v3659 = vsub.f32 1.0, %v3658
    %v3660 = vmul.f32 %v3657, %v3659
    %v3661 = vadd.f32 %v3657, %v3660
    %vm3662 = vweird.f32 %v3656
    %vm3663 = vweird.f32 %v3657
    %vm3664 = vmor %vm3662, %vm3663
    %v3665 = vsel %vm3664, %v3657, %v3661
    %v3666 = vand.u32 2147483647, %v3656
    %vm3667 = vcmp.eq.f32.partialorder %v3666, 8.507059e+37
    %v3668 = vand.u32 %v3656, 2147483648
    %v3669 = vor.u32 1.1754944e-38, %v3668
    %v3670 = vsel %vm3667, %v3669, %v3665
    %v3671 = vmul.f32 %v3654, %v3670
    %3672 = vst [vmem:[%s11] sm:$0xff] %v3671
    // Predicated region
    $region54: #{cnn_policy_forward.1} parent=1 // pred_check
      _
    $region55: #{cnn_policy_forward.1} parent=1 // pred_check_branch
      %3674 = sbr.rel (0) target = $region57
    $region56: #{cnn_policy_forward.1} parent=1 // pred_region
      _
    $region57: #{cnn_policy_forward.1} parent=1 // pred_fallthru
      _
    // Predicated region
    $region58: #{cnn_policy_forward.1} parent=1 // pred_check
      _
    $region59: #{cnn_policy_forward.1} parent=1 // pred_check_branch
      %3676 = sbr.rel (0) target = $region61
    $region60: #{cnn_policy_forward.1} parent=1 // pred_region
      _
    $region61: #{cnn_policy_forward.1} parent=1 // pred_fallthru
      _
    %3677 = vsyncpa [#allocation6], 1
    %3678 = vsyncpa [#allocation8], 1

</llo_original>
